<compile_context>
chip_gen: v6e
topology: v6e:2x2x1
jax: 0.10.0
libtpu: 0.0.40
codegen_flags: <defaults>
</compile_context>

<pallas_src>
import functools

import jax
import jax.numpy as jnp
import numpy as np
from jax.experimental import pallas as pl
from jax.experimental.pallas import tpu as pltpu

EPS = 1e-5


# ------------------------------ Pallas kernel ------------------------------ #

def _bn_relu_lane_blocked(x, sum_mat, bcast_mat, gamma, beta, count, eps):
    """Training-mode BatchNorm + affine + ReLU on x: (N, C*HW).

    Channels are contiguous HW-wide lane blocks.  sum_mat (C*HW, C) sums each
    channel block, bcast_mat (C, C*HW) broadcasts per-channel scalars back to
    lanes; both are constant 0/1 matrices, so reduction/broadcast run on the
    MXU and the whole stage stays 2-D.
    """
    inv = 1.0 / count
    mean_c = jnp.sum(jnp.dot(x, sum_mat, preferred_element_type=jnp.float32),
                     axis=0, keepdims=True) * inv                        # (1, C)
    mean_l = jnp.dot(mean_c, bcast_mat,
                     preferred_element_type=jnp.float32)                 # (1, C*HW)
    xc = x - mean_l
    var_c = jnp.sum(jnp.dot(xc * xc, sum_mat,
                            preferred_element_type=jnp.float32),
                    axis=0, keepdims=True) * inv                         # (1, C) biased
    scale_c = gamma * jax.lax.rsqrt(var_c + eps)                         # (1, C)
    scale_l = jnp.dot(scale_c, bcast_mat, preferred_element_type=jnp.float32)
    shift_l = jnp.dot(beta, bcast_mat, preferred_element_type=jnp.float32)
    return jnp.maximum(xc * scale_l + shift_l, 0.0)


def _dcgan_g_kernel(z_ref, m1_ref, m2_ref, m3_ref,
                    s1_ref, s1t_ref, s2_ref, s2t_ref,
                    g1_ref, b1_ref, g2_ref, b2_ref,
                    o_ref, *, count1, count2, eps):
    # initial: ConvTranspose(nz->C1, (4,4), 1, 0) -> BN -> ReLU
    x = jnp.dot(z_ref[...], m1_ref[...], preferred_element_type=jnp.float32)
    x = _bn_relu_lane_blocked(x, s1_ref[...], s1t_ref[...],
                              g1_ref[...], b1_ref[...], count1, eps)
    # pyramid: ConvTranspose(C1->C2, 4, 2, 1) -> BN -> ReLU
    x = jnp.dot(x, m2_ref[...], preferred_element_type=jnp.float32)
    x = _bn_relu_lane_blocked(x, s2_ref[...], s2t_ref[...],
                              g2_ref[...], b2_ref[...], count2, eps)
    # final: ConvTranspose(C2->nc, 4, 2, 1) -> tanh; stored lane-dense (N, nc*H*W)
    y = jnp.dot(x, m3_ref[...], preferred_element_type=jnp.float32)
    o_ref[...] = jnp.tanh(y)


# ----------------- one-time parameter preparation (host side) -------------- #

def _deconv_operator(w, h_in, w_in, stride, pad):
    """Dense operator of ConvTranspose2d(Cin,Cout,K,stride,pad) at a fixed
    (tiny) spatial size: (Cin*H*W, Cout*Ho*Wo), both sides NCHW row-major."""
    w = np.asarray(w)
    cin, cout, kh, kw = w.shape
    ho, wo = h_in * stride, w_in * stride

    def spread(n_out, n_in, k):
        a = np.zeros((n_out, n_in, k), np.float32)
        for o in range(n_out):
            for i in range(n_in):
                kk = o - stride * i + pad        # o == stride*i - pad + kk
                if 0 <= kk < k:
                    a[o, i, kk] = 1.0
        return a

    ah = spread(ho, h_in, kh)                    # (Ho, H, KH)
    aw = spread(wo, w_in, kw)                    # (Wo, W, KW)
    m = np.einsum('cdkl,phk,qwl->chwdpq', w, ah, aw)
    return jnp.asarray(m.reshape(cin * h_in * w_in, cout * ho * wo))


def _channel_block_mats(c, hw):
    s = np.repeat(np.eye(c, dtype=np.float32), hw, axis=0)   # (C*HW, C)
    return jnp.asarray(s), jnp.asarray(s.T)


def prepare_dcgan_g(params, *, nz):
    """Precompute kernel operands from PyTorch-layout parameters (one-time)."""
    c1 = params["w1"].shape[1]            # cngf
    c2 = params["w2"].shape[1]            # cngf // 2
    h1, w1 = params["w1"].shape[2], params["w1"].shape[3]   # initial spatial = (4,4)
    m1 = jnp.asarray(params["w1"], jnp.float32).reshape(nz, c1 * h1 * w1)
    m2 = _deconv_operator(params["w2"], h1, w1, stride=2, pad=1)
    m3 = _deconv_operator(params["w3"], 2 * h1, 2 * w1, stride=2, pad=1)
    s1, s1t = _channel_block_mats(c1, h1 * w1)
    s2, s2t = _channel_block_mats(c2, 4 * h1 * w1)
    return dict(
        m1=m1, m2=m2, m3=m3, s1=s1, s1t=s1t, s2=s2, s2t=s2t,
        g1=jnp.asarray(params["g1"], jnp.float32).reshape(1, c1),
        b1=jnp.asarray(params["b1"], jnp.float32).reshape(1, c1),
        g2=jnp.asarray(params["g2"], jnp.float32).reshape(1, c2),
        b2=jnp.asarray(params["b2"], jnp.float32).reshape(1, c2),
    )


# --------------------------------- forward --------------------------------- #

@functools.partial(jax.jit, static_argnames=("nc", "out_hw"))
def dcgan_g_forward(z, ops, *, nc, out_hw):
    n = z.shape[0]
    z2d = z.reshape(n, -1)                       # (N, nz) -- free reshape
    c1 = ops["g1"].shape[1]
    c2 = ops["g2"].shape[1]
    count1 = n * (ops["m1"].shape[1] // c1)      # N * H1 * W1
    count2 = n * (ops["m2"].shape[1] // c2)      # N * H2 * W2
    out_cols = ops["m3"].shape[1]                # nc * out_hw * out_hw

    operands = (z2d, ops["m1"], ops["m2"], ops["m3"],
                ops["s1"], ops["s1t"], ops["s2"], ops["s2t"],
                ops["g1"], ops["b1"], ops["g2"], ops["b2"])
    in_specs = [pl.BlockSpec(a.shape, lambda i: (0, 0)) for a in operands]

    out = pl.pallas_call(
        functools.partial(_dcgan_g_kernel, count1=count1, count2=count2,
                          eps=EPS),
        out_shape=jax.ShapeDtypeStruct((n, out_cols), jnp.float32),
        grid=(1,),
        in_specs=in_specs,
        out_specs=pl.BlockSpec((n, out_cols), lambda i: (0, 0)),
        compiler_params=pltpu.CompilerParams(
            dimension_semantics=("arbitrary",)),
    )(*operands)
    return out.reshape(n, nc, out_hw, out_hw)    # free reshape to NCHW


# ------------------------- plain-JAX reference (check) --------------------- #

def _convt_ref(x_nchw, w, stride, pad):
    Cin, Cout, K, _ = w.shape
    wf = jnp.transpose(w[:, :, ::-1, ::-1], (1, 0, 2, 3))  # OIHW, flipped
    return jax.lax.conv_general_dilated(
        x_nchw, wf, window_strides=(1, 1),
        padding=[(K - 1 - pad, K - 1 - pad)] * 2,
        lhs_dilation=(stride, stride),
        dimension_numbers=("NCHW", "OIHW", "NCHW"))


def _bn_relu_ref(x, gamma, beta, eps=EPS):
    mean = x.mean(axis=(0, 2, 3), keepdims=True)
    var = x.var(axis=(0, 2, 3), keepdims=True)
    y = (x - mean) / jnp.sqrt(var + eps)
    y = y * gamma.reshape(1, -1, 1, 1) + beta.reshape(1, -1, 1, 1)
    return jnp.maximum(y, 0.0)


def dcgan_g_reference(z, params):
    x = _convt_ref(z, params["w1"], 1, 0)
    x = _bn_relu_ref(x, params["g1"], params["b1"])
    x = _convt_ref(x, params["w2"], 2, 1)
    x = _bn_relu_ref(x, params["g2"], params["b2"])
    x = _convt_ref(x, params["w3"], 2, 1)
    return jnp.tanh(x)


# ---------------------------------- main ----------------------------------- #

if __name__ == "__main__":
    # DCGAN_G(isize=16, nz=8, nc=3, ngf=8) => cngf=16, tisize=(4,4):
    #   convt(8->16, (4,4), 1, 0) + BN + ReLU : (N,8,1,1) -> (N,16,4,4)
    #   convt(16->8, 4, 2, 1)     + BN + ReLU : -> (N,8,8,8)
    #   convt(8->3,  4, 2, 1)     + tanh      : -> (N,3,16,16)
    N, nz, nc, ngf = 2, 8, 3, 8
    cngf = 16
    key = jax.random.PRNGKey(0)
    k0, k1, k2, k3 = jax.random.split(key, 4)
    params = {
        "w1": 0.02 * jax.random.normal(k1, (nz, cngf, 4, 4), jnp.float32),
        "g1": jnp.ones((cngf,), jnp.float32),
        "b1": jnp.zeros((cngf,), jnp.float32),
        "w2": 0.02 * jax.random.normal(k2, (cngf, cngf // 2, 4, 4), jnp.float32),
        "g2": jnp.ones((cngf // 2,), jnp.float32),
        "b2": jnp.zeros((cngf // 2,), jnp.float32),
        "w3": 0.02 * jax.random.normal(k3, (cngf // 2, nc, 4, 4), jnp.float32),
    }
    z = jax.random.normal(k0, (N, nz, 1, 1), jnp.float32)

    ops = prepare_dcgan_g(params, nz=nz)       # one-time weight prep (host side)
    out = dcgan_g_forward(z, ops, nc=nc, out_hw=16)
    out = jax.block_until_ready(out)
    assert out.shape == (N, nc, 16, 16), out.shape

    ref = dcgan_g_reference(z, params)
    np.testing.assert_allclose(np.asarray(out), np.asarray(ref),
                               atol=1e-3, rtol=1e-3)
    print("KERNEL_OK")
</pallas_src>

<mosaic_0001>
module attributes {stable_mosaic.version = 11 : i64} {
  func.func @_dcgan_g_kernel(%arg0: i32, %arg1: memref<2x8xf32, #tpu.memory_space<vmem>>, %arg2: memref<8x256xf32, #tpu.memory_space<vmem>>, %arg3: memref<256x512xf32, #tpu.memory_space<vmem>>, %arg4: memref<512x768xf32, #tpu.memory_space<vmem>>, %arg5: memref<256x16xf32, #tpu.memory_space<vmem>>, %arg6: memref<16x256xf32, #tpu.memory_space<vmem>>, %arg7: memref<512x8xf32, #tpu.memory_space<vmem>>, %arg8: memref<8x512xf32, #tpu.memory_space<vmem>>, %arg9: memref<1x16xf32, #tpu.memory_space<vmem>>, %arg10: memref<1x16xf32, #tpu.memory_space<vmem>>, %arg11: memref<1x8xf32, #tpu.memory_space<vmem>>, %arg12: memref<1x8xf32, #tpu.memory_space<vmem>>, %arg13: memref<2x768xf32, #tpu.memory_space<vmem>>) attributes {dimension_semantics = [#tpu.dimension_semantics<arbitrary>], iteration_bounds = array<i64: 1>, scalar_prefetch = 0 : i64, scratch_operands = 0 : i64, tpu.core_type = #tpu.core_type<tc>, window_params = [{pipeline_mode = #tpu.pipeline_mode<synchronous>, transform_indices = @transform_0, window_bounds = array<i64: 2, 8>}, {pipeline_mode = #tpu.pipeline_mode<synchronous>, transform_indices = @transform_1, window_bounds = array<i64: 8, 256>}, {pipeline_mode = #tpu.pipeline_mode<synchronous>, transform_indices = @transform_2, window_bounds = array<i64: 256, 512>}, {pipeline_mode = #tpu.pipeline_mode<synchronous>, transform_indices = @transform_3, window_bounds = array<i64: 512, 768>}, {pipeline_mode = #tpu.pipeline_mode<synchronous>, transform_indices = @transform_4, window_bounds = array<i64: 256, 16>}, {pipeline_mode = #tpu.pipeline_mode<synchronous>, transform_indices = @transform_5, window_bounds = array<i64: 16, 256>}, {pipeline_mode = #tpu.pipeline_mode<synchronous>, transform_indices = @transform_6, window_bounds = array<i64: 512, 8>}, {pipeline_mode = #tpu.pipeline_mode<synchronous>, transform_indices = @transform_7, window_bounds = array<i64: 8, 512>}, {pipeline_mode = #tpu.pipeline_mode<synchronous>, transform_indices = @transform_8, window_bounds = array<i64: 1, 16>}, {pipeline_mode = #tpu.pipeline_mode<synchronous>, transform_indices = @transform_9, window_bounds = array<i64: 1, 16>}, {pipeline_mode = #tpu.pipeline_mode<synchronous>, transform_indices = @transform_10, window_bounds = array<i64: 1, 8>}, {pipeline_mode = #tpu.pipeline_mode<synchronous>, transform_indices = @transform_11, window_bounds = array<i64: 1, 8>}, {pipeline_mode = #tpu.pipeline_mode<synchronous>, transform_indices = @transform_12, window_bounds = array<i64: 2, 768>}]} {
    %c0 = arith.constant 0 : index
    %c0_0 = arith.constant 0 : index
    %0 = vector.load %arg1[%c0, %c0_0] : memref<2x8xf32, #tpu.memory_space<vmem>>, vector<2x8xf32>
    %c0_1 = arith.constant 0 : index
    %c0_2 = arith.constant 0 : index
    %1 = vector.load %arg2[%c0_1, %c0_2] : memref<8x256xf32, #tpu.memory_space<vmem>>, vector<8x256xf32>
    %cst = arith.constant dense<0.000000e+00> : vector<2x256xf32>
    %2 = tpu.matmul %0, %1, %cst {dimension_numbers = #tpu.dot_dimension_numbers<[1], [0], [0], [1], [0, 0, 1, 1], [], []>} : vector<2x8xf32>, vector<8x256xf32>, vector<2x256xf32> -> vector<2x256xf32>
    %c0_3 = arith.constant 0 : index
    %c0_4 = arith.constant 0 : index
    %3 = vector.load %arg5[%c0_3, %c0_4] : memref<256x16xf32, #tpu.memory_space<vmem>>, vector<256x16xf32>
    %c0_5 = arith.constant 0 : index
    %c0_6 = arith.constant 0 : index
    %4 = vector.load %arg6[%c0_5, %c0_6] : memref<16x256xf32, #tpu.memory_space<vmem>>, vector<16x256xf32>
    %c0_7 = arith.constant 0 : index
    %c0_8 = arith.constant 0 : index
    %5 = vector.load %arg9[%c0_7, %c0_8] : memref<1x16xf32, #tpu.memory_space<vmem>>, vector<1x16xf32>
    %c0_9 = arith.constant 0 : index
    %c0_10 = arith.constant 0 : index
    %6 = vector.load %arg10[%c0_9, %c0_10] : memref<1x16xf32, #tpu.memory_space<vmem>>, vector<1x16xf32>
    %cst_11 = arith.constant dense<0.000000e+00> : vector<2x16xf32>
    %7 = tpu.matmul %2, %3, %cst_11 {dimension_numbers = #tpu.dot_dimension_numbers<[1], [0], [0], [1], [0, 0, 1, 1], [], []>} : vector<2x256xf32>, vector<256x16xf32>, vector<2x16xf32> -> vector<2x16xf32>
    %cst_12 = arith.constant dense<0.000000e+00> : vector<16xf32>
    %8 = vector.multi_reduction <add>, %7, %cst_12 [0] : vector<2x16xf32> to vector<16xf32>
    %9 = vector.shape_cast %8 : vector<16xf32> to vector<1x16xf32>
    %cst_13 = arith.constant 3.125000e-02 : f32
    %10 = vector.broadcast %cst_13 : f32 to vector<1x16xf32>
    %11 = arith.mulf %9, %10 : vector<1x16xf32>
    %cst_14 = arith.constant dense<0.000000e+00> : vector<1x256xf32>
    %12 = tpu.matmul %11, %4, %cst_14 {dimension_numbers = #tpu.dot_dimension_numbers<[1], [0], [0], [1], [0, 0, 1, 1], [], []>} : vector<1x16xf32>, vector<16x256xf32>, vector<1x256xf32> -> vector<1x256xf32>
    %13 = vector.broadcast %12 : vector<1x256xf32> to vector<2x256xf32>
    %14 = arith.subf %2, %13 : vector<2x256xf32>
    %15 = arith.mulf %14, %14 : vector<2x256xf32>
    %cst_15 = arith.constant dense<0.000000e+00> : vector<2x16xf32>
    %16 = tpu.matmul %15, %3, %cst_15 {dimension_numbers = #tpu.dot_dimension_numbers<[1], [0], [0], [1], [0, 0, 1, 1], [], []>} : vector<2x256xf32>, vector<256x16xf32>, vector<2x16xf32> -> vector<2x16xf32>
    %cst_16 = arith.constant dense<0.000000e+00> : vector<16xf32>
    %17 = vector.multi_reduction <add>, %16, %cst_16 [0] : vector<2x16xf32> to vector<16xf32>
    %18 = vector.shape_cast %17 : vector<16xf32> to vector<1x16xf32>
    %cst_17 = arith.constant 3.125000e-02 : f32
    %19 = vector.broadcast %cst_17 : f32 to vector<1x16xf32>
    %20 = arith.mulf %18, %19 : vector<1x16xf32>
    %cst_18 = arith.constant 9.99999974E-6 : f32
    %21 = vector.broadcast %cst_18 : f32 to vector<1x16xf32>
    %22 = arith.addf %20, %21 : vector<1x16xf32>
    %23 = math.rsqrt %22 : vector<1x16xf32>
    %24 = arith.mulf %5, %23 : vector<1x16xf32>
    %cst_19 = arith.constant dense<0.000000e+00> : vector<1x256xf32>
    %25 = tpu.matmul %24, %4, %cst_19 {dimension_numbers = #tpu.dot_dimension_numbers<[1], [0], [0], [1], [0, 0, 1, 1], [], []>} : vector<1x16xf32>, vector<16x256xf32>, vector<1x256xf32> -> vector<1x256xf32>
    %cst_20 = arith.constant dense<0.000000e+00> : vector<1x256xf32>
    %26 = tpu.matmul %6, %4, %cst_20 {dimension_numbers = #tpu.dot_dimension_numbers<[1], [0], [0], [1], [0, 0, 1, 1], [], []>} : vector<1x16xf32>, vector<16x256xf32>, vector<1x256xf32> -> vector<1x256xf32>
    %27 = vector.broadcast %25 : vector<1x256xf32> to vector<2x256xf32>
    %28 = arith.mulf %14, %27 : vector<2x256xf32>
    %29 = vector.broadcast %26 : vector<1x256xf32> to vector<2x256xf32>
    %30 = arith.addf %28, %29 : vector<2x256xf32>
    %cst_21 = arith.constant 0.000000e+00 : f32
    %31 = vector.broadcast %cst_21 : f32 to vector<2x256xf32>
    %32 = arith.maximumf %30, %31 : vector<2x256xf32>
    %c0_22 = arith.constant 0 : index
    %c0_23 = arith.constant 0 : index
    %33 = vector.load %arg3[%c0_22, %c0_23] : memref<256x512xf32, #tpu.memory_space<vmem>>, vector<256x512xf32>
    %cst_24 = arith.constant dense<0.000000e+00> : vector<2x512xf32>
    %34 = tpu.matmul %32, %33, %cst_24 {dimension_numbers = #tpu.dot_dimension_numbers<[1], [0], [0], [1], [0, 0, 1, 1], [], []>} : vector<2x256xf32>, vector<256x512xf32>, vector<2x512xf32> -> vector<2x512xf32>
    %c0_25 = arith.constant 0 : index
    %c0_26 = arith.constant 0 : index
    %35 = vector.load %arg7[%c0_25, %c0_26] : memref<512x8xf32, #tpu.memory_space<vmem>>, vector<512x8xf32>
    %c0_27 = arith.constant 0 : index
    %c0_28 = arith.constant 0 : index
    %36 = vector.load %arg8[%c0_27, %c0_28] : memref<8x512xf32, #tpu.memory_space<vmem>>, vector<8x512xf32>
    %c0_29 = arith.constant 0 : index
    %c0_30 = arith.constant 0 : index
    %37 = vector.load %arg11[%c0_29, %c0_30] : memref<1x8xf32, #tpu.memory_space<vmem>>, vector<1x8xf32>
    %c0_31 = arith.constant 0 : index
    %c0_32 = arith.constant 0 : index
    %38 = vector.load %arg12[%c0_31, %c0_32] : memref<1x8xf32, #tpu.memory_space<vmem>>, vector<1x8xf32>
    %cst_33 = arith.constant dense<0.000000e+00> : vector<2x8xf32>
    %39 = tpu.matmul %34, %35, %cst_33 {dimension_numbers = #tpu.dot_dimension_numbers<[1], [0], [0], [1], [0, 0, 1, 1], [], []>} : vector<2x512xf32>, vector<512x8xf32>, vector<2x8xf32> -> vector<2x8xf32>
    %cst_34 = arith.constant dense<0.000000e+00> : vector<8xf32>
    %40 = vector.multi_reduction <add>, %39, %cst_34 [0] : vector<2x8xf32> to vector<8xf32>
    %41 = vector.shape_cast %40 : vector<8xf32> to vector<1x8xf32>
    %cst_35 = arith.constant 7.812500e-03 : f32
    %42 = vector.broadcast %cst_35 : f32 to vector<1x8xf32>
    %43 = arith.mulf %41, %42 : vector<1x8xf32>
    %cst_36 = arith.constant dense<0.000000e+00> : vector<1x512xf32>
    %44 = tpu.matmul %43, %36, %cst_36 {dimension_numbers = #tpu.dot_dimension_numbers<[1], [0], [0], [1], [0, 0, 1, 1], [], []>} : vector<1x8xf32>, vector<8x512xf32>, vector<1x512xf32> -> vector<1x512xf32>
    %45 = vector.broadcast %44 : vector<1x512xf32> to vector<2x512xf32>
    %46 = arith.subf %34, %45 : vector<2x512xf32>
    %47 = arith.mulf %46, %46 : vector<2x512xf32>
    %cst_37 = arith.constant dense<0.000000e+00> : vector<2x8xf32>
    %48 = tpu.matmul %47, %35, %cst_37 {dimension_numbers = #tpu.dot_dimension_numbers<[1], [0], [0], [1], [0, 0, 1, 1], [], []>} : vector<2x512xf32>, vector<512x8xf32>, vector<2x8xf32> -> vector<2x8xf32>
    %cst_38 = arith.constant dense<0.000000e+00> : vector<8xf32>
    %49 = vector.multi_reduction <add>, %48, %cst_38 [0] : vector<2x8xf32> to vector<8xf32>
    %50 = vector.shape_cast %49 : vector<8xf32> to vector<1x8xf32>
    %cst_39 = arith.constant 7.812500e-03 : f32
    %51 = vector.broadcast %cst_39 : f32 to vector<1x8xf32>
    %52 = arith.mulf %50, %51 : vector<1x8xf32>
    %cst_40 = arith.constant 9.99999974E-6 : f32
    %53 = vector.broadcast %cst_40 : f32 to vector<1x8xf32>
    %54 = arith.addf %52, %53 : vector<1x8xf32>
    %55 = math.rsqrt %54 : vector<1x8xf32>
    %56 = arith.mulf %37, %55 : vector<1x8xf32>
    %cst_41 = arith.constant dense<0.000000e+00> : vector<1x512xf32>
    %57 = tpu.matmul %56, %36, %cst_41 {dimension_numbers = #tpu.dot_dimension_numbers<[1], [0], [0], [1], [0, 0, 1, 1], [], []>} : vector<1x8xf32>, vector<8x512xf32>, vector<1x512xf32> -> vector<1x512xf32>
    %cst_42 = arith.constant dense<0.000000e+00> : vector<1x512xf32>
    %58 = tpu.matmul %38, %36, %cst_42 {dimension_numbers = #tpu.dot_dimension_numbers<[1], [0], [0], [1], [0, 0, 1, 1], [], []>} : vector<1x8xf32>, vector<8x512xf32>, vector<1x512xf32> -> vector<1x512xf32>
    %59 = vector.broadcast %57 : vector<1x512xf32> to vector<2x512xf32>
    %60 = arith.mulf %46, %59 : vector<2x512xf32>
    %61 = vector.broadcast %58 : vector<1x512xf32> to vector<2x512xf32>
    %62 = arith.addf %60, %61 : vector<2x512xf32>
    %cst_43 = arith.constant 0.000000e+00 : f32
    %63 = vector.broadcast %cst_43 : f32 to vector<2x512xf32>
    %64 = arith.maximumf %62, %63 : vector<2x512xf32>
    %c0_44 = arith.constant 0 : index
    %c0_45 = arith.constant 0 : index
    %65 = vector.load %arg4[%c0_44, %c0_45] : memref<512x768xf32, #tpu.memory_space<vmem>>, vector<512x768xf32>
    %cst_46 = arith.constant dense<0.000000e+00> : vector<2x768xf32>
    %66 = tpu.matmul %64, %65, %cst_46 {dimension_numbers = #tpu.dot_dimension_numbers<[1], [0], [0], [1], [0, 0, 1, 1], [], []>} : vector<2x512xf32>, vector<512x768xf32>, vector<2x768xf32> -> vector<2x768xf32>
    %67 = math.tanh %66 : vector<2x768xf32>
    %c0_47 = arith.constant 0 : index
    %c0_48 = arith.constant 0 : index
    %68 = vector.load %arg13[%c0_47, %c0_48] : memref<2x768xf32, #tpu.memory_space<vmem>>, vector<2x768xf32>
    tpu.vector_store %arg13[%c0_47, %c0_48], %67 {strides = array<i32>} : memref<2x768xf32, #tpu.memory_space<vmem>>, vector<2x768xf32>,
    return
  }
  func.func @transform_0(%arg0: i32) -> (i32, i32) {
    %c0_i32 = arith.constant 0 : i32
    %c0_i32_0 = arith.constant 0 : i32
    %c0_i32_1 = arith.constant 0 : i32
    return %c0_i32, %c0_i32_0 : i32, i32
  }
  func.func @transform_1(%arg0: i32) -> (i32, i32) {
    %c0_i32 = arith.constant 0 : i32
    %c0_i32_0 = arith.constant 0 : i32
    %c0_i32_1 = arith.constant 0 : i32
    return %c0_i32, %c0_i32_0 : i32, i32
  }
  func.func @transform_2(%arg0: i32) -> (i32, i32) {
    %c0_i32 = arith.constant 0 : i32
    %c0_i32_0 = arith.constant 0 : i32
    %c0_i32_1 = arith.constant 0 : i32
    return %c0_i32, %c0_i32_0 : i32, i32
  }
  func.func @transform_3(%arg0: i32) -> (i32, i32) {
    %c0_i32 = arith.constant 0 : i32
    %c0_i32_0 = arith.constant 0 : i32
    %c0_i32_1 = arith.constant 0 : i32
    return %c0_i32, %c0_i32_0 : i32, i32
  }
  func.func @transform_4(%arg0: i32) -> (i32, i32) {
    %c0_i32 = arith.constant 0 : i32
    %c0_i32_0 = arith.constant 0 : i32
    %c0_i32_1 = arith.constant 0 : i32
    return %c0_i32, %c0_i32_0 : i32, i32
  }
  func.func @transform_5(%arg0: i32) -> (i32, i32) {
    %c0_i32 = arith.constant 0 : i32
    %c0_i32_0 = arith.constant 0 : i32
    %c0_i32_1 = arith.constant 0 : i32
    return %c0_i32, %c0_i32_0 : i32, i32
  }
  func.func @transform_6(%arg0: i32) -> (i32, i32) {
    %c0_i32 = arith.constant 0 : i32
    %c0_i32_0 = arith.constant 0 : i32
    %c0_i32_1 = arith.constant 0 : i32
    return %c0_i32, %c0_i32_0 : i32, i32
  }
  func.func @transform_7(%arg0: i32) -> (i32, i32) {
    %c0_i32 = arith.constant 0 : i32
    %c0_i32_0 = arith.constant 0 : i32
    %c0_i32_1 = arith.constant 0 : i32
    return %c0_i32, %c0_i32_0 : i32, i32
  }
  func.func @transform_8(%arg0: i32) -> (i32, i32) {
    %c0_i32 = arith.constant 0 : i32
    %c0_i32_0 = arith.constant 0 : i32
    %c0_i32_1 = arith.constant 0 : i32
    return %c0_i32, %c0_i32_0 : i32, i32
  }
  func.func @transform_9(%arg0: i32) -> (i32, i32) {
    %c0_i32 = arith.constant 0 : i32
    %c0_i32_0 = arith.constant 0 : i32
    %c0_i32_1 = arith.constant 0 : i32
    return %c0_i32, %c0_i32_0 : i32, i32
  }
  func.func @transform_10(%arg0: i32) -> (i32, i32) {
    %c0_i32 = arith.constant 0 : i32
    %c0_i32_0 = arith.constant 0 : i32
    %c0_i32_1 = arith.constant 0 : i32
    return %c0_i32, %c0_i32_0 : i32, i32
  }
  func.func @transform_11(%arg0: i32) -> (i32, i32) {
    %c0_i32 = arith.constant 0 : i32
    %c0_i32_0 = arith.constant 0 : i32
    %c0_i32_1 = arith.constant 0 : i32
    return %c0_i32, %c0_i32_0 : i32, i32
  }
  func.func @transform_12(%arg0: i32) -> (i32, i32) {
    %c0_i32 = arith.constant 0 : i32
    %c0_i32_0 = arith.constant 0 : i32
    %c0_i32_1 = arith.constant 0 : i32
    return %c0_i32, %c0_i32_0 : i32, i32
  }
}

</mosaic_0001>

<llo_original>
// kernel: dcgan_g_forward.1
$region0: #{dcgan_g_forward.1}
  #allocation0 [shape = 'u32[]', space=smem, size = 0x4, offset = 0x4, fixed_abs, tag = 'smem constant byte address 0x4 - core index']
  #allocation1 [shape = 'u32[144,128]{1,0:T(1,128)}', space=vmem, size = 0x12000, scoped, tag = 'internal scratch']
  %s0 = inlined_call_operand.hbm [shape: f32[2,8], index: 0, kind: input, shape index: {}]
  %s1 = inlined_call_operand.hbm [shape: f32[8,256], index: 1, kind: input, shape index: {}]
  %s2 = inlined_call_operand.hbm [shape: f32[256,512], index: 2, kind: input, shape index: {}]
  %s3 = inlined_call_operand.hbm [shape: f32[512,768], index: 3, kind: input, shape index: {}]
  %s4 = inlined_call_operand.vmem [shape: f32[256,16], index: 4, kind: input, shape index: {}]
  %s5 = inlined_call_operand.hbm [shape: f32[16,256], index: 5, kind: input, shape index: {}]
  %s6 = inlined_call_operand.vmem [shape: f32[512,8], index: 6, kind: input, shape index: {}]
  %s7 = inlined_call_operand.hbm [shape: f32[8,512], index: 7, kind: input, shape index: {}]
  %s8 = inlined_call_operand.hbm [shape: f32[1,16], index: 8, kind: input, shape index: {}]
  %s9 = inlined_call_operand.hbm [shape: f32[1,16], index: 9, kind: input, shape index: {}]
  %s10 = inlined_call_operand.hbm [shape: f32[1,8], index: 10, kind: input, shape index: {}]
  %s11 = inlined_call_operand.hbm [shape: f32[1,8], index: 11, kind: input, shape index: {}]
  %s12 = inlined_call_operand.vmem [shape: f32[2,768], index: 12, kind: output, shape index: {}]
  %s13 = sld [smem:[#allocation0]]
  $region98: #{dcgan_g_forward.1} parent=0
    _
  %s15 = ssub.s32 1, %s13
  %s16 = scalar_select 0, %s15, %s13
  $region1: #{dcgan_g_forward.1} parent=0
    #allocation2 [shape = 'u8[1024]{0}', space=vmem, size = 0x400, scoped, tag = 'input window, operand 0, single buffered']
    #allocation3 [shape = 's32[1]{0}', space=sflag, size = 0x4, scoped, tag = 'scoped memory for dcgan_g_forward.1']
    #allocation4 [shape = 'u8[8192]{0}', space=vmem, size = 0x2000, scoped, tag = 'input window, operand 1, single buffered']
    #allocation5 [shape = 's32[1]{0}', space=sflag, size = 0x4, scoped, tag = 'scoped memory for dcgan_g_forward.1']
    #allocation6 [shape = 'u8[524288]{0}', space=vmem, size = 0x80000, scoped, tag = 'input window, operand 2, single buffered']
    #allocation7 [shape = 'u8[1572864]{0}', space=vmem, size = 0x180000, scoped, tag = 'input window, operand 3, single buffered']
    #allocation8 [shape = 's32[1]{0}', space=sflag, size = 0x4, scoped, tag = 'scoped memory for dcgan_g_forward.1']
    #allocation9 [shape = 'u8[16384]{0}', space=vmem, size = 0x4000, scoped, tag = 'input window, operand 5, single buffered']
    #allocation10 [shape = 'u8[16384]{0}', space=vmem, size = 0x4000, scoped, tag = 'input window, operand 7, single buffered']
    #allocation11 [shape = 's32[1]{0}', space=sflag, size = 0x4, scoped, tag = 'scoped memory for dcgan_g_forward.1']
    #allocation12 [shape = 'u8[512]{0}', space=vmem, size = 0x400, scoped, tag = 'input window, operand 8, single buffered']
    #allocation13 [shape = 'u8[512]{0}', space=vmem, size = 0x400, scoped, tag = 'input window, operand 9, single buffered']
    #allocation14 [shape = 's32[1]{0}', space=sflag, size = 0x4, scoped, tag = 'scoped memory for dcgan_g_forward.1']
    #allocation15 [shape = 'u8[512]{0}', space=vmem, size = 0x400, scoped, tag = 'input window, operand 10, single buffered']
    #allocation16 [shape = 'u8[512]{0}', space=vmem, size = 0x400, scoped, tag = 'input window, operand 11, single buffered']
    #allocation17 [shape = 's32[1]{0}', space=sflag, size = 0x4, scoped, tag = 'scoped memory for dcgan_g_forward.1']
    %17 = vsyncpa [#allocation3], 0
    %18 = vsyncpa [#allocation5], 0
    %19 = vsyncpa [#allocation8], 0
    %20 = vsyncpa [#allocation11], 0
    %21 = vsyncpa [#allocation14], 0
    %22 = vsyncpa [#allocation17], 0
    // Predicated region
    $region2: #{dcgan_g_forward.1} parent=1 // pred_check
      _
    $region3: #{dcgan_g_forward.1} parent=1 // pred_check_branch
      %24 = sbr.rel (0) target = $region5
    $region4: #{dcgan_g_forward.1} parent=1 // pred_region
      %s26 = ssub.s32 32, 32
      %27 = vsyncadd [#allocation3], %s26
      %s29 = sshll.u32 [#allocation2], 4
      %s30 = int_to_ptr.vmem [resolvable:$true] %s29
      %32 = dma.hbm_to_vmem [thread:$0]  %s0, 32, %s30, [#allocation3]
    $region5: #{dcgan_g_forward.1} parent=1 // pred_fallthru
      _
    // Predicated region
    $region6: #{dcgan_g_forward.1} parent=1 // pred_check
      _
    $region7: #{dcgan_g_forward.1} parent=1 // pred_check_branch
      %34 = sbr.rel (0) target = $region9
    $region8: #{dcgan_g_forward.1} parent=1 // pred_region
      %s36 = ssub.s32 256, 256
      %37 = vsyncadd [#allocation5], %s36
      %s39 = sshll.u32 [#allocation4], 4
      %s40 = int_to_ptr.vmem [resolvable:$true] %s39
      %42 = dma.hbm_to_vmem [thread:$0]  %s1, 256, %s40, [#allocation5]
    $region9: #{dcgan_g_forward.1} parent=1 // pred_fallthru
      _
    // Predicated region
    $region10: #{dcgan_g_forward.1} parent=1 // pred_check
      _
    $region11: #{dcgan_g_forward.1} parent=1 // pred_check_branch
      %44 = sbr.rel (0) target = $region13
    $region12: #{dcgan_g_forward.1} parent=1 // pred_region
      %s46 = ssub.s32 16384, 16384
      %47 = vsyncadd [#allocation5], %s46
      %s48 = sshll.u32 [#allocation6], 4
      %s49 = int_to_ptr.vmem [resolvable:$true] %s48
      %54 = dma.hbm_to_vmem [thread:$0]  %s2, 16384, %s49, [#allocation5], 512, 512, 32
    $region13: #{dcgan_g_forward.1} parent=1 // pred_fallthru
      _
    // Predicated region
    $region14: #{dcgan_g_forward.1} parent=1 // pred_check
      _
    $region15: #{dcgan_g_forward.1} parent=1 // pred_check_branch
      %56 = sbr.rel (0) target = $region17
    $region16: #{dcgan_g_forward.1} parent=1 // pred_region
      %s58 = ssub.s32 49152, 49152
      %59 = vsyncadd [#allocation8], %s58
      %s60 = sshll.u32 [#allocation7], 4
      %s61 = int_to_ptr.vmem [resolvable:$true] %s60
      %66 = dma.hbm_to_vmem [thread:$0]  %s3, 49152, %s61, [#allocation8], 768, 768, 48
    $region17: #{dcgan_g_forward.1} parent=1 // pred_fallthru
      _
    // Predicated region
    $region18: #{dcgan_g_forward.1} parent=1 // pred_check
      _
    $region19: #{dcgan_g_forward.1} parent=1 // pred_check_branch
      %68 = sbr.rel (0) target = $region21
    $region20: #{dcgan_g_forward.1} parent=1 // pred_region
      _
    $region21: #{dcgan_g_forward.1} parent=1 // pred_fallthru
      _
    // Predicated region
    $region22: #{dcgan_g_forward.1} parent=1 // pred_check
      _
    $region23: #{dcgan_g_forward.1} parent=1 // pred_check_branch
      %70 = sbr.rel (0) target = $region25
    $region24: #{dcgan_g_forward.1} parent=1 // pred_region
      %s72 = ssub.s32 512, 512
      %73 = vsyncadd [#allocation8], %s72
      %s74 = sshll.u32 [#allocation9], 4
      %s75 = int_to_ptr.vmem [resolvable:$true] %s74
      %80 = dma.hbm_to_vmem [thread:$0]  %s5, 512, %s75, [#allocation8], 256, 256, 16
    $region25: #{dcgan_g_forward.1} parent=1 // pred_fallthru
      _
    // Predicated region
    $region26: #{dcgan_g_forward.1} parent=1 // pred_check
      _
    $region27: #{dcgan_g_forward.1} parent=1 // pred_check_branch
      %82 = sbr.rel (0) target = $region29
    $region28: #{dcgan_g_forward.1} parent=1 // pred_region
      _
    $region29: #{dcgan_g_forward.1} parent=1 // pred_fallthru
      _
    // Predicated region
    $region30: #{dcgan_g_forward.1} parent=1 // pred_check
      _
    $region31: #{dcgan_g_forward.1} parent=1 // pred_check_branch
      %84 = sbr.rel (0) target = $region33
    $region32: #{dcgan_g_forward.1} parent=1 // pred_region
      %s86 = ssub.s32 512, 512
      %87 = vsyncadd [#allocation11], %s86
      %s89 = sshll.u32 [#allocation10], 4
      %s90 = int_to_ptr.vmem [resolvable:$true] %s89
      %92 = dma.hbm_to_vmem [thread:$0]  %s7, 512, %s90, [#allocation11]
    $region33: #{dcgan_g_forward.1} parent=1 // pred_fallthru
      _
    // Predicated region
    $region34: #{dcgan_g_forward.1} parent=1 // pred_check
      _
    $region35: #{dcgan_g_forward.1} parent=1 // pred_check_branch
      %94 = sbr.rel (0) target = $region37
    $region36: #{dcgan_g_forward.1} parent=1 // pred_region
      %s96 = ssub.s32 16, 16
      %97 = vsyncadd [#allocation11], %s96
      %s99 = sshll.u32 [#allocation12], 4
      %s100 = int_to_ptr.vmem [resolvable:$true] %s99
      %102 = dma.hbm_to_vmem [thread:$0]  %s8, 16, %s100, [#allocation11]
    $region37: #{dcgan_g_forward.1} parent=1 // pred_fallthru
      _
    // Predicated region
    $region38: #{dcgan_g_forward.1} parent=1 // pred_check
      _
    $region39: #{dcgan_g_forward.1} parent=1 // pred_check_branch
      %104 = sbr.rel (0) target = $region41
    $region40: #{dcgan_g_forward.1} parent=1 // pred_region
      %s106 = ssub.s32 16, 16
      %107 = vsyncadd [#allocation14], %s106
      %s109 = sshll.u32 [#allocation13], 4
      %s110 = int_to_ptr.vmem [resolvable:$true] %s109
      %112 = dma.hbm_to_vmem [thread:$0]  %s9, 16, %s110, [#allocation14]
    $region41: #{dcgan_g_forward.1} parent=1 // pred_fallthru
      _
    // Predicated region
    $region42: #{dcgan_g_forward.1} parent=1 // pred_check
      _
    $region43: #{dcgan_g_forward.1} parent=1 // pred_check_branch
      %114 = sbr.rel (0) target = $region45
    $region44: #{dcgan_g_forward.1} parent=1 // pred_region
      %s116 = ssub.s32 16, 16
      %117 = vsyncadd [#allocation14], %s116
      %s119 = sshll.u32 [#allocation15], 4
      %s120 = int_to_ptr.vmem [resolvable:$true] %s119
      %122 = dma.hbm_to_vmem [thread:$0]  %s10, 16, %s120, [#allocation14]
    $region45: #{dcgan_g_forward.1} parent=1 // pred_fallthru
      _
    // Predicated region
    $region46: #{dcgan_g_forward.1} parent=1 // pred_check
      _
    $region47: #{dcgan_g_forward.1} parent=1 // pred_check_branch
      %124 = sbr.rel (0) target = $region49
    $region48: #{dcgan_g_forward.1} parent=1 // pred_region
      %s126 = ssub.s32 16, 16
      %127 = vsyncadd [#allocation17], %s126
      %s129 = sshll.u32 [#allocation16], 4
      %s130 = int_to_ptr.vmem [resolvable:$true] %s129
      %132 = dma.hbm_to_vmem [thread:$0]  %s11, 16, %s130, [#allocation17]
    $region49: #{dcgan_g_forward.1} parent=1 // pred_fallthru
      _
    // Predicated region
    $region50: #{dcgan_g_forward.1} parent=1 // pred_check
      _
    $region51: #{dcgan_g_forward.1} parent=1 // pred_check_branch
      %134 = sbr.rel (0) target = $region53
    $region52: #{dcgan_g_forward.1} parent=1 // pred_region
      %135 = dma.done [#allocation3], 32
    $region53: #{dcgan_g_forward.1} parent=1 // pred_fallthru
      _
    // Predicated region
    $region54: #{dcgan_g_forward.1} parent=1 // pred_check
      _
    $region55: #{dcgan_g_forward.1} parent=1 // pred_check_branch
      %137 = sbr.rel (0) target = $region57
    $region56: #{dcgan_g_forward.1} parent=1 // pred_region
      %138 = dma.done [#allocation5], 256
    $region57: #{dcgan_g_forward.1} parent=1 // pred_fallthru
      _
    // Predicated region
    $region58: #{dcgan_g_forward.1} parent=1 // pred_check
      _
    $region59: #{dcgan_g_forward.1} parent=1 // pred_check_branch
      %140 = sbr.rel (0) target = $region61
    $region60: #{dcgan_g_forward.1} parent=1 // pred_region
      %141 = dma.done [#allocation5], 16384
    $region61: #{dcgan_g_forward.1} parent=1 // pred_fallthru
      _
    // Predicated region
    $region62: #{dcgan_g_forward.1} parent=1 // pred_check
      _
    $region63: #{dcgan_g_forward.1} parent=1 // pred_check_branch
      %143 = sbr.rel (0) target = $region65
    $region64: #{dcgan_g_forward.1} parent=1 // pred_region
      %144 = dma.done [#allocation8], 49152
    $region65: #{dcgan_g_forward.1} parent=1 // pred_fallthru
      _
    // Predicated region
    $region66: #{dcgan_g_forward.1} parent=1 // pred_check
      _
    $region67: #{dcgan_g_forward.1} parent=1 // pred_check_branch
      %146 = sbr.rel (0) target = $region69
    $region68: #{dcgan_g_forward.1} parent=1 // pred_region
      %147 = dma.done [#allocation8], 512
    $region69: #{dcgan_g_forward.1} parent=1 // pred_fallthru
      _
    // Predicated region
    $region70: #{dcgan_g_forward.1} parent=1 // pred_check
      _
    $region71: #{dcgan_g_forward.1} parent=1 // pred_check_branch
      %149 = sbr.rel (0) target = $region73
    $region72: #{dcgan_g_forward.1} parent=1 // pred_region
      %150 = dma.done [#allocation11], 512
    $region73: #{dcgan_g_forward.1} parent=1 // pred_fallthru
      _
    // Predicated region
    $region74: #{dcgan_g_forward.1} parent=1 // pred_check
      _
    $region75: #{dcgan_g_forward.1} parent=1 // pred_check_branch
      %152 = sbr.rel (0) target = $region77
    $region76: #{dcgan_g_forward.1} parent=1 // pred_region
      %153 = dma.done [#allocation11], 16
    $region77: #{dcgan_g_forward.1} parent=1 // pred_fallthru
      _
    // Predicated region
    $region78: #{dcgan_g_forward.1} parent=1 // pred_check
      _
    $region79: #{dcgan_g_forward.1} parent=1 // pred_check_branch
      %155 = sbr.rel (0) target = $region81
    $region80: #{dcgan_g_forward.1} parent=1 // pred_region
      %156 = dma.done [#allocation14], 16
    $region81: #{dcgan_g_forward.1} parent=1 // pred_fallthru
      _
    // Predicated region
    $region82: #{dcgan_g_forward.1} parent=1 // pred_check
      _
    $region83: #{dcgan_g_forward.1} parent=1 // pred_check_branch
      %158 = sbr.rel (0) target = $region85
    $region84: #{dcgan_g_forward.1} parent=1 // pred_region
      %159 = dma.done [#allocation14], 16
    $region85: #{dcgan_g_forward.1} parent=1 // pred_fallthru
      _
    // Predicated region
    $region86: #{dcgan_g_forward.1} parent=1 // pred_check
      _
    $region87: #{dcgan_g_forward.1} parent=1 // pred_check_branch
      %161 = sbr.rel (0) target = $region89
    $region88: #{dcgan_g_forward.1} parent=1 // pred_region
      %162 = dma.done [#allocation17], 16
    $region89: #{dcgan_g_forward.1} parent=1 // pred_fallthru
      _
    %v163 = vld [vmem:[#allocation2] sm:$0x3]
    %v164 = vld [vmem:[#allocation4] sm:$0xff]
    %v165 = vld [vmem:[#allocation4 + $0x8] sm:$0xff]
    %vm166 = vcmask 64512
    %v168 = vsel %vm166, %v163, 0
    %170 = vmatprep.subr.mxu0 0.0
    %171 = vmatpush1.msra.mxu0 0.0
    %172 = vmatprep.subr.mxu0 0.0
    %173 = vmatpush1.msra.mxu0 0.0
    %174 = vmatprep.subr.mxu0 0.0
    %175 = vmatpush1.msra.mxu0 0.0
    %176 = vmatprep.subr.mxu0 0.0
    %177 = vmatpush1.msra.mxu0 0.0
    %178 = vmatprep.subr.mxu0 0.0
    %179 = vmatpush1.msra.mxu0 0.0
    %180 = vmatprep.subr.mxu0 0.0
    %181 = vmatpush1.msra.mxu0 0.0
    %182 = vmatprep.subr.mxu0 0.0
    %183 = vmatpush1.msra.mxu0 0.0
    %184 = vmatprep.subr.mxu0 0.0
    %185 = vmatpush1.msra.mxu0 0.0
    %186 = vmatprep.subr.mxu0 0.0
    %187 = vmatpush1.msra.mxu0 0.0
    %188 = vmatprep.subr.mxu0 0.0
    %189 = vmatpush1.msra.mxu0 0.0
    %190 = vmatprep.subr.mxu0 0.0
    %191 = vmatpush1.msra.mxu0 0.0
    %192 = vmatprep.subr.mxu0 0.0
    %193 = vmatpush1.msra.mxu0 0.0
    %194 = vmatprep.subr.mxu0 0.0
    %195 = vmatpush1.msra.mxu0 0.0
    %196 = vmatprep.subr.mxu0 0.0
    %197 = vmatpush1.msra.mxu0 0.0
    %198 = vmatprep.subr.mxu0 0.0
    %199 = vmatpush1.msra.mxu0 0.0
    %200 = vmatprep.subr.mxu0 %v165
    %201 = vmatpush1.msra.mxu0 %v164
    %202 = vmatprep.subr.mxu0 0.0
    %203 = vmatpush2.msra.mxu0 0.0
    %204 = vmatprep.subr.mxu0 0.0
    %205 = vmatpush2.msra.mxu0 0.0
    %206 = vmatprep.subr.mxu0 0.0
    %207 = vmatpush2.msra.mxu0 0.0
    %208 = vmatprep.subr.mxu0 0.0
    %209 = vmatpush2.msra.mxu0 0.0
    %210 = vmatprep.subr.mxu0 0.0
    %211 = vmatpush2.msra.mxu0 0.0
    %212 = vmatprep.subr.mxu0 0.0
    %213 = vmatpush2.msra.mxu0 0.0
    %214 = vmatprep.subr.mxu0 0.0
    %215 = vmatpush2.msra.mxu0 0.0
    %216 = vmatprep.subr.mxu0 0.0
    %217 = vmatpush2.msra.mxu0 0.0
    %218 = vmatprep.subr.mxu0 0.0
    %219 = vmatpush2.msra.mxu0 0.0
    %220 = vmatprep.subr.mxu0 0.0
    %221 = vmatpush2.msra.mxu0 0.0
    %222 = vmatprep.subr.mxu0 0.0
    %223 = vmatpush2.msra.mxu0 0.0
    %224 = vmatprep.subr.mxu0 0.0
    %225 = vmatpush2.msra.mxu0 0.0
    %226 = vmatprep.subr.mxu0 0.0
    %227 = vmatpush2.msra.mxu0 0.0
    %228 = vmatprep.subr.mxu0 0.0
    %229 = vmatpush2.msra.mxu0 0.0
    %230 = vmatprep.subr.mxu0 0.0
    %231 = vmatpush2.msra.mxu0 0.0
    %232 = vmatprep.subr.mxu0 0.0
    %233 = vmatpush2.msra.mxu0 0.0
    %234 = vmatprep.mubr.f32.mxu0 0.0
    %235 = vmatmul.mubr.f32.gmra.mxu0 %v168
    %v236 = vpop.f32.mrf.mxu0
    %v237 = vadd.f32 0.0, %v236
    %v238 = vpop.f32.mrf.mxu0
    %v239 = vadd.f32 0.0, %v238
    %240 = vdwg.mxu0
    %v241 = vld [vmem:[%s4] sm:$0xff]
    %v242 = vld [vmem:[%s4 + $0x8] sm:$0xff]
    %v243 = vld [vmem:[%s4 + $0x10] sm:$0xff]
    %v244 = vld [vmem:[%s4 + $0x18] sm:$0xff]
    %v245 = vld [vmem:[%s4 + $0x20] sm:$0xff]
    %v246 = vld [vmem:[%s4 + $0x28] sm:$0xff]
    %v247 = vld [vmem:[%s4 + $0x30] sm:$0xff]
    %v248 = vld [vmem:[%s4 + $0x38] sm:$0xff]
    %v249 = vld [vmem:[%s4 + $0x40] sm:$0xff]
    %v250 = vld [vmem:[%s4 + $0x48] sm:$0xff]
    %v251 = vld [vmem:[%s4 + $0x50] sm:$0xff]
    %v252 = vld [vmem:[%s4 + $0x58] sm:$0xff]
    %v253 = vld [vmem:[%s4 + $0x60] sm:$0xff]
    %v254 = vld [vmem:[%s4 + $0x68] sm:$0xff]
    %v255 = vld [vmem:[%s4 + $0x70] sm:$0xff]
    %v256 = vld [vmem:[%s4 + $0x78] sm:$0xff]
    %v257 = vld [vmem:[%s4 + $0x80] sm:$0xff]
    %v258 = vld [vmem:[%s4 + $0x88] sm:$0xff]
    %v259 = vld [vmem:[%s4 + $0x90] sm:$0xff]
    %v260 = vld [vmem:[%s4 + $0x98] sm:$0xff]
    %v261 = vld [vmem:[%s4 + $0xa0] sm:$0xff]
    %v262 = vld [vmem:[%s4 + $0xa8] sm:$0xff]
    %v263 = vld [vmem:[%s4 + $0xb0] sm:$0xff]
    %v264 = vld [vmem:[%s4 + $0xb8] sm:$0xff]
    %v265 = vld [vmem:[%s4 + $0xc0] sm:$0xff]
    %v266 = vld [vmem:[%s4 + $0xc8] sm:$0xff]
    %v267 = vld [vmem:[%s4 + $0xd0] sm:$0xff]
    %v268 = vld [vmem:[%s4 + $0xd8] sm:$0xff]
    %v269 = vld [vmem:[%s4 + $0xe0] sm:$0xff]
    %v270 = vld [vmem:[%s4 + $0xe8] sm:$0xff]
    %v271 = vld [vmem:[%s4 + $0xf0] sm:$0xff]
    %v272 = vld [vmem:[%s4 + $0xf8] sm:$0xff]
    %v273 = vld [vmem:[#allocation9] sm:$0xff]
    %v274 = vld [vmem:[#allocation9 + $0x8] sm:$0xff]
    %v275 = vld [vmem:[#allocation9 + $0x10] sm:$0xff]
    %v276 = vld [vmem:[#allocation9 + $0x18] sm:$0xff]
    %v277 = vld [vmem:[#allocation12] sm:$0x1]
    %v278 = vld [vmem:[#allocation13] sm:$0x1]
    %279 = vmatprep.subr.mxu0 0.0
    %280 = vmatpush1.msra.mxu0 %v256
    %281 = vmatprep.subr.mxu0 0.0
    %282 = vmatpush1.msra.mxu0 %v255
    %283 = vmatprep.subr.mxu0 0.0
    %284 = vmatpush1.msra.mxu0 %v254
    %285 = vmatprep.subr.mxu0 0.0
    %286 = vmatpush1.msra.mxu0 %v253
    %287 = vmatprep.subr.mxu0 0.0
    %288 = vmatpush1.msra.mxu0 %v252
    %289 = vmatprep.subr.mxu0 0.0
    %290 = vmatpush1.msra.mxu0 %v251
    %291 = vmatprep.subr.mxu0 0.0
    %292 = vmatpush1.msra.mxu0 %v250
    %293 = vmatprep.subr.mxu0 0.0
    %294 = vmatpush1.msra.mxu0 %v249
    %295 = vmatprep.subr.mxu0 0.0
    %296 = vmatpush1.msra.mxu0 %v248
    %297 = vmatprep.subr.mxu0 0.0
    %298 = vmatpush1.msra.mxu0 %v247
    %299 = vmatprep.subr.mxu0 0.0
    %300 = vmatpush1.msra.mxu0 %v246
    %301 = vmatprep.subr.mxu0 0.0
    %302 = vmatpush1.msra.mxu0 %v245
    %303 = vmatprep.subr.mxu0 0.0
    %304 = vmatpush1.msra.mxu0 %v244
    %305 = vmatprep.subr.mxu0 0.0
    %306 = vmatpush1.msra.mxu0 %v243
    %307 = vmatprep.subr.mxu0 0.0
    %308 = vmatpush1.msra.mxu0 %v242
    %309 = vmatprep.subr.mxu0 0.0
    %310 = vmatpush1.msra.mxu0 %v241
    %311 = vmatprep.subr.mxu0 0.0
    %312 = vmatpush2.msra.mxu0 %v272
    %313 = vmatprep.subr.mxu0 0.0
    %314 = vmatpush2.msra.mxu0 %v271
    %315 = vmatprep.subr.mxu0 0.0
    %316 = vmatpush2.msra.mxu0 %v270
    %317 = vmatprep.subr.mxu0 0.0
    %318 = vmatpush2.msra.mxu0 %v269
    %319 = vmatprep.subr.mxu0 0.0
    %320 = vmatpush2.msra.mxu0 %v268
    %321 = vmatprep.subr.mxu0 0.0
    %322 = vmatpush2.msra.mxu0 %v267
    %323 = vmatprep.subr.mxu0 0.0
    %324 = vmatpush2.msra.mxu0 %v266
    %325 = vmatprep.subr.mxu0 0.0
    %326 = vmatpush2.msra.mxu0 %v265
    %327 = vmatprep.subr.mxu0 0.0
    %328 = vmatpush2.msra.mxu0 %v264
    %329 = vmatprep.subr.mxu0 0.0
    %330 = vmatpush2.msra.mxu0 %v263
    %331 = vmatprep.subr.mxu0 0.0
    %332 = vmatpush2.msra.mxu0 %v262
    %333 = vmatprep.subr.mxu0 0.0
    %334 = vmatpush2.msra.mxu0 %v261
    %335 = vmatprep.subr.mxu0 0.0
    %336 = vmatpush2.msra.mxu0 %v260
    %337 = vmatprep.subr.mxu0 0.0
    %338 = vmatpush2.msra.mxu0 %v259
    %339 = vmatprep.subr.mxu0 0.0
    %340 = vmatpush2.msra.mxu0 %v258
    %341 = vmatprep.subr.mxu0 0.0
    %342 = vmatpush2.msra.mxu0 %v257
    %343 = vmatprep.mubr.f32.mxu0 %v239
    %344 = vmatmul.mubr.f32.gmra.mxu0 %v237
    %v345 = vpop.f32.mrf.mxu0
    %v346 = vadd.f32 0.0, %v345
    %v347 = vpop.f32.mrf.mxu0
    %348 = vdwg.mxu0
    %vm349 = vcmask 123904
    %v350 = vsel %vm349, %v346, 0.0
    %v351 = vrot.slane %v350, 4
    %v352 = vadd.f32 %v350, %v351
    %v353 = vrot.slane %v352, 2
    %v354 = vadd.f32 %v352, %v353
    %v355 = vrot.slane %v354, 1
    %v356 = vadd.f32 %v354, %v355
    %v357 = vmul.f32 %v356, 0.03125
    %vm358 = vcmask 130048
    %v360 = vsel %vm358, %v357, 0
    %362 = vmatprep.subr.mxu0 0.0
    %363 = vmatpush1.msra.mxu0 0.0
    %364 = vmatprep.subr.mxu0 0.0
    %365 = vmatpush1.msra.mxu0 0.0
    %366 = vmatprep.subr.mxu0 0.0
    %367 = vmatpush1.msra.mxu0 0.0
    %368 = vmatprep.subr.mxu0 0.0
    %369 = vmatpush1.msra.mxu0 0.0
    %370 = vmatprep.subr.mxu0 0.0
    %371 = vmatpush1.msra.mxu0 0.0
    %372 = vmatprep.subr.mxu0 0.0
    %373 = vmatpush1.msra.mxu0 0.0
    %374 = vmatprep.subr.mxu0 0.0
    %375 = vmatpush1.msra.mxu0 0.0
    %376 = vmatprep.subr.mxu0 0.0
    %377 = vmatpush1.msra.mxu0 0.0
    %378 = vmatprep.subr.mxu0 0.0
    %379 = vmatpush1.msra.mxu0 0.0
    %380 = vmatprep.subr.mxu0 0.0
    %381 = vmatpush1.msra.mxu0 0.0
    %382 = vmatprep.subr.mxu0 0.0
    %383 = vmatpush1.msra.mxu0 0.0
    %384 = vmatprep.subr.mxu0 0.0
    %385 = vmatpush1.msra.mxu0 0.0
    %386 = vmatprep.subr.mxu0 0.0
    %387 = vmatpush1.msra.mxu0 0.0
    %388 = vmatprep.subr.mxu0 0.0
    %389 = vmatpush1.msra.mxu0 0.0
    %390 = vmatprep.subr.mxu0 %v276
    %391 = vmatpush1.msra.mxu0 %v275
    %392 = vmatprep.subr.mxu0 %v274
    %393 = vmatpush1.msra.mxu0 %v273
    %394 = vmatprep.subr.mxu0 0.0
    %395 = vmatpush2.msra.mxu0 0.0
    %396 = vmatprep.subr.mxu0 0.0
    %397 = vmatpush2.msra.mxu0 0.0
    %398 = vmatprep.subr.mxu0 0.0
    %399 = vmatpush2.msra.mxu0 0.0
    %400 = vmatprep.subr.mxu0 0.0
    %401 = vmatpush2.msra.mxu0 0.0
    %402 = vmatprep.subr.mxu0 0.0
    %403 = vmatpush2.msra.mxu0 0.0
    %404 = vmatprep.subr.mxu0 0.0
    %405 = vmatpush2.msra.mxu0 0.0
    %406 = vmatprep.subr.mxu0 0.0
    %407 = vmatpush2.msra.mxu0 0.0
    %408 = vmatprep.subr.mxu0 0.0
    %409 = vmatpush2.msra.mxu0 0.0
    %410 = vmatprep.subr.mxu0 0.0
    %411 = vmatpush2.msra.mxu0 0.0
    %412 = vmatprep.subr.mxu0 0.0
    %413 = vmatpush2.msra.mxu0 0.0
    %414 = vmatprep.subr.mxu0 0.0
    %415 = vmatpush2.msra.mxu0 0.0
    %416 = vmatprep.subr.mxu0 0.0
    %417 = vmatpush2.msra.mxu0 0.0
    %418 = vmatprep.subr.mxu0 0.0
    %419 = vmatpush2.msra.mxu0 0.0
    %420 = vmatprep.subr.mxu0 0.0
    %421 = vmatpush2.msra.mxu0 0.0
    %422 = vmatprep.subr.mxu0 0.0
    %423 = vmatpush2.msra.mxu0 0.0
    %424 = vmatprep.subr.mxu0 0.0
    %425 = vmatpush2.msra.mxu0 0.0
    %426 = vmatprep.mubr.f32.mxu0 0.0
    %427 = vmatmul.mubr.f32.gmra.mxu0 %v360
    %v428 = vpop.f32.mrf.mxu0
    %v429 = vadd.f32 0.0, %v428
    %v430 = vpop.f32.mrf.mxu0
    %v431 = vadd.f32 0.0, %v430
    %432 = vdwg.mxu0
    %v433 = vlaneseq
    %v434 = vshrl.u32 %v433, 7
    %v435 = vsub.s32 0, %v434
    %v436 = vrot.slane %v429, %v435
    %v437 = vlaneseq
    %v438 = vshrl.u32 %v437, 7
    %v439 = vsub.s32 0, %v438
    %v440 = vrot.slane %v431, %v439
    %v441 = vsub.f32 %v237, %v436
    %v442 = vsub.f32 %v239, %v440
    %v443 = vmul.f32 %v441, %v441
    %v444 = vmul.f32 %v442, %v442
    %445 = vmatprep.subr.mxu0 0.0
    %446 = vmatpush1.msra.mxu0 %v256
    %447 = vmatprep.subr.mxu0 0.0
    %448 = vmatpush1.msra.mxu0 %v255
    %449 = vmatprep.subr.mxu0 0.0
    %450 = vmatpush1.msra.mxu0 %v254
    %451 = vmatprep.subr.mxu0 0.0
    %452 = vmatpush1.msra.mxu0 %v253
    %453 = vmatprep.subr.mxu0 0.0
    %454 = vmatpush1.msra.mxu0 %v252
    %455 = vmatprep.subr.mxu0 0.0
    %456 = vmatpush1.msra.mxu0 %v251
    %457 = vmatprep.subr.mxu0 0.0
    %458 = vmatpush1.msra.mxu0 %v250
    %459 = vmatprep.subr.mxu0 0.0
    %460 = vmatpush1.msra.mxu0 %v249
    %461 = vmatprep.subr.mxu0 0.0
    %462 = vmatpush1.msra.mxu0 %v248
    %463 = vmatprep.subr.mxu0 0.0
    %464 = vmatpush1.msra.mxu0 %v247
    %465 = vmatprep.subr.mxu0 0.0
    %466 = vmatpush1.msra.mxu0 %v246
    %467 = vmatprep.subr.mxu0 0.0
    %468 = vmatpush1.msra.mxu0 %v245
    %469 = vmatprep.subr.mxu0 0.0
    %470 = vmatpush1.msra.mxu0 %v244
    %471 = vmatprep.subr.mxu0 0.0
    %472 = vmatpush1.msra.mxu0 %v243
    %473 = vmatprep.subr.mxu0 0.0
    %474 = vmatpush1.msra.mxu0 %v242
    %475 = vmatprep.subr.mxu0 0.0
    %476 = vmatpush1.msra.mxu0 %v241
    %477 = vmatprep.subr.mxu0 0.0
    %478 = vmatpush2.msra.mxu0 %v272
    %479 = vmatprep.subr.mxu0 0.0
    %480 = vmatpush2.msra.mxu0 %v271
    %481 = vmatprep.subr.mxu0 0.0
    %482 = vmatpush2.msra.mxu0 %v270
    %483 = vmatprep.subr.mxu0 0.0
    %484 = vmatpush2.msra.mxu0 %v269
    %485 = vmatprep.subr.mxu0 0.0
    %486 = vmatpush2.msra.mxu0 %v268
    %487 = vmatprep.subr.mxu0 0.0
    %488 = vmatpush2.msra.mxu0 %v267
    %489 = vmatprep.subr.mxu0 0.0
    %490 = vmatpush2.msra.mxu0 %v266
    %491 = vmatprep.subr.mxu0 0.0
    %492 = vmatpush2.msra.mxu0 %v265
    %493 = vmatprep.subr.mxu0 0.0
    %494 = vmatpush2.msra.mxu0 %v264
    %495 = vmatprep.subr.mxu0 0.0
    %496 = vmatpush2.msra.mxu0 %v263
    %497 = vmatprep.subr.mxu0 0.0
    %498 = vmatpush2.msra.mxu0 %v262
    %499 = vmatprep.subr.mxu0 0.0
    %500 = vmatpush2.msra.mxu0 %v261
    %501 = vmatprep.subr.mxu0 0.0
    %502 = vmatpush2.msra.mxu0 %v260
    %503 = vmatprep.subr.mxu0 0.0
    %504 = vmatpush2.msra.mxu0 %v259
    %505 = vmatprep.subr.mxu0 0.0
    %506 = vmatpush2.msra.mxu0 %v258
    %507 = vmatprep.subr.mxu0 0.0
    %508 = vmatpush2.msra.mxu0 %v257
    %509 = vmatprep.mubr.f32.mxu0 %v444
    %510 = vmatmul.mubr.f32.gmra.mxu0 %v443
    %v511 = vpop.f32.mrf.mxu0
    %v512 = vadd.f32 0.0, %v511
    %v513 = vpop.f32.mrf.mxu0
    %514 = vdwg.mxu0
    %v515 = vsel %vm349, %v512, 0.0
    %v516 = vrot.slane %v515, 4
    %v517 = vadd.f32 %v515, %v516
    %v518 = vrot.slane %v517, 2
    %v519 = vadd.f32 %v517, %v518
    %v520 = vrot.slane %v519, 1
    %v521 = vadd.f32 %v519, %v520
    %v522 = vmul.f32 %v521, 0.03125
    %v523 = vadd.f32 %v522, 1e-05
    %v524 = vrsqrt.pop %v523
    %v525 = vmul.f32 %v277, %v524
    %v527 = vsel %vm358, %v525, 0
    %529 = vmatprep.subr.mxu0 0.0
    %530 = vmatpush1.msra.mxu0 0.0
    %531 = vmatprep.subr.mxu0 0.0
    %532 = vmatpush1.msra.mxu0 0.0
    %533 = vmatprep.subr.mxu0 0.0
    %534 = vmatpush1.msra.mxu0 0.0
    %535 = vmatprep.subr.mxu0 0.0
    %536 = vmatpush1.msra.mxu0 0.0
    %537 = vmatprep.subr.mxu0 0.0
    %538 = vmatpush1.msra.mxu0 0.0
    %539 = vmatprep.subr.mxu0 0.0
    %540 = vmatpush1.msra.mxu0 0.0
    %541 = vmatprep.subr.mxu0 0.0
    %542 = vmatpush1.msra.mxu0 0.0
    %543 = vmatprep.subr.mxu0 0.0
    %544 = vmatpush1.msra.mxu0 0.0
    %545 = vmatprep.subr.mxu0 0.0
    %546 = vmatpush1.msra.mxu0 0.0
    %547 = vmatprep.subr.mxu0 0.0
    %548 = vmatpush1.msra.mxu0 0.0
    %549 = vmatprep.subr.mxu0 0.0
    %550 = vmatpush1.msra.mxu0 0.0
    %551 = vmatprep.subr.mxu0 0.0
    %552 = vmatpush1.msra.mxu0 0.0
    %553 = vmatprep.subr.mxu0 0.0
    %554 = vmatpush1.msra.mxu0 0.0
    %555 = vmatprep.subr.mxu0 0.0
    %556 = vmatpush1.msra.mxu0 0.0
    %557 = vmatprep.subr.mxu0 %v276
    %558 = vmatpush1.msra.mxu0 %v275
    %559 = vmatprep.subr.mxu0 %v274
    %560 = vmatpush1.msra.mxu0 %v273
    %561 = vmatprep.subr.mxu0 0.0
    %562 = vmatpush2.msra.mxu0 0.0
    %563 = vmatprep.subr.mxu0 0.0
    %564 = vmatpush2.msra.mxu0 0.0
    %565 = vmatprep.subr.mxu0 0.0
    %566 = vmatpush2.msra.mxu0 0.0
    %567 = vmatprep.subr.mxu0 0.0
    %568 = vmatpush2.msra.mxu0 0.0
    %569 = vmatprep.subr.mxu0 0.0
    %570 = vmatpush2.msra.mxu0 0.0
    %571 = vmatprep.subr.mxu0 0.0
    %572 = vmatpush2.msra.mxu0 0.0
    %573 = vmatprep.subr.mxu0 0.0
    %574 = vmatpush2.msra.mxu0 0.0
    %575 = vmatprep.subr.mxu0 0.0
    %576 = vmatpush2.msra.mxu0 0.0
    %577 = vmatprep.subr.mxu0 0.0
    %578 = vmatpush2.msra.mxu0 0.0
    %579 = vmatprep.subr.mxu0 0.0
    %580 = vmatpush2.msra.mxu0 0.0
    %581 = vmatprep.subr.mxu0 0.0
    %582 = vmatpush2.msra.mxu0 0.0
    %583 = vmatprep.subr.mxu0 0.0
    %584 = vmatpush2.msra.mxu0 0.0
    %585 = vmatprep.subr.mxu0 0.0
    %586 = vmatpush2.msra.mxu0 0.0
    %587 = vmatprep.subr.mxu0 0.0
    %588 = vmatpush2.msra.mxu0 0.0
    %589 = vmatprep.subr.mxu0 0.0
    %590 = vmatpush2.msra.mxu0 0.0
    %591 = vmatprep.subr.mxu0 0.0
    %592 = vmatpush2.msra.mxu0 0.0
    %593 = vmatprep.mubr.f32.mxu0 0.0
    %594 = vmatmul.mubr.f32.gmra.mxu0 %v527
    %v595 = vpop.f32.mrf.mxu0
    %v596 = vadd.f32 0.0, %v595
    %v597 = vpop.f32.mrf.mxu0
    %v598 = vadd.f32 0.0, %v597
    %599 = vdwg.mxu0
    %v601 = vsel %vm358, %v278, 0
    %603 = vmatprep.subr.mxu0 0.0
    %604 = vmatpush1.msra.mxu0 0.0
    %605 = vmatprep.subr.mxu0 0.0
    %606 = vmatpush1.msra.mxu0 0.0
    %607 = vmatprep.subr.mxu0 0.0
    %608 = vmatpush1.msra.mxu0 0.0
    %609 = vmatprep.subr.mxu0 0.0
    %610 = vmatpush1.msra.mxu0 0.0
    %611 = vmatprep.subr.mxu0 0.0
    %612 = vmatpush1.msra.mxu0 0.0
    %613 = vmatprep.subr.mxu0 0.0
    %614 = vmatpush1.msra.mxu0 0.0
    %615 = vmatprep.subr.mxu0 0.0
    %616 = vmatpush1.msra.mxu0 0.0
    %617 = vmatprep.subr.mxu0 0.0
    %618 = vmatpush1.msra.mxu0 0.0
    %619 = vmatprep.subr.mxu0 0.0
    %620 = vmatpush1.msra.mxu0 0.0
    %621 = vmatprep.subr.mxu0 0.0
    %622 = vmatpush1.msra.mxu0 0.0
    %623 = vmatprep.subr.mxu0 0.0
    %624 = vmatpush1.msra.mxu0 0.0
    %625 = vmatprep.subr.mxu0 0.0
    %626 = vmatpush1.msra.mxu0 0.0
    %627 = vmatprep.subr.mxu0 0.0
    %628 = vmatpush1.msra.mxu0 0.0
    %629 = vmatprep.subr.mxu0 0.0
    %630 = vmatpush1.msra.mxu0 0.0
    %631 = vmatprep.subr.mxu0 %v276
    %632 = vmatpush1.msra.mxu0 %v275
    %633 = vmatprep.subr.mxu0 %v274
    %634 = vmatpush1.msra.mxu0 %v273
    %635 = vmatprep.subr.mxu0 0.0
    %636 = vmatpush2.msra.mxu0 0.0
    %637 = vmatprep.subr.mxu0 0.0
    %638 = vmatpush2.msra.mxu0 0.0
    %639 = vmatprep.subr.mxu0 0.0
    %640 = vmatpush2.msra.mxu0 0.0
    %641 = vmatprep.subr.mxu0 0.0
    %642 = vmatpush2.msra.mxu0 0.0
    %643 = vmatprep.subr.mxu0 0.0
    %644 = vmatpush2.msra.mxu0 0.0
    %645 = vmatprep.subr.mxu0 0.0
    %646 = vmatpush2.msra.mxu0 0.0
    %647 = vmatprep.subr.mxu0 0.0
    %648 = vmatpush2.msra.mxu0 0.0
    %649 = vmatprep.subr.mxu0 0.0
    %650 = vmatpush2.msra.mxu0 0.0
    %651 = vmatprep.subr.mxu0 0.0
    %652 = vmatpush2.msra.mxu0 0.0
    %653 = vmatprep.subr.mxu0 0.0
    %654 = vmatpush2.msra.mxu0 0.0
    %655 = vmatprep.subr.mxu0 0.0
    %656 = vmatpush2.msra.mxu0 0.0
    %657 = vmatprep.subr.mxu0 0.0
    %658 = vmatpush2.msra.mxu0 0.0
    %659 = vmatprep.subr.mxu0 0.0
    %660 = vmatpush2.msra.mxu0 0.0
    %661 = vmatprep.subr.mxu0 0.0
    %662 = vmatpush2.msra.mxu0 0.0
    %663 = vmatprep.subr.mxu0 0.0
    %664 = vmatpush2.msra.mxu0 0.0
    %665 = vmatprep.subr.mxu0 0.0
    %666 = vmatpush2.msra.mxu0 0.0
    %667 = vmatprep.mubr.f32.mxu0 0.0
    %668 = vmatmul.mubr.f32.gmra.mxu0 %v601
    %v669 = vpop.f32.mrf.mxu0
    %v670 = vadd.f32 0.0, %v669
    %v671 = vpop.f32.mrf.mxu0
    %v672 = vadd.f32 0.0, %v671
    %673 = vdwg.mxu0
    %v674 = vlaneseq
    %v675 = vshrl.u32 %v674, 7
    %v676 = vsub.s32 0, %v675
    %v677 = vrot.slane %v596, %v676
    %v678 = vlaneseq
    %v679 = vshrl.u32 %v678, 7
    %v680 = vsub.s32 0, %v679
    %v681 = vrot.slane %v598, %v680
    %v682 = vmul.f32 %v441, %v677
    %v683 = vmul.f32 %v442, %v681
    %v684 = vlaneseq
    %v685 = vshrl.u32 %v684, 7
    %v686 = vsub.s32 0, %v685
    %v687 = vrot.slane %v670, %v686
    %v688 = vlaneseq
    %v689 = vshrl.u32 %v688, 7
    %v690 = vsub.s32 0, %v689
    %v691 = vrot.slane %v672, %v690
    %v692 = vadd.f32 %v682, %v687
    %v693 = vadd.f32 %v683, %v691
    %v694 = vmax.f32 %v692, 0.0
    %v695 = vmax.f32 %v693, 0.0
    %v696 = vld [vmem:[#allocation6] sm:$0xff]
    %v697 = vld [vmem:[#allocation6 + $0x8] sm:$0xff]
    %v698 = vld [vmem:[#allocation6 + $0x10] sm:$0xff]
    %v699 = vld [vmem:[#allocation6 + $0x18] sm:$0xff]
    %v700 = vld [vmem:[#allocation6 + $0x20] sm:$0xff]
    %v701 = vld [vmem:[#allocation6 + $0x28] sm:$0xff]
    %v702 = vld [vmem:[#allocation6 + $0x30] sm:$0xff]
    %v703 = vld [vmem:[#allocation6 + $0x38] sm:$0xff]
    %v704 = vld [vmem:[#allocation6 + $0x40] sm:$0xff]
    %v705 = vld [vmem:[#allocation6 + $0x48] sm:$0xff]
    %v706 = vld [vmem:[#allocation6 + $0x50] sm:$0xff]
    %v707 = vld [vmem:[#allocation6 + $0x58] sm:$0xff]
    %v708 = vld [vmem:[#allocation6 + $0x60] sm:$0xff]
    %v709 = vld [vmem:[#allocation6 + $0x68] sm:$0xff]
    %v710 = vld [vmem:[#allocation6 + $0x70] sm:$0xff]
    %v711 = vld [vmem:[#allocation6 + $0x78] sm:$0xff]
    %v712 = vld [vmem:[#allocation6 + $0x80] sm:$0xff]
    %v713 = vld [vmem:[#allocation6 + $0x88] sm:$0xff]
    %v714 = vld [vmem:[#allocation6 + $0x90] sm:$0xff]
    %v715 = vld [vmem:[#allocation6 + $0x98] sm:$0xff]
    %v716 = vld [vmem:[#allocation6 + $0xa0] sm:$0xff]
    %v717 = vld [vmem:[#allocation6 + $0xa8] sm:$0xff]
    %v718 = vld [vmem:[#allocation6 + $0xb0] sm:$0xff]
    %v719 = vld [vmem:[#allocation6 + $0xb8] sm:$0xff]
    %v720 = vld [vmem:[#allocation6 + $0xc0] sm:$0xff]
    %v721 = vld [vmem:[#allocation6 + $0xc8] sm:$0xff]
    %v722 = vld [vmem:[#allocation6 + $0xd0] sm:$0xff]
    %v723 = vld [vmem:[#allocation6 + $0xd8] sm:$0xff]
    %v724 = vld [vmem:[#allocation6 + $0xe0] sm:$0xff]
    %v725 = vld [vmem:[#allocation6 + $0xe8] sm:$0xff]
    %v726 = vld [vmem:[#allocation6 + $0xf0] sm:$0xff]
    %v727 = vld [vmem:[#allocation6 + $0xf8] sm:$0xff]
    %v728 = vld [vmem:[#allocation6 + $0x100] sm:$0xff]
    %v729 = vld [vmem:[#allocation6 + $0x108] sm:$0xff]
    %v730 = vld [vmem:[#allocation6 + $0x110] sm:$0xff]
    %v731 = vld [vmem:[#allocation6 + $0x118] sm:$0xff]
    %v732 = vld [vmem:[#allocation6 + $0x120] sm:$0xff]
    %v733 = vld [vmem:[#allocation6 + $0x128] sm:$0xff]
    %v734 = vld [vmem:[#allocation6 + $0x130] sm:$0xff]
    %v735 = vld [vmem:[#allocation6 + $0x138] sm:$0xff]
    %v736 = vld [vmem:[#allocation6 + $0x140] sm:$0xff]
    %v737 = vld [vmem:[#allocation6 + $0x148] sm:$0xff]
    %v738 = vld [vmem:[#allocation6 + $0x150] sm:$0xff]
    %v739 = vld [vmem:[#allocation6 + $0x158] sm:$0xff]
    %v740 = vld [vmem:[#allocation6 + $0x160] sm:$0xff]
    %v741 = vld [vmem:[#allocation6 + $0x168] sm:$0xff]
    %v742 = vld [vmem:[#allocation6 + $0x170] sm:$0xff]
    %v743 = vld [vmem:[#allocation6 + $0x178] sm:$0xff]
    %v744 = vld [vmem:[#allocation6 + $0x180] sm:$0xff]
    %v745 = vld [vmem:[#allocation6 + $0x188] sm:$0xff]
    %v746 = vld [vmem:[#allocation6 + $0x190] sm:$0xff]
    %v747 = vld [vmem:[#allocation6 + $0x198] sm:$0xff]
    %v748 = vld [vmem:[#allocation6 + $0x1a0] sm:$0xff]
    %v749 = vld [vmem:[#allocation6 + $0x1a8] sm:$0xff]
    %v750 = vld [vmem:[#allocation6 + $0x1b0] sm:$0xff]
    %v751 = vld [vmem:[#allocation6 + $0x1b8] sm:$0xff]
    %v752 = vld [vmem:[#allocation6 + $0x1c0] sm:$0xff]
    %v753 = vld [vmem:[#allocation6 + $0x1c8] sm:$0xff]
    %v754 = vld [vmem:[#allocation6 + $0x1d0] sm:$0xff]
    %v755 = vld [vmem:[#allocation6 + $0x1d8] sm:$0xff]
    %v756 = vld [vmem:[#allocation6 + $0x1e0] sm:$0xff]
    %v757 = vld [vmem:[#allocation6 + $0x1e8] sm:$0xff]
    %v758 = vld [vmem:[#allocation6 + $0x1f0] sm:$0xff]
    %v759 = vld [vmem:[#allocation6 + $0x1f8] sm:$0xff]
    %v760 = vld [vmem:[#allocation6 + $0x200] sm:$0xff]
    %v761 = vld [vmem:[#allocation6 + $0x208] sm:$0xff]
    %v762 = vld [vmem:[#allocation6 + $0x210] sm:$0xff]
    %v763 = vld [vmem:[#allocation6 + $0x218] sm:$0xff]
    %v764 = vld [vmem:[#allocation6 + $0x220] sm:$0xff]
    %v765 = vld [vmem:[#allocation6 + $0x228] sm:$0xff]
    %v766 = vld [vmem:[#allocation6 + $0x230] sm:$0xff]
    %v767 = vld [vmem:[#allocation6 + $0x238] sm:$0xff]
    %v768 = vld [vmem:[#allocation6 + $0x240] sm:$0xff]
    %v769 = vld [vmem:[#allocation6 + $0x248] sm:$0xff]
    %v770 = vld [vmem:[#allocation6 + $0x250] sm:$0xff]
    %v771 = vld [vmem:[#allocation6 + $0x258] sm:$0xff]
    %v772 = vld [vmem:[#allocation6 + $0x260] sm:$0xff]
    %v773 = vld [vmem:[#allocation6 + $0x268] sm:$0xff]
    %v774 = vld [vmem:[#allocation6 + $0x270] sm:$0xff]
    %v775 = vld [vmem:[#allocation6 + $0x278] sm:$0xff]
    %v776 = vld [vmem:[#allocation6 + $0x280] sm:$0xff]
    %v777 = vld [vmem:[#allocation6 + $0x288] sm:$0xff]
    %v778 = vld [vmem:[#allocation6 + $0x290] sm:$0xff]
    %v779 = vld [vmem:[#allocation6 + $0x298] sm:$0xff]
    %v780 = vld [vmem:[#allocation6 + $0x2a0] sm:$0xff]
    %v781 = vld [vmem:[#allocation6 + $0x2a8] sm:$0xff]
    %v782 = vld [vmem:[#allocation6 + $0x2b0] sm:$0xff]
    %v783 = vld [vmem:[#allocation6 + $0x2b8] sm:$0xff]
    %v784 = vld [vmem:[#allocation6 + $0x2c0] sm:$0xff]
    %v785 = vld [vmem:[#allocation6 + $0x2c8] sm:$0xff]
    %v786 = vld [vmem:[#allocation6 + $0x2d0] sm:$0xff]
    %v787 = vld [vmem:[#allocation6 + $0x2d8] sm:$0xff]
    %v788 = vld [vmem:[#allocation6 + $0x2e0] sm:$0xff]
    %v789 = vld [vmem:[#allocation6 + $0x2e8] sm:$0xff]
    %v790 = vld [vmem:[#allocation6 + $0x2f0] sm:$0xff]
    %v791 = vld [vmem:[#allocation6 + $0x2f8] sm:$0xff]
    %v792 = vld [vmem:[#allocation6 + $0x300] sm:$0xff]
    %v793 = vld [vmem:[#allocation6 + $0x308] sm:$0xff]
    %v794 = vld [vmem:[#allocation6 + $0x310] sm:$0xff]
    %v795 = vld [vmem:[#allocation6 + $0x318] sm:$0xff]
    %v796 = vld [vmem:[#allocation6 + $0x320] sm:$0xff]
    %v797 = vld [vmem:[#allocation6 + $0x328] sm:$0xff]
    %v798 = vld [vmem:[#allocation6 + $0x330] sm:$0xff]
    %v799 = vld [vmem:[#allocation6 + $0x338] sm:$0xff]
    %v800 = vld [vmem:[#allocation6 + $0x340] sm:$0xff]
    %v801 = vld [vmem:[#allocation6 + $0x348] sm:$0xff]
    %v802 = vld [vmem:[#allocation6 + $0x350] sm:$0xff]
    %v803 = vld [vmem:[#allocation6 + $0x358] sm:$0xff]
    %v804 = vld [vmem:[#allocation6 + $0x360] sm:$0xff]
    %v805 = vld [vmem:[#allocation6 + $0x368] sm:$0xff]
    %v806 = vld [vmem:[#allocation6 + $0x370] sm:$0xff]
    %v807 = vld [vmem:[#allocation6 + $0x378] sm:$0xff]
    %v808 = vld [vmem:[#allocation6 + $0x380] sm:$0xff]
    %v809 = vld [vmem:[#allocation6 + $0x388] sm:$0xff]
    %v810 = vld [vmem:[#allocation6 + $0x390] sm:$0xff]
    %v811 = vld [vmem:[#allocation6 + $0x398] sm:$0xff]
    %v812 = vld [vmem:[#allocation6 + $0x3a0] sm:$0xff]
    %v813 = vld [vmem:[#allocation6 + $0x3a8] sm:$0xff]
    %v814 = vld [vmem:[#allocation6 + $0x3b0] sm:$0xff]
    %v815 = vld [vmem:[#allocation6 + $0x3b8] sm:$0xff]
    %v816 = vld [vmem:[#allocation6 + $0x3c0] sm:$0xff]
    %v817 = vld [vmem:[#allocation6 + $0x3c8] sm:$0xff]
    %v818 = vld [vmem:[#allocation6 + $0x3d0] sm:$0xff]
    %v819 = vld [vmem:[#allocation6 + $0x3d8] sm:$0xff]
    %v820 = vld [vmem:[#allocation6 + $0x3e0] sm:$0xff]
    %v821 = vld [vmem:[#allocation6 + $0x3e8] sm:$0xff]
    %v822 = vld [vmem:[#allocation6 + $0x3f0] sm:$0xff]
    %v823 = vld [vmem:[#allocation6 + $0x3f8] sm:$0xff]
    %824 = vmatprep.subr.mxu0 %v757
    %825 = vmatpush1.msra.mxu0 %v756
    %826 = vmatprep.subr.mxu0 %v753
    %827 = vmatpush1.msra.mxu0 %v752
    %828 = vmatprep.subr.mxu0 %v749
    %829 = vmatpush1.msra.mxu0 %v748
    %830 = vmatprep.subr.mxu0 %v745
    %831 = vmatpush1.msra.mxu0 %v744
    %832 = vmatprep.subr.mxu0 %v741
    %833 = vmatpush1.msra.mxu0 %v740
    %834 = vmatprep.subr.mxu0 %v737
    %835 = vmatpush1.msra.mxu0 %v736
    %836 = vmatprep.subr.mxu0 %v733
    %837 = vmatpush1.msra.mxu0 %v732
    %838 = vmatprep.subr.mxu0 %v729
    %839 = vmatpush1.msra.mxu0 %v728
    %840 = vmatprep.subr.mxu0 %v725
    %841 = vmatpush1.msra.mxu0 %v724
    %842 = vmatprep.subr.mxu0 %v721
    %843 = vmatpush1.msra.mxu0 %v720
    %844 = vmatprep.subr.mxu0 %v717
    %845 = vmatpush1.msra.mxu0 %v716
    %846 = vmatprep.subr.mxu0 %v713
    %847 = vmatpush1.msra.mxu0 %v712
    %848 = vmatprep.subr.mxu0 %v709
    %849 = vmatpush1.msra.mxu0 %v708
    %850 = vmatprep.subr.mxu0 %v705
    %851 = vmatpush1.msra.mxu0 %v704
    %852 = vmatprep.subr.mxu0 %v701
    %853 = vmatpush1.msra.mxu0 %v700
    %854 = vmatprep.subr.mxu0 %v697
    %855 = vmatpush1.msra.mxu0 %v696
    %856 = vmatprep.subr.mxu0 %v821
    %857 = vmatpush2.msra.mxu0 %v820
    %858 = vmatprep.subr.mxu0 %v817
    %859 = vmatpush2.msra.mxu0 %v816
    %860 = vmatprep.subr.mxu0 %v813
    %861 = vmatpush2.msra.mxu0 %v812
    %862 = vmatprep.subr.mxu0 %v809
    %863 = vmatpush2.msra.mxu0 %v808
    %864 = vmatprep.subr.mxu0 %v805
    %865 = vmatpush2.msra.mxu0 %v804
    %866 = vmatprep.subr.mxu0 %v801
    %867 = vmatpush2.msra.mxu0 %v800
    %868 = vmatprep.subr.mxu0 %v797
    %869 = vmatpush2.msra.mxu0 %v796
    %870 = vmatprep.subr.mxu0 %v793
    %871 = vmatpush2.msra.mxu0 %v792
    %872 = vmatprep.subr.mxu0 %v789
    %873 = vmatpush2.msra.mxu0 %v788
    %874 = vmatprep.subr.mxu0 %v785
    %875 = vmatpush2.msra.mxu0 %v784
    %876 = vmatprep.subr.mxu0 %v781
    %877 = vmatpush2.msra.mxu0 %v780
    %878 = vmatprep.subr.mxu0 %v777
    %879 = vmatpush2.msra.mxu0 %v776
    %880 = vmatprep.subr.mxu0 %v773
    %881 = vmatpush2.msra.mxu0 %v772
    %882 = vmatprep.subr.mxu0 %v769
    %883 = vmatpush2.msra.mxu0 %v768
    %884 = vmatprep.subr.mxu0 %v765
    %885 = vmatpush2.msra.mxu0 %v764
    %886 = vmatprep.subr.mxu0 %v761
    %887 = vmatpush2.msra.mxu0 %v760
    %888 = vmatprep.mubr.f32.mxu0 %v695
    %889 = vmatmul.mubr.f32.gmra.mxu0 %v694
    %v890 = vpop.f32.mrf.mxu0
    %v891 = vadd.f32 0.0, %v890
    %v892 = vpop.f32.mrf.mxu0
    %v893 = vadd.f32 0.0, %v892
    %894 = vdwg.mxu0
    %895 = vmatprep.subr.mxu0 %v759
    %896 = vmatpush1.msra.mxu0 %v758
    %897 = vmatprep.subr.mxu0 %v755
    %898 = vmatpush1.msra.mxu0 %v754
    %899 = vmatprep.subr.mxu0 %v751
    %900 = vmatpush1.msra.mxu0 %v750
    %901 = vmatprep.subr.mxu0 %v747
    %902 = vmatpush1.msra.mxu0 %v746
    %903 = vmatprep.subr.mxu0 %v743
    %904 = vmatpush1.msra.mxu0 %v742
    %905 = vmatprep.subr.mxu0 %v739
    %906 = vmatpush1.msra.mxu0 %v738
    %907 = vmatprep.subr.mxu0 %v735
    %908 = vmatpush1.msra.mxu0 %v734
    %909 = vmatprep.subr.mxu0 %v731
    %910 = vmatpush1.msra.mxu0 %v730
    %911 = vmatprep.subr.mxu0 %v727
    %912 = vmatpush1.msra.mxu0 %v726
    %913 = vmatprep.subr.mxu0 %v723
    %914 = vmatpush1.msra.mxu0 %v722
    %915 = vmatprep.subr.mxu0 %v719
    %916 = vmatpush1.msra.mxu0 %v718
    %917 = vmatprep.subr.mxu0 %v715
    %918 = vmatpush1.msra.mxu0 %v714
    %919 = vmatprep.subr.mxu0 %v711
    %920 = vmatpush1.msra.mxu0 %v710
    %921 = vmatprep.subr.mxu0 %v707
    %922 = vmatpush1.msra.mxu0 %v706
    %923 = vmatprep.subr.mxu0 %v703
    %924 = vmatpush1.msra.mxu0 %v702
    %925 = vmatprep.subr.mxu0 %v699
    %926 = vmatpush1.msra.mxu0 %v698
    %927 = vmatprep.subr.mxu0 %v823
    %928 = vmatpush2.msra.mxu0 %v822
    %929 = vmatprep.subr.mxu0 %v819
    %930 = vmatpush2.msra.mxu0 %v818
    %931 = vmatprep.subr.mxu0 %v815
    %932 = vmatpush2.msra.mxu0 %v814
    %933 = vmatprep.subr.mxu0 %v811
    %934 = vmatpush2.msra.mxu0 %v810
    %935 = vmatprep.subr.mxu0 %v807
    %936 = vmatpush2.msra.mxu0 %v806
    %937 = vmatprep.subr.mxu0 %v803
    %938 = vmatpush2.msra.mxu0 %v802
    %939 = vmatprep.subr.mxu0 %v799
    %940 = vmatpush2.msra.mxu0 %v798
    %941 = vmatprep.subr.mxu0 %v795
    %942 = vmatpush2.msra.mxu0 %v794
    %943 = vmatprep.subr.mxu0 %v791
    %944 = vmatpush2.msra.mxu0 %v790
    %945 = vmatprep.subr.mxu0 %v787
    %946 = vmatpush2.msra.mxu0 %v786
    %947 = vmatprep.subr.mxu0 %v783
    %948 = vmatpush2.msra.mxu0 %v782
    %949 = vmatprep.subr.mxu0 %v779
    %950 = vmatpush2.msra.mxu0 %v778
    %951 = vmatprep.subr.mxu0 %v775
    %952 = vmatpush2.msra.mxu0 %v774
    %953 = vmatprep.subr.mxu0 %v771
    %954 = vmatpush2.msra.mxu0 %v770
    %955 = vmatprep.subr.mxu0 %v767
    %956 = vmatpush2.msra.mxu0 %v766
    %957 = vmatprep.subr.mxu0 %v763
    %958 = vmatpush2.msra.mxu0 %v762
    %959 = vmatprep.mubr.f32.mxu0 %v695
    %960 = vmatmul.mubr.f32.gmra.mxu0 %v694
    %v961 = vpop.f32.mrf.mxu0
    %v962 = vadd.f32 0.0, %v961
    %v963 = vpop.f32.mrf.mxu0
    %v964 = vadd.f32 0.0, %v963
    %965 = vdwg.mxu0
    %v966 = vld [vmem:[%s6] sm:$0xff]
    %v967 = vld [vmem:[%s6 + $0x8] sm:$0xff]
    %v968 = vld [vmem:[%s6 + $0x10] sm:$0xff]
    %v969 = vld [vmem:[%s6 + $0x18] sm:$0xff]
    %v970 = vld [vmem:[%s6 + $0x20] sm:$0xff]
    %v971 = vld [vmem:[%s6 + $0x28] sm:$0xff]
    %v972 = vld [vmem:[%s6 + $0x30] sm:$0xff]
    %v973 = vld [vmem:[%s6 + $0x38] sm:$0xff]
    %v974 = vld [vmem:[%s6 + $0x40] sm:$0xff]
    %v975 = vld [vmem:[%s6 + $0x48] sm:$0xff]
    %v976 = vld [vmem:[%s6 + $0x50] sm:$0xff]
    %v977 = vld [vmem:[%s6 + $0x58] sm:$0xff]
    %v978 = vld [vmem:[%s6 + $0x60] sm:$0xff]
    %v979 = vld [vmem:[%s6 + $0x68] sm:$0xff]
    %v980 = vld [vmem:[%s6 + $0x70] sm:$0xff]
    %v981 = vld [vmem:[%s6 + $0x78] sm:$0xff]
    %v982 = vld [vmem:[%s6 + $0x80] sm:$0xff]
    %v983 = vld [vmem:[%s6 + $0x88] sm:$0xff]
    %v984 = vld [vmem:[%s6 + $0x90] sm:$0xff]
    %v985 = vld [vmem:[%s6 + $0x98] sm:$0xff]
    %v986 = vld [vmem:[%s6 + $0xa0] sm:$0xff]
    %v987 = vld [vmem:[%s6 + $0xa8] sm:$0xff]
    %v988 = vld [vmem:[%s6 + $0xb0] sm:$0xff]
    %v989 = vld [vmem:[%s6 + $0xb8] sm:$0xff]
    %v990 = vld [vmem:[%s6 + $0xc0] sm:$0xff]
    %v991 = vld [vmem:[%s6 + $0xc8] sm:$0xff]
    %v992 = vld [vmem:[%s6 + $0xd0] sm:$0xff]
    %v993 = vld [vmem:[%s6 + $0xd8] sm:$0xff]
    %v994 = vld [vmem:[%s6 + $0xe0] sm:$0xff]
    %v995 = vld [vmem:[%s6 + $0xe8] sm:$0xff]
    %v996 = vld [vmem:[%s6 + $0xf0] sm:$0xff]
    %v997 = vld [vmem:[%s6 + $0xf8] sm:$0xff]
    %v998 = vld [vmem:[%s6 + $0x100] sm:$0xff]
    %v999 = vld [vmem:[%s6 + $0x108] sm:$0xff]
    %v1000 = vld [vmem:[%s6 + $0x110] sm:$0xff]
    %v1001 = vld [vmem:[%s6 + $0x118] sm:$0xff]
    %v1002 = vld [vmem:[%s6 + $0x120] sm:$0xff]
    %v1003 = vld [vmem:[%s6 + $0x128] sm:$0xff]
    %v1004 = vld [vmem:[%s6 + $0x130] sm:$0xff]
    %v1005 = vld [vmem:[%s6 + $0x138] sm:$0xff]
    %v1006 = vld [vmem:[%s6 + $0x140] sm:$0xff]
    %v1007 = vld [vmem:[%s6 + $0x148] sm:$0xff]
    %v1008 = vld [vmem:[%s6 + $0x150] sm:$0xff]
    %v1009 = vld [vmem:[%s6 + $0x158] sm:$0xff]
    %v1010 = vld [vmem:[%s6 + $0x160] sm:$0xff]
    %v1011 = vld [vmem:[%s6 + $0x168] sm:$0xff]
    %v1012 = vld [vmem:[%s6 + $0x170] sm:$0xff]
    %v1013 = vld [vmem:[%s6 + $0x178] sm:$0xff]
    %v1014 = vld [vmem:[%s6 + $0x180] sm:$0xff]
    %v1015 = vld [vmem:[%s6 + $0x188] sm:$0xff]
    %v1016 = vld [vmem:[%s6 + $0x190] sm:$0xff]
    %v1017 = vld [vmem:[%s6 + $0x198] sm:$0xff]
    %v1018 = vld [vmem:[%s6 + $0x1a0] sm:$0xff]
    %v1019 = vld [vmem:[%s6 + $0x1a8] sm:$0xff]
    %v1020 = vld [vmem:[%s6 + $0x1b0] sm:$0xff]
    %v1021 = vld [vmem:[%s6 + $0x1b8] sm:$0xff]
    %v1022 = vld [vmem:[%s6 + $0x1c0] sm:$0xff]
    %v1023 = vld [vmem:[%s6 + $0x1c8] sm:$0xff]
    %v1024 = vld [vmem:[%s6 + $0x1d0] sm:$0xff]
    %v1025 = vld [vmem:[%s6 + $0x1d8] sm:$0xff]
    %v1026 = vld [vmem:[%s6 + $0x1e0] sm:$0xff]
    %v1027 = vld [vmem:[%s6 + $0x1e8] sm:$0xff]
    %v1028 = vld [vmem:[%s6 + $0x1f0] sm:$0xff]
    %v1029 = vld [vmem:[%s6 + $0x1f8] sm:$0xff]
    %v1030 = vld [vmem:[#allocation10] sm:$0xff]
    %v1031 = vld [vmem:[#allocation10 + $0x8] sm:$0xff]
    %v1032 = vld [vmem:[#allocation10 + $0x10] sm:$0xff]
    %v1033 = vld [vmem:[#allocation10 + $0x18] sm:$0xff]
    %v1034 = vld [vmem:[#allocation15] sm:$0x1]
    %v1035 = vld [vmem:[#allocation16] sm:$0x1]
    %1036 = vmatprep.subr.mxu0 0.0
    %1037 = vmatpush1.msra.mxu0 %v981
    %1038 = vmatprep.subr.mxu0 0.0
    %1039 = vmatpush1.msra.mxu0 %v980
    %1040 = vmatprep.subr.mxu0 0.0
    %1041 = vmatpush1.msra.mxu0 %v979
    %1042 = vmatprep.subr.mxu0 0.0
    %1043 = vmatpush1.msra.mxu0 %v978
    %1044 = vmatprep.subr.mxu0 0.0
    %1045 = vmatpush1.msra.mxu0 %v977
    %1046 = vmatprep.subr.mxu0 0.0
    %1047 = vmatpush1.msra.mxu0 %v976
    %1048 = vmatprep.subr.mxu0 0.0
    %1049 = vmatpush1.msra.mxu0 %v975
    %1050 = vmatprep.subr.mxu0 0.0
    %1051 = vmatpush1.msra.mxu0 %v974
    %1052 = vmatprep.subr.mxu0 0.0
    %1053 = vmatpush1.msra.mxu0 %v973
    %1054 = vmatprep.subr.mxu0 0.0
    %1055 = vmatpush1.msra.mxu0 %v972
    %1056 = vmatprep.subr.mxu0 0.0
    %1057 = vmatpush1.msra.mxu0 %v971
    %1058 = vmatprep.subr.mxu0 0.0
    %1059 = vmatpush1.msra.mxu0 %v970
    %1060 = vmatprep.subr.mxu0 0.0
    %1061 = vmatpush1.msra.mxu0 %v969
    %1062 = vmatprep.subr.mxu0 0.0
    %1063 = vmatpush1.msra.mxu0 %v968
    %1064 = vmatprep.subr.mxu0 0.0
    %1065 = vmatpush1.msra.mxu0 %v967
    %1066 = vmatprep.subr.mxu0 0.0
    %1067 = vmatpush1.msra.mxu0 %v966
    %1068 = vmatprep.subr.mxu0 0.0
    %1069 = vmatpush2.msra.mxu0 %v997
    %1070 = vmatprep.subr.mxu0 0.0
    %1071 = vmatpush2.msra.mxu0 %v996
    %1072 = vmatprep.subr.mxu0 0.0
    %1073 = vmatpush2.msra.mxu0 %v995
    %1074 = vmatprep.subr.mxu0 0.0
    %1075 = vmatpush2.msra.mxu0 %v994
    %1076 = vmatprep.subr.mxu0 0.0
    %1077 = vmatpush2.msra.mxu0 %v993
    %1078 = vmatprep.subr.mxu0 0.0
    %1079 = vmatpush2.msra.mxu0 %v992
    %1080 = vmatprep.subr.mxu0 0.0
    %1081 = vmatpush2.msra.mxu0 %v991
    %1082 = vmatprep.subr.mxu0 0.0
    %1083 = vmatpush2.msra.mxu0 %v990
    %1084 = vmatprep.subr.mxu0 0.0
    %1085 = vmatpush2.msra.mxu0 %v989
    %1086 = vmatprep.subr.mxu0 0.0
    %1087 = vmatpush2.msra.mxu0 %v988
    %1088 = vmatprep.subr.mxu0 0.0
    %1089 = vmatpush2.msra.mxu0 %v987
    %1090 = vmatprep.subr.mxu0 0.0
    %1091 = vmatpush2.msra.mxu0 %v986
    %1092 = vmatprep.subr.mxu0 0.0
    %1093 = vmatpush2.msra.mxu0 %v985
    %1094 = vmatprep.subr.mxu0 0.0
    %1095 = vmatpush2.msra.mxu0 %v984
    %1096 = vmatprep.subr.mxu0 0.0
    %1097 = vmatpush2.msra.mxu0 %v983
    %1098 = vmatprep.subr.mxu0 0.0
    %1099 = vmatpush2.msra.mxu0 %v982
    %1100 = vmatprep.mubr.f32.mxu0 %v893
    %1101 = vmatmul.mubr.f32.gmra.mxu0 %v891
    %v1102 = vpop.f32.mrf.mxu0
    %v1103 = vadd.f32 0.0, %v1102
    %v1104 = vpop.f32.mrf.mxu0
    %1105 = vdwg.mxu0
    %1106 = vmatprep.subr.mxu0 0.0
    %1107 = vmatpush1.msra.mxu0 %v1013
    %1108 = vmatprep.subr.mxu0 0.0
    %1109 = vmatpush1.msra.mxu0 %v1012
    %1110 = vmatprep.subr.mxu0 0.0
    %1111 = vmatpush1.msra.mxu0 %v1011
    %1112 = vmatprep.subr.mxu0 0.0
    %1113 = vmatpush1.msra.mxu0 %v1010
    %1114 = vmatprep.subr.mxu0 0.0
    %1115 = vmatpush1.msra.mxu0 %v1009
    %1116 = vmatprep.subr.mxu0 0.0
    %1117 = vmatpush1.msra.mxu0 %v1008
    %1118 = vmatprep.subr.mxu0 0.0
    %1119 = vmatpush1.msra.mxu0 %v1007
    %1120 = vmatprep.subr.mxu0 0.0
    %1121 = vmatpush1.msra.mxu0 %v1006
    %1122 = vmatprep.subr.mxu0 0.0
    %1123 = vmatpush1.msra.mxu0 %v1005
    %1124 = vmatprep.subr.mxu0 0.0
    %1125 = vmatpush1.msra.mxu0 %v1004
    %1126 = vmatprep.subr.mxu0 0.0
    %1127 = vmatpush1.msra.mxu0 %v1003
    %1128 = vmatprep.subr.mxu0 0.0
    %1129 = vmatpush1.msra.mxu0 %v1002
    %1130 = vmatprep.subr.mxu0 0.0
    %1131 = vmatpush1.msra.mxu0 %v1001
    %1132 = vmatprep.subr.mxu0 0.0
    %1133 = vmatpush1.msra.mxu0 %v1000
    %1134 = vmatprep.subr.mxu0 0.0
    %1135 = vmatpush1.msra.mxu0 %v999
    %1136 = vmatprep.subr.mxu0 0.0
    %1137 = vmatpush1.msra.mxu0 %v998
    %1138 = vmatprep.subr.mxu0 0.0
    %1139 = vmatpush2.msra.mxu0 %v1029
    %1140 = vmatprep.subr.mxu0 0.0
    %1141 = vmatpush2.msra.mxu0 %v1028
    %1142 = vmatprep.subr.mxu0 0.0
    %1143 = vmatpush2.msra.mxu0 %v1027
    %1144 = vmatprep.subr.mxu0 0.0
    %1145 = vmatpush2.msra.mxu0 %v1026
    %1146 = vmatprep.subr.mxu0 0.0
    %1147 = vmatpush2.msra.mxu0 %v1025
    %1148 = vmatprep.subr.mxu0 0.0
    %1149 = vmatpush2.msra.mxu0 %v1024
    %1150 = vmatprep.subr.mxu0 0.0
    %1151 = vmatpush2.msra.mxu0 %v1023
    %1152 = vmatprep.subr.mxu0 0.0
    %1153 = vmatpush2.msra.mxu0 %v1022
    %1154 = vmatprep.subr.mxu0 0.0
    %1155 = vmatpush2.msra.mxu0 %v1021
    %1156 = vmatprep.subr.mxu0 0.0
    %1157 = vmatpush2.msra.mxu0 %v1020
    %1158 = vmatprep.subr.mxu0 0.0
    %1159 = vmatpush2.msra.mxu0 %v1019
    %1160 = vmatprep.subr.mxu0 0.0
    %1161 = vmatpush2.msra.mxu0 %v1018
    %1162 = vmatprep.subr.mxu0 0.0
    %1163 = vmatpush2.msra.mxu0 %v1017
    %1164 = vmatprep.subr.mxu0 0.0
    %1165 = vmatpush2.msra.mxu0 %v1016
    %1166 = vmatprep.subr.mxu0 0.0
    %1167 = vmatpush2.msra.mxu0 %v1015
    %1168 = vmatprep.subr.mxu0 0.0
    %1169 = vmatpush2.msra.mxu0 %v1014
    %1170 = vmatprep.mubr.f32.mxu0 %v964
    %1171 = vmatmul.mubr.f32.gmra.mxu0 %v962
    %v1172 = vpop.f32.mrf.mxu0
    %v1173 = vadd.f32 %v1103, %v1172
    %v1174 = vpop.f32.mrf.mxu0
    %1175 = vdwg.mxu0
    %vm1176 = vcmask 58368
    %v1177 = vsel %vm1176, %v1173, 0.0
    %v1178 = vrot.slane %v1177, 4
    %v1179 = vadd.f32 %v1177, %v1178
    %v1180 = vrot.slane %v1179, 2
    %v1181 = vadd.f32 %v1179, %v1180
    %v1182 = vrot.slane %v1181, 1
    %v1183 = vadd.f32 %v1181, %v1182
    %v1184 = vmul.f32 %v1183, 0.0078125
    %v1186 = vsel %vm166, %v1184, 0
    %1188 = vmatprep.subr.mxu0 0.0
    %1189 = vmatpush1.msra.mxu0 0.0
    %1190 = vmatprep.subr.mxu0 0.0
    %1191 = vmatpush1.msra.mxu0 0.0
    %1192 = vmatprep.subr.mxu0 0.0
    %1193 = vmatpush1.msra.mxu0 0.0
    %1194 = vmatprep.subr.mxu0 0.0
    %1195 = vmatpush1.msra.mxu0 0.0
    %1196 = vmatprep.subr.mxu0 0.0
    %1197 = vmatpush1.msra.mxu0 0.0
    %1198 = vmatprep.subr.mxu0 0.0
    %1199 = vmatpush1.msra.mxu0 0.0
    %1200 = vmatprep.subr.mxu0 0.0
    %1201 = vmatpush1.msra.mxu0 0.0
    %1202 = vmatprep.subr.mxu0 0.0
    %1203 = vmatpush1.msra.mxu0 0.0
    %1204 = vmatprep.subr.mxu0 0.0
    %1205 = vmatpush1.msra.mxu0 0.0
    %1206 = vmatprep.subr.mxu0 0.0
    %1207 = vmatpush1.msra.mxu0 0.0
    %1208 = vmatprep.subr.mxu0 0.0
    %1209 = vmatpush1.msra.mxu0 0.0
    %1210 = vmatprep.subr.mxu0 0.0
    %1211 = vmatpush1.msra.mxu0 0.0
    %1212 = vmatprep.subr.mxu0 0.0
    %1213 = vmatpush1.msra.mxu0 0.0
    %1214 = vmatprep.subr.mxu0 0.0
    %1215 = vmatpush1.msra.mxu0 0.0
    %1216 = vmatprep.subr.mxu0 0.0
    %1217 = vmatpush1.msra.mxu0 0.0
    %1218 = vmatprep.subr.mxu0 %v1031
    %1219 = vmatpush1.msra.mxu0 %v1030
    %1220 = vmatprep.subr.mxu0 0.0
    %1221 = vmatpush2.msra.mxu0 0.0
    %1222 = vmatprep.subr.mxu0 0.0
    %1223 = vmatpush2.msra.mxu0 0.0
    %1224 = vmatprep.subr.mxu0 0.0
    %1225 = vmatpush2.msra.mxu0 0.0
    %1226 = vmatprep.subr.mxu0 0.0
    %1227 = vmatpush2.msra.mxu0 0.0
    %1228 = vmatprep.subr.mxu0 0.0
    %1229 = vmatpush2.msra.mxu0 0.0
    %1230 = vmatprep.subr.mxu0 0.0
    %1231 = vmatpush2.msra.mxu0 0.0
    %1232 = vmatprep.subr.mxu0 0.0
    %1233 = vmatpush2.msra.mxu0 0.0
    %1234 = vmatprep.subr.mxu0 0.0
    %1235 = vmatpush2.msra.mxu0 0.0
    %1236 = vmatprep.subr.mxu0 0.0
    %1237 = vmatpush2.msra.mxu0 0.0
    %1238 = vmatprep.subr.mxu0 0.0
    %1239 = vmatpush2.msra.mxu0 0.0
    %1240 = vmatprep.subr.mxu0 0.0
    %1241 = vmatpush2.msra.mxu0 0.0
    %1242 = vmatprep.subr.mxu0 0.0
    %1243 = vmatpush2.msra.mxu0 0.0
    %1244 = vmatprep.subr.mxu0 0.0
    %1245 = vmatpush2.msra.mxu0 0.0
    %1246 = vmatprep.subr.mxu0 0.0
    %1247 = vmatpush2.msra.mxu0 0.0
    %1248 = vmatprep.subr.mxu0 0.0
    %1249 = vmatpush2.msra.mxu0 0.0
    %1250 = vmatprep.subr.mxu0 0.0
    %1251 = vmatpush2.msra.mxu0 0.0
    %1252 = vmatprep.mubr.f32.mxu0 0.0
    %1253 = vmatmul.mubr.f32.gmra.mxu0 %v1186
    %v1254 = vpop.f32.mrf.mxu0
    %v1255 = vadd.f32 0.0, %v1254
    %v1256 = vpop.f32.mrf.mxu0
    %v1257 = vadd.f32 0.0, %v1256
    %1258 = vdwg.mxu0
    %1259 = vmatprep.subr.mxu0 0.0
    %1260 = vmatpush1.msra.mxu0 0.0
    %1261 = vmatprep.subr.mxu0 0.0
    %1262 = vmatpush1.msra.mxu0 0.0
    %1263 = vmatprep.subr.mxu0 0.0
    %1264 = vmatpush1.msra.mxu0 0.0
    %1265 = vmatprep.subr.mxu0 0.0
    %1266 = vmatpush1.msra.mxu0 0.0
    %1267 = vmatprep.subr.mxu0 0.0
    %1268 = vmatpush1.msra.mxu0 0.0
    %1269 = vmatprep.subr.mxu0 0.0
    %1270 = vmatpush1.msra.mxu0 0.0
    %1271 = vmatprep.subr.mxu0 0.0
    %1272 = vmatpush1.msra.mxu0 0.0
    %1273 = vmatprep.subr.mxu0 0.0
    %1274 = vmatpush1.msra.mxu0 0.0
    %1275 = vmatprep.subr.mxu0 0.0
    %1276 = vmatpush1.msra.mxu0 0.0
    %1277 = vmatprep.subr.mxu0 0.0
    %1278 = vmatpush1.msra.mxu0 0.0
    %1279 = vmatprep.subr.mxu0 0.0
    %1280 = vmatpush1.msra.mxu0 0.0
    %1281 = vmatprep.subr.mxu0 0.0
    %1282 = vmatpush1.msra.mxu0 0.0
    %1283 = vmatprep.subr.mxu0 0.0
    %1284 = vmatpush1.msra.mxu0 0.0
    %1285 = vmatprep.subr.mxu0 0.0
    %1286 = vmatpush1.msra.mxu0 0.0
    %1287 = vmatprep.subr.mxu0 0.0
    %1288 = vmatpush1.msra.mxu0 0.0
    %1289 = vmatprep.subr.mxu0 %v1033
    %1290 = vmatpush1.msra.mxu0 %v1032
    %1291 = vmatprep.subr.mxu0 0.0
    %1292 = vmatpush2.msra.mxu0 0.0
    %1293 = vmatprep.subr.mxu0 0.0
    %1294 = vmatpush2.msra.mxu0 0.0
    %1295 = vmatprep.subr.mxu0 0.0
    %1296 = vmatpush2.msra.mxu0 0.0
    %1297 = vmatprep.subr.mxu0 0.0
    %1298 = vmatpush2.msra.mxu0 0.0
    %1299 = vmatprep.subr.mxu0 0.0
    %1300 = vmatpush2.msra.mxu0 0.0
    %1301 = vmatprep.subr.mxu0 0.0
    %1302 = vmatpush2.msra.mxu0 0.0
    %1303 = vmatprep.subr.mxu0 0.0
    %1304 = vmatpush2.msra.mxu0 0.0
    %1305 = vmatprep.subr.mxu0 0.0
    %1306 = vmatpush2.msra.mxu0 0.0
    %1307 = vmatprep.subr.mxu0 0.0
    %1308 = vmatpush2.msra.mxu0 0.0
    %1309 = vmatprep.subr.mxu0 0.0
    %1310 = vmatpush2.msra.mxu0 0.0
    %1311 = vmatprep.subr.mxu0 0.0
    %1312 = vmatpush2.msra.mxu0 0.0
    %1313 = vmatprep.subr.mxu0 0.0
    %1314 = vmatpush2.msra.mxu0 0.0
    %1315 = vmatprep.subr.mxu0 0.0
    %1316 = vmatpush2.msra.mxu0 0.0
    %1317 = vmatprep.subr.mxu0 0.0
    %1318 = vmatpush2.msra.mxu0 0.0
    %1319 = vmatprep.subr.mxu0 0.0
    %1320 = vmatpush2.msra.mxu0 0.0
    %1321 = vmatprep.subr.mxu0 0.0
    %1322 = vmatpush2.msra.mxu0 0.0
    %1323 = vmatprep.mubr.f32.mxu0 0.0
    %1324 = vmatmul.mubr.f32.gmra.mxu0 %v1186
    %v1325 = vpop.f32.mrf.mxu0
    %v1326 = vadd.f32 0.0, %v1325
    %v1327 = vpop.f32.mrf.mxu0
    %v1328 = vadd.f32 0.0, %v1327
    %1329 = vdwg.mxu0
    %v1330 = vlaneseq
    %v1331 = vshrl.u32 %v1330, 7
    %v1332 = vsub.s32 0, %v1331
    %v1333 = vrot.slane %v1255, %v1332
    %v1334 = vlaneseq
    %v1335 = vshrl.u32 %v1334, 7
    %v1336 = vsub.s32 0, %v1335
    %v1337 = vrot.slane %v1257, %v1336
    %v1338 = vlaneseq
    %v1339 = vshrl.u32 %v1338, 7
    %v1340 = vsub.s32 0, %v1339
    %v1341 = vrot.slane %v1326, %v1340
    %v1342 = vlaneseq
    %v1343 = vshrl.u32 %v1342, 7
    %v1344 = vsub.s32 0, %v1343
    %v1345 = vrot.slane %v1328, %v1344
    %v1346 = vsub.f32 %v891, %v1333
    %v1347 = vsub.f32 %v893, %v1337
    %v1348 = vsub.f32 %v962, %v1341
    %v1349 = vsub.f32 %v964, %v1345
    %v1350 = vmul.f32 %v1346, %v1346
    %v1351 = vmul.f32 %v1347, %v1347
    %v1352 = vmul.f32 %v1348, %v1348
    %v1353 = vmul.f32 %v1349, %v1349
    %1354 = vmatprep.subr.mxu0 0.0
    %1355 = vmatpush1.msra.mxu0 %v981
    %1356 = vmatprep.subr.mxu0 0.0
    %1357 = vmatpush1.msra.mxu0 %v980
    %1358 = vmatprep.subr.mxu0 0.0
    %1359 = vmatpush1.msra.mxu0 %v979
    %1360 = vmatprep.subr.mxu0 0.0
    %1361 = vmatpush1.msra.mxu0 %v978
    %1362 = vmatprep.subr.mxu0 0.0
    %1363 = vmatpush1.msra.mxu0 %v977
    %1364 = vmatprep.subr.mxu0 0.0
    %1365 = vmatpush1.msra.mxu0 %v976
    %1366 = vmatprep.subr.mxu0 0.0
    %1367 = vmatpush1.msra.mxu0 %v975
    %1368 = vmatprep.subr.mxu0 0.0
    %1369 = vmatpush1.msra.mxu0 %v974
    %1370 = vmatprep.subr.mxu0 0.0
    %1371 = vmatpush1.msra.mxu0 %v973
    %1372 = vmatprep.subr.mxu0 0.0
    %1373 = vmatpush1.msra.mxu0 %v972
    %1374 = vmatprep.subr.mxu0 0.0
    %1375 = vmatpush1.msra.mxu0 %v971
    %1376 = vmatprep.subr.mxu0 0.0
    %1377 = vmatpush1.msra.mxu0 %v970
    %1378 = vmatprep.subr.mxu0 0.0
    %1379 = vmatpush1.msra.mxu0 %v969
    %1380 = vmatprep.subr.mxu0 0.0
    %1381 = vmatpush1.msra.mxu0 %v968
    %1382 = vmatprep.subr.mxu0 0.0
    %1383 = vmatpush1.msra.mxu0 %v967
    %1384 = vmatprep.subr.mxu0 0.0
    %1385 = vmatpush1.msra.mxu0 %v966
    %1386 = vmatprep.subr.mxu0 0.0
    %1387 = vmatpush2.msra.mxu0 %v997
    %1388 = vmatprep.subr.mxu0 0.0
    %1389 = vmatpush2.msra.mxu0 %v996
    %1390 = vmatprep.subr.mxu0 0.0
    %1391 = vmatpush2.msra.mxu0 %v995
    %1392 = vmatprep.subr.mxu0 0.0
    %1393 = vmatpush2.msra.mxu0 %v994
    %1394 = vmatprep.subr.mxu0 0.0
    %1395 = vmatpush2.msra.mxu0 %v993
    %1396 = vmatprep.subr.mxu0 0.0
    %1397 = vmatpush2.msra.mxu0 %v992
    %1398 = vmatprep.subr.mxu0 0.0
    %1399 = vmatpush2.msra.mxu0 %v991
    %1400 = vmatprep.subr.mxu0 0.0
    %1401 = vmatpush2.msra.mxu0 %v990
    %1402 = vmatprep.subr.mxu0 0.0
    %1403 = vmatpush2.msra.mxu0 %v989
    %1404 = vmatprep.subr.mxu0 0.0
    %1405 = vmatpush2.msra.mxu0 %v988
    %1406 = vmatprep.subr.mxu0 0.0
    %1407 = vmatpush2.msra.mxu0 %v987
    %1408 = vmatprep.subr.mxu0 0.0
    %1409 = vmatpush2.msra.mxu0 %v986
    %1410 = vmatprep.subr.mxu0 0.0
    %1411 = vmatpush2.msra.mxu0 %v985
    %1412 = vmatprep.subr.mxu0 0.0
    %1413 = vmatpush2.msra.mxu0 %v984
    %1414 = vmatprep.subr.mxu0 0.0
    %1415 = vmatpush2.msra.mxu0 %v983
    %1416 = vmatprep.subr.mxu0 0.0
    %1417 = vmatpush2.msra.mxu0 %v982
    %1418 = vmatprep.mubr.f32.mxu0 %v1351
    %1419 = vmatmul.mubr.f32.gmra.mxu0 %v1350
    %v1420 = vpop.f32.mrf.mxu0
    %v1421 = vadd.f32 0.0, %v1420
    %v1422 = vpop.f32.mrf.mxu0
    %1423 = vdwg.mxu0
    %1424 = vmatprep.subr.mxu0 0.0
    %1425 = vmatpush1.msra.mxu0 %v1013
    %1426 = vmatprep.subr.mxu0 0.0
    %1427 = vmatpush1.msra.mxu0 %v1012
    %1428 = vmatprep.subr.mxu0 0.0
    %1429 = vmatpush1.msra.mxu0 %v1011
    %1430 = vmatprep.subr.mxu0 0.0
    %1431 = vmatpush1.msra.mxu0 %v1010
    %1432 = vmatprep.subr.mxu0 0.0
    %1433 = vmatpush1.msra.mxu0 %v1009
    %1434 = vmatprep.subr.mxu0 0.0
    %1435 = vmatpush1.msra.mxu0 %v1008
    %1436 = vmatprep.subr.mxu0 0.0
    %1437 = vmatpush1.msra.mxu0 %v1007
    %1438 = vmatprep.subr.mxu0 0.0
    %1439 = vmatpush1.msra.mxu0 %v1006
    %1440 = vmatprep.subr.mxu0 0.0
    %1441 = vmatpush1.msra.mxu0 %v1005
    %1442 = vmatprep.subr.mxu0 0.0
    %1443 = vmatpush1.msra.mxu0 %v1004
    %1444 = vmatprep.subr.mxu0 0.0
    %1445 = vmatpush1.msra.mxu0 %v1003
    %1446 = vmatprep.subr.mxu0 0.0
    %1447 = vmatpush1.msra.mxu0 %v1002
    %1448 = vmatprep.subr.mxu0 0.0
    %1449 = vmatpush1.msra.mxu0 %v1001
    %1450 = vmatprep.subr.mxu0 0.0
    %1451 = vmatpush1.msra.mxu0 %v1000
    %1452 = vmatprep.subr.mxu0 0.0
    %1453 = vmatpush1.msra.mxu0 %v999
    %1454 = vmatprep.subr.mxu0 0.0
    %1455 = vmatpush1.msra.mxu0 %v998
    %1456 = vmatprep.subr.mxu0 0.0
    %1457 = vmatpush2.msra.mxu0 %v1029
    %1458 = vmatprep.subr.mxu0 0.0
    %1459 = vmatpush2.msra.mxu0 %v1028
    %1460 = vmatprep.subr.mxu0 0.0
    %1461 = vmatpush2.msra.mxu0 %v1027
    %1462 = vmatprep.subr.mxu0 0.0
    %1463 = vmatpush2.msra.mxu0 %v1026
    %1464 = vmatprep.subr.mxu0 0.0
    %1465 = vmatpush2.msra.mxu0 %v1025
    %1466 = vmatprep.subr.mxu0 0.0
    %1467 = vmatpush2.msra.mxu0 %v1024
    %1468 = vmatprep.subr.mxu0 0.0
    %1469 = vmatpush2.msra.mxu0 %v1023
    %1470 = vmatprep.subr.mxu0 0.0
    %1471 = vmatpush2.msra.mxu0 %v1022
    %1472 = vmatprep.subr.mxu0 0.0
    %1473 = vmatpush2.msra.mxu0 %v1021
    %1474 = vmatprep.subr.mxu0 0.0
    %1475 = vmatpush2.msra.mxu0 %v1020
    %1476 = vmatprep.subr.mxu0 0.0
    %1477 = vmatpush2.msra.mxu0 %v1019
    %1478 = vmatprep.subr.mxu0 0.0
    %1479 = vmatpush2.msra.mxu0 %v1018
    %1480 = vmatprep.subr.mxu0 0.0
    %1481 = vmatpush2.msra.mxu0 %v1017
    %1482 = vmatprep.subr.mxu0 0.0
    %1483 = vmatpush2.msra.mxu0 %v1016
    %1484 = vmatprep.subr.mxu0 0.0
    %1485 = vmatpush2.msra.mxu0 %v1015
    %1486 = vmatprep.subr.mxu0 0.0
    %1487 = vmatpush2.msra.mxu0 %v1014
    %1488 = vmatprep.mubr.f32.mxu0 %v1353
    %1489 = vmatmul.mubr.f32.gmra.mxu0 %v1352
    %v1490 = vpop.f32.mrf.mxu0
    %v1491 = vadd.f32 %v1421, %v1490
    %v1492 = vpop.f32.mrf.mxu0
    %1493 = vdwg.mxu0
    %v1494 = vsel %vm1176, %v1491, 0.0
    %v1495 = vrot.slane %v1494, 4
    %v1496 = vadd.f32 %v1494, %v1495
    %v1497 = vrot.slane %v1496, 2
    %v1498 = vadd.f32 %v1496, %v1497
    %v1499 = vrot.slane %v1498, 1
    %v1500 = vadd.f32 %v1498, %v1499
    %v1501 = vmul.f32 %v1500, 0.0078125
    %v1502 = vadd.f32 %v1501, 1e-05
    %v1503 = vrsqrt.pop %v1502
    %v1504 = vmul.f32 %v1034, %v1503
    %v1506 = vsel %vm166, %v1504, 0
    %1508 = vmatprep.subr.mxu0 0.0
    %1509 = vmatpush1.msra.mxu0 0.0
    %1510 = vmatprep.subr.mxu0 0.0
    %1511 = vmatpush1.msra.mxu0 0.0
    %1512 = vmatprep.subr.mxu0 0.0
    %1513 = vmatpush1.msra.mxu0 0.0
    %1514 = vmatprep.subr.mxu0 0.0
    %1515 = vmatpush1.msra.mxu0 0.0
    %1516 = vmatprep.subr.mxu0 0.0
    %1517 = vmatpush1.msra.mxu0 0.0
    %1518 = vmatprep.subr.mxu0 0.0
    %1519 = vmatpush1.msra.mxu0 0.0
    %1520 = vmatprep.subr.mxu0 0.0
    %1521 = vmatpush1.msra.mxu0 0.0
    %1522 = vmatprep.subr.mxu0 0.0
    %1523 = vmatpush1.msra.mxu0 0.0
    %1524 = vmatprep.subr.mxu0 0.0
    %1525 = vmatpush1.msra.mxu0 0.0
    %1526 = vmatprep.subr.mxu0 0.0
    %1527 = vmatpush1.msra.mxu0 0.0
    %1528 = vmatprep.subr.mxu0 0.0
    %1529 = vmatpush1.msra.mxu0 0.0
    %1530 = vmatprep.subr.mxu0 0.0
    %1531 = vmatpush1.msra.mxu0 0.0
    %1532 = vmatprep.subr.mxu0 0.0
    %1533 = vmatpush1.msra.mxu0 0.0
    %1534 = vmatprep.subr.mxu0 0.0
    %1535 = vmatpush1.msra.mxu0 0.0
    %1536 = vmatprep.subr.mxu0 0.0
    %1537 = vmatpush1.msra.mxu0 0.0
    %1538 = vmatprep.subr.mxu0 %v1031
    %1539 = vmatpush1.msra.mxu0 %v1030
    %1540 = vmatprep.subr.mxu0 0.0
    %1541 = vmatpush2.msra.mxu0 0.0
    %1542 = vmatprep.subr.mxu0 0.0
    %1543 = vmatpush2.msra.mxu0 0.0
    %1544 = vmatprep.subr.mxu0 0.0
    %1545 = vmatpush2.msra.mxu0 0.0
    %1546 = vmatprep.subr.mxu0 0.0
    %1547 = vmatpush2.msra.mxu0 0.0
    %1548 = vmatprep.subr.mxu0 0.0
    %1549 = vmatpush2.msra.mxu0 0.0
    %1550 = vmatprep.subr.mxu0 0.0
    %1551 = vmatpush2.msra.mxu0 0.0
    %1552 = vmatprep.subr.mxu0 0.0
    %1553 = vmatpush2.msra.mxu0 0.0
    %1554 = vmatprep.subr.mxu0 0.0
    %1555 = vmatpush2.msra.mxu0 0.0
    %1556 = vmatprep.subr.mxu0 0.0
    %1557 = vmatpush2.msra.mxu0 0.0
    %1558 = vmatprep.subr.mxu0 0.0
    %1559 = vmatpush2.msra.mxu0 0.0
    %1560 = vmatprep.subr.mxu0 0.0
    %1561 = vmatpush2.msra.mxu0 0.0
    %1562 = vmatprep.subr.mxu0 0.0
    %1563 = vmatpush2.msra.mxu0 0.0
    %1564 = vmatprep.subr.mxu0 0.0
    %1565 = vmatpush2.msra.mxu0 0.0
    %1566 = vmatprep.subr.mxu0 0.0
    %1567 = vmatpush2.msra.mxu0 0.0
    %1568 = vmatprep.subr.mxu0 0.0
    %1569 = vmatpush2.msra.mxu0 0.0
    %1570 = vmatprep.subr.mxu0 0.0
    %1571 = vmatpush2.msra.mxu0 0.0
    %1572 = vmatprep.mubr.f32.mxu0 0.0
    %1573 = vmatmul.mubr.f32.gmra.mxu0 %v1506
    %v1574 = vpop.f32.mrf.mxu0
    %v1575 = vadd.f32 0.0, %v1574
    %v1576 = vpop.f32.mrf.mxu0
    %v1577 = vadd.f32 0.0, %v1576
    %1578 = vdwg.mxu0
    %1579 = vmatprep.subr.mxu0 0.0
    %1580 = vmatpush1.msra.mxu0 0.0
    %1581 = vmatprep.subr.mxu0 0.0
    %1582 = vmatpush1.msra.mxu0 0.0
    %1583 = vmatprep.subr.mxu0 0.0
    %1584 = vmatpush1.msra.mxu0 0.0
    %1585 = vmatprep.subr.mxu0 0.0
    %1586 = vmatpush1.msra.mxu0 0.0
    %1587 = vmatprep.subr.mxu0 0.0
    %1588 = vmatpush1.msra.mxu0 0.0
    %1589 = vmatprep.subr.mxu0 0.0
    %1590 = vmatpush1.msra.mxu0 0.0
    %1591 = vmatprep.subr.mxu0 0.0
    %1592 = vmatpush1.msra.mxu0 0.0
    %1593 = vmatprep.subr.mxu0 0.0
    %1594 = vmatpush1.msra.mxu0 0.0
    %1595 = vmatprep.subr.mxu0 0.0
    %1596 = vmatpush1.msra.mxu0 0.0
    %1597 = vmatprep.subr.mxu0 0.0
    %1598 = vmatpush1.msra.mxu0 0.0
    %1599 = vmatprep.subr.mxu0 0.0
    %1600 = vmatpush1.msra.mxu0 0.0
    %1601 = vmatprep.subr.mxu0 0.0
    %1602 = vmatpush1.msra.mxu0 0.0
    %1603 = vmatprep.subr.mxu0 0.0
    %1604 = vmatpush1.msra.mxu0 0.0
    %1605 = vmatprep.subr.mxu0 0.0
    %1606 = vmatpush1.msra.mxu0 0.0
    %1607 = vmatprep.subr.mxu0 0.0
    %1608 = vmatpush1.msra.mxu0 0.0
    %1609 = vmatprep.subr.mxu0 %v1033
    %1610 = vmatpush1.msra.mxu0 %v1032
    %1611 = vmatprep.subr.mxu0 0.0
    %1612 = vmatpush2.msra.mxu0 0.0
    %1613 = vmatprep.subr.mxu0 0.0
    %1614 = vmatpush2.msra.mxu0 0.0
    %1615 = vmatprep.subr.mxu0 0.0
    %1616 = vmatpush2.msra.mxu0 0.0
    %1617 = vmatprep.subr.mxu0 0.0
    %1618 = vmatpush2.msra.mxu0 0.0
    %1619 = vmatprep.subr.mxu0 0.0
    %1620 = vmatpush2.msra.mxu0 0.0
    %1621 = vmatprep.subr.mxu0 0.0
    %1622 = vmatpush2.msra.mxu0 0.0
    %1623 = vmatprep.subr.mxu0 0.0
    %1624 = vmatpush2.msra.mxu0 0.0
    %1625 = vmatprep.subr.mxu0 0.0
    %1626 = vmatpush2.msra.mxu0 0.0
    %1627 = vmatprep.subr.mxu0 0.0
    %1628 = vmatpush2.msra.mxu0 0.0
    %1629 = vmatprep.subr.mxu0 0.0
    %1630 = vmatpush2.msra.mxu0 0.0
    %1631 = vmatprep.subr.mxu0 0.0
    %1632 = vmatpush2.msra.mxu0 0.0
    %1633 = vmatprep.subr.mxu0 0.0
    %1634 = vmatpush2.msra.mxu0 0.0
    %1635 = vmatprep.subr.mxu0 0.0
    %1636 = vmatpush2.msra.mxu0 0.0
    %1637 = vmatprep.subr.mxu0 0.0
    %1638 = vmatpush2.msra.mxu0 0.0
    %1639 = vmatprep.subr.mxu0 0.0
    %1640 = vmatpush2.msra.mxu0 0.0
    %1641 = vmatprep.subr.mxu0 0.0
    %1642 = vmatpush2.msra.mxu0 0.0
    %1643 = vmatprep.mubr.f32.mxu0 0.0
    %1644 = vmatmul.mubr.f32.gmra.mxu0 %v1506
    %v1645 = vpop.f32.mrf.mxu0
    %v1646 = vadd.f32 0.0, %v1645
    %v1647 = vpop.f32.mrf.mxu0
    %v1648 = vadd.f32 0.0, %v1647
    %1649 = vdwg.mxu0
    %v1651 = vsel %vm166, %v1035, 0
    %1653 = vmatprep.subr.mxu0 0.0
    %1654 = vmatpush1.msra.mxu0 0.0
    %1655 = vmatprep.subr.mxu0 0.0
    %1656 = vmatpush1.msra.mxu0 0.0
    %1657 = vmatprep.subr.mxu0 0.0
    %1658 = vmatpush1.msra.mxu0 0.0
    %1659 = vmatprep.subr.mxu0 0.0
    %1660 = vmatpush1.msra.mxu0 0.0
    %1661 = vmatprep.subr.mxu0 0.0
    %1662 = vmatpush1.msra.mxu0 0.0
    %1663 = vmatprep.subr.mxu0 0.0
    %1664 = vmatpush1.msra.mxu0 0.0
    %1665 = vmatprep.subr.mxu0 0.0
    %1666 = vmatpush1.msra.mxu0 0.0
    %1667 = vmatprep.subr.mxu0 0.0
    %1668 = vmatpush1.msra.mxu0 0.0
    %1669 = vmatprep.subr.mxu0 0.0
    %1670 = vmatpush1.msra.mxu0 0.0
    %1671 = vmatprep.subr.mxu0 0.0
    %1672 = vmatpush1.msra.mxu0 0.0
    %1673 = vmatprep.subr.mxu0 0.0
    %1674 = vmatpush1.msra.mxu0 0.0
    %1675 = vmatprep.subr.mxu0 0.0
    %1676 = vmatpush1.msra.mxu0 0.0
    %1677 = vmatprep.subr.mxu0 0.0
    %1678 = vmatpush1.msra.mxu0 0.0
    %1679 = vmatprep.subr.mxu0 0.0
    %1680 = vmatpush1.msra.mxu0 0.0
    %1681 = vmatprep.subr.mxu0 0.0
    %1682 = vmatpush1.msra.mxu0 0.0
    %1683 = vmatprep.subr.mxu0 %v1031
    %1684 = vmatpush1.msra.mxu0 %v1030
    %1685 = vmatprep.subr.mxu0 0.0
    %1686 = vmatpush2.msra.mxu0 0.0
    %1687 = vmatprep.subr.mxu0 0.0
    %1688 = vmatpush2.msra.mxu0 0.0
    %1689 = vmatprep.subr.mxu0 0.0
    %1690 = vmatpush2.msra.mxu0 0.0
    %1691 = vmatprep.subr.mxu0 0.0
    %1692 = vmatpush2.msra.mxu0 0.0
    %1693 = vmatprep.subr.mxu0 0.0
    %1694 = vmatpush2.msra.mxu0 0.0
    %1695 = vmatprep.subr.mxu0 0.0
    %1696 = vmatpush2.msra.mxu0 0.0
    %1697 = vmatprep.subr.mxu0 0.0
    %1698 = vmatpush2.msra.mxu0 0.0
    %1699 = vmatprep.subr.mxu0 0.0
    %1700 = vmatpush2.msra.mxu0 0.0
    %1701 = vmatprep.subr.mxu0 0.0
    %1702 = vmatpush2.msra.mxu0 0.0
    %1703 = vmatprep.subr.mxu0 0.0
    %1704 = vmatpush2.msra.mxu0 0.0
    %1705 = vmatprep.subr.mxu0 0.0
    %1706 = vmatpush2.msra.mxu0 0.0
    %1707 = vmatprep.subr.mxu0 0.0
    %1708 = vmatpush2.msra.mxu0 0.0
    %1709 = vmatprep.subr.mxu0 0.0
    %1710 = vmatpush2.msra.mxu0 0.0
    %1711 = vmatprep.subr.mxu0 0.0
    %1712 = vmatpush2.msra.mxu0 0.0
    %1713 = vmatprep.subr.mxu0 0.0
    %1714 = vmatpush2.msra.mxu0 0.0
    %1715 = vmatprep.subr.mxu0 0.0
    %1716 = vmatpush2.msra.mxu0 0.0
    %1717 = vmatprep.mubr.f32.mxu0 0.0
    %1718 = vmatmul.mubr.f32.gmra.mxu0 %v1651
    %v1719 = vpop.f32.mrf.mxu0
    %v1720 = vadd.f32 0.0, %v1719
    %v1721 = vpop.f32.mrf.mxu0
    %v1722 = vadd.f32 0.0, %v1721
    %1723 = vdwg.mxu0
    %1724 = vmatprep.subr.mxu0 0.0
    %1725 = vmatpush1.msra.mxu0 0.0
    %1726 = vmatprep.subr.mxu0 0.0
    %1727 = vmatpush1.msra.mxu0 0.0
    %1728 = vmatprep.subr.mxu0 0.0
    %1729 = vmatpush1.msra.mxu0 0.0
    %1730 = vmatprep.subr.mxu0 0.0
    %1731 = vmatpush1.msra.mxu0 0.0
    %1732 = vmatprep.subr.mxu0 0.0
    %1733 = vmatpush1.msra.mxu0 0.0
    %1734 = vmatprep.subr.mxu0 0.0
    %1735 = vmatpush1.msra.mxu0 0.0
    %1736 = vmatprep.subr.mxu0 0.0
    %1737 = vmatpush1.msra.mxu0 0.0
    %1738 = vmatprep.subr.mxu0 0.0
    %1739 = vmatpush1.msra.mxu0 0.0
    %1740 = vmatprep.subr.mxu0 0.0
    %1741 = vmatpush1.msra.mxu0 0.0
    %1742 = vmatprep.subr.mxu0 0.0
    %1743 = vmatpush1.msra.mxu0 0.0
    %1744 = vmatprep.subr.mxu0 0.0
    %1745 = vmatpush1.msra.mxu0 0.0
    %1746 = vmatprep.subr.mxu0 0.0
    %1747 = vmatpush1.msra.mxu0 0.0
    %1748 = vmatprep.subr.mxu0 0.0
    %1749 = vmatpush1.msra.mxu0 0.0
    %1750 = vmatprep.subr.mxu0 0.0
    %1751 = vmatpush1.msra.mxu0 0.0
    %1752 = vmatprep.subr.mxu0 0.0
    %1753 = vmatpush1.msra.mxu0 0.0
    %1754 = vmatprep.subr.mxu0 %v1033
    %1755 = vmatpush1.msra.mxu0 %v1032
    %1756 = vmatprep.subr.mxu0 0.0
    %1757 = vmatpush2.msra.mxu0 0.0
    %1758 = vmatprep.subr.mxu0 0.0
    %1759 = vmatpush2.msra.mxu0 0.0
    %1760 = vmatprep.subr.mxu0 0.0
    %1761 = vmatpush2.msra.mxu0 0.0
    %1762 = vmatprep.subr.mxu0 0.0
    %1763 = vmatpush2.msra.mxu0 0.0
    %1764 = vmatprep.subr.mxu0 0.0
    %1765 = vmatpush2.msra.mxu0 0.0
    %1766 = vmatprep.subr.mxu0 0.0
    %1767 = vmatpush2.msra.mxu0 0.0
    %1768 = vmatprep.subr.mxu0 0.0
    %1769 = vmatpush2.msra.mxu0 0.0
    %1770 = vmatprep.subr.mxu0 0.0
    %1771 = vmatpush2.msra.mxu0 0.0
    %1772 = vmatprep.subr.mxu0 0.0
    %1773 = vmatpush2.msra.mxu0 0.0
    %1774 = vmatprep.subr.mxu0 0.0
    %1775 = vmatpush2.msra.mxu0 0.0
    %1776 = vmatprep.subr.mxu0 0.0
    %1777 = vmatpush2.msra.mxu0 0.0
    %1778 = vmatprep.subr.mxu0 0.0
    %1779 = vmatpush2.msra.mxu0 0.0
    %1780 = vmatprep.subr.mxu0 0.0
    %1781 = vmatpush2.msra.mxu0 0.0
    %1782 = vmatprep.subr.mxu0 0.0
    %1783 = vmatpush2.msra.mxu0 0.0
    %1784 = vmatprep.subr.mxu0 0.0
    %1785 = vmatpush2.msra.mxu0 0.0
    %1786 = vmatprep.subr.mxu0 0.0
    %1787 = vmatpush2.msra.mxu0 0.0
    %1788 = vmatprep.mubr.f32.mxu0 0.0
    %1789 = vmatmul.mubr.f32.gmra.mxu0 %v1651
    %v1790 = vpop.f32.mrf.mxu0
    %v1791 = vadd.f32 0.0, %v1790
    %v1792 = vpop.f32.mrf.mxu0
    %v1793 = vadd.f32 0.0, %v1792
    %1794 = vdwg.mxu0
    %v1795 = vlaneseq
    %v1796 = vshrl.u32 %v1795, 7
    %v1797 = vsub.s32 0, %v1796
    %v1798 = vrot.slane %v1575, %v1797
    %v1799 = vlaneseq
    %v1800 = vshrl.u32 %v1799, 7
    %v1801 = vsub.s32 0, %v1800
    %v1802 = vrot.slane %v1577, %v1801
    %v1803 = vlaneseq
    %v1804 = vshrl.u32 %v1803, 7
    %v1805 = vsub.s32 0, %v1804
    %v1806 = vrot.slane %v1646, %v1805
    %v1807 = vlaneseq
    %v1808 = vshrl.u32 %v1807, 7
    %v1809 = vsub.s32 0, %v1808
    %v1810 = vrot.slane %v1648, %v1809
    %v1811 = vmul.f32 %v1346, %v1798
    %v1812 = vmul.f32 %v1347, %v1802
    %v1813 = vmul.f32 %v1348, %v1806
    %v1814 = vmul.f32 %v1349, %v1810
    %v1815 = vlaneseq
    %v1816 = vshrl.u32 %v1815, 7
    %v1817 = vsub.s32 0, %v1816
    %v1818 = vrot.slane %v1720, %v1817
    %v1819 = vlaneseq
    %v1820 = vshrl.u32 %v1819, 7
    %v1821 = vsub.s32 0, %v1820
    %v1822 = vrot.slane %v1722, %v1821
    %v1823 = vlaneseq
    %v1824 = vshrl.u32 %v1823, 7
    %v1825 = vsub.s32 0, %v1824
    %v1826 = vrot.slane %v1791, %v1825
    %v1827 = vlaneseq
    %v1828 = vshrl.u32 %v1827, 7
    %v1829 = vsub.s32 0, %v1828
    %v1830 = vrot.slane %v1793, %v1829
    %v1831 = vadd.f32 %v1811, %v1818
    %v1832 = vadd.f32 %v1812, %v1822
    %v1833 = vadd.f32 %v1813, %v1826
    %v1834 = vadd.f32 %v1814, %v1830
    %v1835 = vmax.f32 %v1831, 0.0
    %v1836 = vmax.f32 %v1832, 0.0
    %v1837 = vmax.f32 %v1833, 0.0
    %v1838 = vmax.f32 %v1834, 0.0
    %v1839 = vld [vmem:[#allocation7] sm:$0xff]
    %v1840 = vld [vmem:[#allocation7 + $0x8] sm:$0xff]
    %v1841 = vld [vmem:[#allocation7 + $0x10] sm:$0xff]
    %v1842 = vld [vmem:[#allocation7 + $0x18] sm:$0xff]
    %v1843 = vld [vmem:[#allocation7 + $0x20] sm:$0xff]
    %v1844 = vld [vmem:[#allocation7 + $0x28] sm:$0xff]
    %v1845 = vld [vmem:[#allocation7 + $0x30] sm:$0xff]
    %v1846 = vld [vmem:[#allocation7 + $0x38] sm:$0xff]
    %v1847 = vld [vmem:[#allocation7 + $0x40] sm:$0xff]
    %v1848 = vld [vmem:[#allocation7 + $0x48] sm:$0xff]
    %v1849 = vld [vmem:[#allocation7 + $0x50] sm:$0xff]
    %v1850 = vld [vmem:[#allocation7 + $0x58] sm:$0xff]
    %v1851 = vld [vmem:[#allocation7 + $0x60] sm:$0xff]
    %v1852 = vld [vmem:[#allocation7 + $0x68] sm:$0xff]
    %v1853 = vld [vmem:[#allocation7 + $0x70] sm:$0xff]
    %v1854 = vld [vmem:[#allocation7 + $0x78] sm:$0xff]
    %v1855 = vld [vmem:[#allocation7 + $0x80] sm:$0xff]
    %v1856 = vld [vmem:[#allocation7 + $0x88] sm:$0xff]
    %v1857 = vld [vmem:[#allocation7 + $0x90] sm:$0xff]
    %v1858 = vld [vmem:[#allocation7 + $0x98] sm:$0xff]
    %v1859 = vld [vmem:[#allocation7 + $0xa0] sm:$0xff]
    %v1860 = vld [vmem:[#allocation7 + $0xa8] sm:$0xff]
    %v1861 = vld [vmem:[#allocation7 + $0xb0] sm:$0xff]
    %v1862 = vld [vmem:[#allocation7 + $0xb8] sm:$0xff]
    %v1863 = vld [vmem:[#allocation7 + $0xc0] sm:$0xff]
    %v1864 = vld [vmem:[#allocation7 + $0xc8] sm:$0xff]
    %v1865 = vld [vmem:[#allocation7 + $0xd0] sm:$0xff]
    %v1866 = vld [vmem:[#allocation7 + $0xd8] sm:$0xff]
    %v1867 = vld [vmem:[#allocation7 + $0xe0] sm:$0xff]
    %v1868 = vld [vmem:[#allocation7 + $0xe8] sm:$0xff]
    %v1869 = vld [vmem:[#allocation7 + $0xf0] sm:$0xff]
    %v1870 = vld [vmem:[#allocation7 + $0xf8] sm:$0xff]
    %v1871 = vld [vmem:[#allocation7 + $0x100] sm:$0xff]
    %v1872 = vld [vmem:[#allocation7 + $0x108] sm:$0xff]
    %v1873 = vld [vmem:[#allocation7 + $0x110] sm:$0xff]
    %v1874 = vld [vmem:[#allocation7 + $0x118] sm:$0xff]
    %v1875 = vld [vmem:[#allocation7 + $0x120] sm:$0xff]
    %v1876 = vld [vmem:[#allocation7 + $0x128] sm:$0xff]
    %v1877 = vld [vmem:[#allocation7 + $0x130] sm:$0xff]
    %v1878 = vld [vmem:[#allocation7 + $0x138] sm:$0xff]
    %v1879 = vld [vmem:[#allocation7 + $0x140] sm:$0xff]
    %v1880 = vld [vmem:[#allocation7 + $0x148] sm:$0xff]
    %v1881 = vld [vmem:[#allocation7 + $0x150] sm:$0xff]
    %v1882 = vld [vmem:[#allocation7 + $0x158] sm:$0xff]
    %v1883 = vld [vmem:[#allocation7 + $0x160] sm:$0xff]
    %v1884 = vld [vmem:[#allocation7 + $0x168] sm:$0xff]
    %v1885 = vld [vmem:[#allocation7 + $0x170] sm:$0xff]
    %v1886 = vld [vmem:[#allocation7 + $0x178] sm:$0xff]
    %v1887 = vld [vmem:[#allocation7 + $0x180] sm:$0xff]
    %v1888 = vld [vmem:[#allocation7 + $0x188] sm:$0xff]
    %v1889 = vld [vmem:[#allocation7 + $0x190] sm:$0xff]
    %v1890 = vld [vmem:[#allocation7 + $0x198] sm:$0xff]
    %v1891 = vld [vmem:[#allocation7 + $0x1a0] sm:$0xff]
    %v1892 = vld [vmem:[#allocation7 + $0x1a8] sm:$0xff]
    %v1893 = vld [vmem:[#allocation7 + $0x1b0] sm:$0xff]
    %v1894 = vld [vmem:[#allocation7 + $0x1b8] sm:$0xff]
    %v1895 = vld [vmem:[#allocation7 + $0x1c0] sm:$0xff]
    %v1896 = vld [vmem:[#allocation7 + $0x1c8] sm:$0xff]
    %v1897 = vld [vmem:[#allocation7 + $0x1d0] sm:$0xff]
    %v1898 = vld [vmem:[#allocation7 + $0x1d8] sm:$0xff]
    %v1899 = vld [vmem:[#allocation7 + $0x1e0] sm:$0xff]
    %v1900 = vld [vmem:[#allocation7 + $0x1e8] sm:$0xff]
    %v1901 = vld [vmem:[#allocation7 + $0x1f0] sm:$0xff]
    %v1902 = vld [vmem:[#allocation7 + $0x1f8] sm:$0xff]
    %v1903 = vld [vmem:[#allocation7 + $0x200] sm:$0xff]
    %v1904 = vld [vmem:[#allocation7 + $0x208] sm:$0xff]
    %v1905 = vld [vmem:[#allocation7 + $0x210] sm:$0xff]
    %v1906 = vld [vmem:[#allocation7 + $0x218] sm:$0xff]
    %v1907 = vld [vmem:[#allocation7 + $0x220] sm:$0xff]
    %v1908 = vld [vmem:[#allocation7 + $0x228] sm:$0xff]
    %v1909 = vld [vmem:[#allocation7 + $0x230] sm:$0xff]
    %v1910 = vld [vmem:[#allocation7 + $0x238] sm:$0xff]
    %v1911 = vld [vmem:[#allocation7 + $0x240] sm:$0xff]
    %v1912 = vld [vmem:[#allocation7 + $0x248] sm:$0xff]
    %v1913 = vld [vmem:[#allocation7 + $0x250] sm:$0xff]
    %v1914 = vld [vmem:[#allocation7 + $0x258] sm:$0xff]
    %v1915 = vld [vmem:[#allocation7 + $0x260] sm:$0xff]
    %v1916 = vld [vmem:[#allocation7 + $0x268] sm:$0xff]
    %v1917 = vld [vmem:[#allocation7 + $0x270] sm:$0xff]
    %v1918 = vld [vmem:[#allocation7 + $0x278] sm:$0xff]
    %v1919 = vld [vmem:[#allocation7 + $0x280] sm:$0xff]
    %v1920 = vld [vmem:[#allocation7 + $0x288] sm:$0xff]
    %v1921 = vld [vmem:[#allocation7 + $0x290] sm:$0xff]
    %v1922 = vld [vmem:[#allocation7 + $0x298] sm:$0xff]
    %v1923 = vld [vmem:[#allocation7 + $0x2a0] sm:$0xff]
    %v1924 = vld [vmem:[#allocation7 + $0x2a8] sm:$0xff]
    %v1925 = vld [vmem:[#allocation7 + $0x2b0] sm:$0xff]
    %v1926 = vld [vmem:[#allocation7 + $0x2b8] sm:$0xff]
    %v1927 = vld [vmem:[#allocation7 + $0x2c0] sm:$0xff]
    %v1928 = vld [vmem:[#allocation7 + $0x2c8] sm:$0xff]
    %v1929 = vld [vmem:[#allocation7 + $0x2d0] sm:$0xff]
    %v1930 = vld [vmem:[#allocation7 + $0x2d8] sm:$0xff]
    %v1931 = vld [vmem:[#allocation7 + $0x2e0] sm:$0xff]
    %v1932 = vld [vmem:[#allocation7 + $0x2e8] sm:$0xff]
    %v1933 = vld [vmem:[#allocation7 + $0x2f0] sm:$0xff]
    %v1934 = vld [vmem:[#allocation7 + $0x2f8] sm:$0xff]
    %v1935 = vld [vmem:[#allocation7 + $0x300] sm:$0xff]
    %v1936 = vld [vmem:[#allocation7 + $0x308] sm:$0xff]
    %v1937 = vld [vmem:[#allocation7 + $0x310] sm:$0xff]
    %v1938 = vld [vmem:[#allocation7 + $0x318] sm:$0xff]
    %v1939 = vld [vmem:[#allocation7 + $0x320] sm:$0xff]
    %v1940 = vld [vmem:[#allocation7 + $0x328] sm:$0xff]
    %v1941 = vld [vmem:[#allocation7 + $0x330] sm:$0xff]
    %v1942 = vld [vmem:[#allocation7 + $0x338] sm:$0xff]
    %v1943 = vld [vmem:[#allocation7 + $0x340] sm:$0xff]
    %v1944 = vld [vmem:[#allocation7 + $0x348] sm:$0xff]
    %v1945 = vld [vmem:[#allocation7 + $0x350] sm:$0xff]
    %v1946 = vld [vmem:[#allocation7 + $0x358] sm:$0xff]
    %v1947 = vld [vmem:[#allocation7 + $0x360] sm:$0xff]
    %v1948 = vld [vmem:[#allocation7 + $0x368] sm:$0xff]
    %v1949 = vld [vmem:[#allocation7 + $0x370] sm:$0xff]
    %v1950 = vld [vmem:[#allocation7 + $0x378] sm:$0xff]
    %v1951 = vld [vmem:[#allocation7 + $0x380] sm:$0xff]
    %v1952 = vld [vmem:[#allocation7 + $0x388] sm:$0xff]
    %v1953 = vld [vmem:[#allocation7 + $0x390] sm:$0xff]
    %v1954 = vld [vmem:[#allocation7 + $0x398] sm:$0xff]
    %v1955 = vld [vmem:[#allocation7 + $0x3a0] sm:$0xff]
    %v1956 = vld [vmem:[#allocation7 + $0x3a8] sm:$0xff]
    %v1957 = vld [vmem:[#allocation7 + $0x3b0] sm:$0xff]
    %v1958 = vld [vmem:[#allocation7 + $0x3b8] sm:$0xff]
    %v1959 = vld [vmem:[#allocation7 + $0x3c0] sm:$0xff]
    %v1960 = vld [vmem:[#allocation7 + $0x3c8] sm:$0xff]
    %v1961 = vld [vmem:[#allocation7 + $0x3d0] sm:$0xff]
    %v1962 = vld [vmem:[#allocation7 + $0x3d8] sm:$0xff]
    %v1963 = vld [vmem:[#allocation7 + $0x3e0] sm:$0xff]
    %v1964 = vld [vmem:[#allocation7 + $0x3e8] sm:$0xff]
    %v1965 = vld [vmem:[#allocation7 + $0x3f0] sm:$0xff]
    %v1966 = vld [vmem:[#allocation7 + $0x3f8] sm:$0xff]
    %v1967 = vld [vmem:[#allocation7 + $0x400] sm:$0xff]
    %v1968 = vld [vmem:[#allocation7 + $0x408] sm:$0xff]
    %v1969 = vld [vmem:[#allocation7 + $0x410] sm:$0xff]
    %v1970 = vld [vmem:[#allocation7 + $0x418] sm:$0xff]
    %v1971 = vld [vmem:[#allocation7 + $0x420] sm:$0xff]
    %v1972 = vld [vmem:[#allocation7 + $0x428] sm:$0xff]
    %v1973 = vld [vmem:[#allocation7 + $0x430] sm:$0xff]
    %v1974 = vld [vmem:[#allocation7 + $0x438] sm:$0xff]
    %v1975 = vld [vmem:[#allocation7 + $0x440] sm:$0xff]
    %v1976 = vld [vmem:[#allocation7 + $0x448] sm:$0xff]
    %v1977 = vld [vmem:[#allocation7 + $0x450] sm:$0xff]
    %v1978 = vld [vmem:[#allocation7 + $0x458] sm:$0xff]
    %v1979 = vld [vmem:[#allocation7 + $0x460] sm:$0xff]
    %v1980 = vld [vmem:[#allocation7 + $0x468] sm:$0xff]
    %v1981 = vld [vmem:[#allocation7 + $0x470] sm:$0xff]
    %v1982 = vld [vmem:[#allocation7 + $0x478] sm:$0xff]
    %v1983 = vld [vmem:[#allocation7 + $0x480] sm:$0xff]
    %v1984 = vld [vmem:[#allocation7 + $0x488] sm:$0xff]
    %v1985 = vld [vmem:[#allocation7 + $0x490] sm:$0xff]
    %v1986 = vld [vmem:[#allocation7 + $0x498] sm:$0xff]
    %v1987 = vld [vmem:[#allocation7 + $0x4a0] sm:$0xff]
    %v1988 = vld [vmem:[#allocation7 + $0x4a8] sm:$0xff]
    %v1989 = vld [vmem:[#allocation7 + $0x4b0] sm:$0xff]
    %v1990 = vld [vmem:[#allocation7 + $0x4b8] sm:$0xff]
    %v1991 = vld [vmem:[#allocation7 + $0x4c0] sm:$0xff]
    %v1992 = vld [vmem:[#allocation7 + $0x4c8] sm:$0xff]
    %v1993 = vld [vmem:[#allocation7 + $0x4d0] sm:$0xff]
    %v1994 = vld [vmem:[#allocation7 + $0x4d8] sm:$0xff]
    %v1995 = vld [vmem:[#allocation7 + $0x4e0] sm:$0xff]
    %v1996 = vld [vmem:[#allocation7 + $0x4e8] sm:$0xff]
    %v1997 = vld [vmem:[#allocation7 + $0x4f0] sm:$0xff]
    %v1998 = vld [vmem:[#allocation7 + $0x4f8] sm:$0xff]
    %v1999 = vld [vmem:[#allocation7 + $0x500] sm:$0xff]
    %v2000 = vld [vmem:[#allocation7 + $0x508] sm:$0xff]
    %v2001 = vld [vmem:[#allocation7 + $0x510] sm:$0xff]
    %v2002 = vld [vmem:[#allocation7 + $0x518] sm:$0xff]
    %v2003 = vld [vmem:[#allocation7 + $0x520] sm:$0xff]
    %v2004 = vld [vmem:[#allocation7 + $0x528] sm:$0xff]
    %v2005 = vld [vmem:[#allocation7 + $0x530] sm:$0xff]
    %v2006 = vld [vmem:[#allocation7 + $0x538] sm:$0xff]
    %v2007 = vld [vmem:[#allocation7 + $0x540] sm:$0xff]
    %v2008 = vld [vmem:[#allocation7 + $0x548] sm:$0xff]
    %v2009 = vld [vmem:[#allocation7 + $0x550] sm:$0xff]
    %v2010 = vld [vmem:[#allocation7 + $0x558] sm:$0xff]
    %v2011 = vld [vmem:[#allocation7 + $0x560] sm:$0xff]
    %v2012 = vld [vmem:[#allocation7 + $0x568] sm:$0xff]
    %v2013 = vld [vmem:[#allocation7 + $0x570] sm:$0xff]
    %v2014 = vld [vmem:[#allocation7 + $0x578] sm:$0xff]
    %v2015 = vld [vmem:[#allocation7 + $0x580] sm:$0xff]
    %v2016 = vld [vmem:[#allocation7 + $0x588] sm:$0xff]
    %v2017 = vld [vmem:[#allocation7 + $0x590] sm:$0xff]
    %v2018 = vld [vmem:[#allocation7 + $0x598] sm:$0xff]
    %v2019 = vld [vmem:[#allocation7 + $0x5a0] sm:$0xff]
    %v2020 = vld [vmem:[#allocation7 + $0x5a8] sm:$0xff]
    %v2021 = vld [vmem:[#allocation7 + $0x5b0] sm:$0xff]
    %v2022 = vld [vmem:[#allocation7 + $0x5b8] sm:$0xff]
    %v2023 = vld [vmem:[#allocation7 + $0x5c0] sm:$0xff]
    %v2024 = vld [vmem:[#allocation7 + $0x5c8] sm:$0xff]
    %v2025 = vld [vmem:[#allocation7 + $0x5d0] sm:$0xff]
    %v2026 = vld [vmem:[#allocation7 + $0x5d8] sm:$0xff]
    %v2027 = vld [vmem:[#allocation7 + $0x5e0] sm:$0xff]
    %v2028 = vld [vmem:[#allocation7 + $0x5e8] sm:$0xff]
    %v2029 = vld [vmem:[#allocation7 + $0x5f0] sm:$0xff]
    %v2030 = vld [vmem:[#allocation7 + $0x5f8] sm:$0xff]
    %v2031 = vld [vmem:[#allocation7 + $0x600] sm:$0xff]
    %v2032 = vld [vmem:[#allocation7 + $0x608] sm:$0xff]
    %v2033 = vld [vmem:[#allocation7 + $0x610] sm:$0xff]
    %v2034 = vld [vmem:[#allocation7 + $0x618] sm:$0xff]
    %v2035 = vld [vmem:[#allocation7 + $0x620] sm:$0xff]
    %v2036 = vld [vmem:[#allocation7 + $0x628] sm:$0xff]
    %v2037 = vld [vmem:[#allocation7 + $0x630] sm:$0xff]
    %v2038 = vld [vmem:[#allocation7 + $0x638] sm:$0xff]
    %v2039 = vld [vmem:[#allocation7 + $0x640] sm:$0xff]
    %v2040 = vld [vmem:[#allocation7 + $0x648] sm:$0xff]
    %v2041 = vld [vmem:[#allocation7 + $0x650] sm:$0xff]
    %v2042 = vld [vmem:[#allocation7 + $0x658] sm:$0xff]
    %v2043 = vld [vmem:[#allocation7 + $0x660] sm:$0xff]
    %v2044 = vld [vmem:[#allocation7 + $0x668] sm:$0xff]
    %v2045 = vld [vmem:[#allocation7 + $0x670] sm:$0xff]
    %v2046 = vld [vmem:[#allocation7 + $0x678] sm:$0xff]
    %v2047 = vld [vmem:[#allocation7 + $0x680] sm:$0xff]
    %v2048 = vld [vmem:[#allocation7 + $0x688] sm:$0xff]
    %v2049 = vld [vmem:[#allocation7 + $0x690] sm:$0xff]
    %v2050 = vld [vmem:[#allocation7 + $0x698] sm:$0xff]
    %v2051 = vld [vmem:[#allocation7 + $0x6a0] sm:$0xff]
    %v2052 = vld [vmem:[#allocation7 + $0x6a8] sm:$0xff]
    %v2053 = vld [vmem:[#allocation7 + $0x6b0] sm:$0xff]
    %v2054 = vld [vmem:[#allocation7 + $0x6b8] sm:$0xff]
    %v2055 = vld [vmem:[#allocation7 + $0x6c0] sm:$0xff]
    %v2056 = vld [vmem:[#allocation7 + $0x6c8] sm:$0xff]
    %v2057 = vld [vmem:[#allocation7 + $0x6d0] sm:$0xff]
    %v2058 = vld [vmem:[#allocation7 + $0x6d8] sm:$0xff]
    %v2059 = vld [vmem:[#allocation7 + $0x6e0] sm:$0xff]
    %v2060 = vld [vmem:[#allocation7 + $0x6e8] sm:$0xff]
    %v2061 = vld [vmem:[#allocation7 + $0x6f0] sm:$0xff]
    %v2062 = vld [vmem:[#allocation7 + $0x6f8] sm:$0xff]
    %v2063 = vld [vmem:[#allocation7 + $0x700] sm:$0xff]
    %v2064 = vld [vmem:[#allocation7 + $0x708] sm:$0xff]
    %v2065 = vld [vmem:[#allocation7 + $0x710] sm:$0xff]
    %v2066 = vld [vmem:[#allocation7 + $0x718] sm:$0xff]
    %v2067 = vld [vmem:[#allocation7 + $0x720] sm:$0xff]
    %v2068 = vld [vmem:[#allocation7 + $0x728] sm:$0xff]
    %v2069 = vld [vmem:[#allocation7 + $0x730] sm:$0xff]
    %v2070 = vld [vmem:[#allocation7 + $0x738] sm:$0xff]
    %v2071 = vld [vmem:[#allocation7 + $0x740] sm:$0xff]
    %v2072 = vld [vmem:[#allocation7 + $0x748] sm:$0xff]
    %v2073 = vld [vmem:[#allocation7 + $0x750] sm:$0xff]
    %v2074 = vld [vmem:[#allocation7 + $0x758] sm:$0xff]
    %v2075 = vld [vmem:[#allocation7 + $0x760] sm:$0xff]
    %v2076 = vld [vmem:[#allocation7 + $0x768] sm:$0xff]
    %v2077 = vld [vmem:[#allocation7 + $0x770] sm:$0xff]
    %v2078 = vld [vmem:[#allocation7 + $0x778] sm:$0xff]
    %v2079 = vld [vmem:[#allocation7 + $0x780] sm:$0xff]
    %v2080 = vld [vmem:[#allocation7 + $0x788] sm:$0xff]
    %v2081 = vld [vmem:[#allocation7 + $0x790] sm:$0xff]
    %v2082 = vld [vmem:[#allocation7 + $0x798] sm:$0xff]
    %v2083 = vld [vmem:[#allocation7 + $0x7a0] sm:$0xff]
    %v2084 = vld [vmem:[#allocation7 + $0x7a8] sm:$0xff]
    %v2085 = vld [vmem:[#allocation7 + $0x7b0] sm:$0xff]
    %v2086 = vld [vmem:[#allocation7 + $0x7b8] sm:$0xff]
    %v2087 = vld [vmem:[#allocation7 + $0x7c0] sm:$0xff]
    %v2088 = vld [vmem:[#allocation7 + $0x7c8] sm:$0xff]
    %v2089 = vld [vmem:[#allocation7 + $0x7d0] sm:$0xff]
    %v2090 = vld [vmem:[#allocation7 + $0x7d8] sm:$0xff]
    %v2091 = vld [vmem:[#allocation7 + $0x7e0] sm:$0xff]
    %v2092 = vld [vmem:[#allocation7 + $0x7e8] sm:$0xff]
    %v2093 = vld [vmem:[#allocation7 + $0x7f0] sm:$0xff]
    %v2094 = vld [vmem:[#allocation7 + $0x7f8] sm:$0xff]
    %v2095 = vld [vmem:[#allocation7 + $0x800] sm:$0xff]
    %v2096 = vld [vmem:[#allocation7 + $0x808] sm:$0xff]
    %v2097 = vld [vmem:[#allocation7 + $0x810] sm:$0xff]
    %v2098 = vld [vmem:[#allocation7 + $0x818] sm:$0xff]
    %v2099 = vld [vmem:[#allocation7 + $0x820] sm:$0xff]
    %v2100 = vld [vmem:[#allocation7 + $0x828] sm:$0xff]
    %v2101 = vld [vmem:[#allocation7 + $0x830] sm:$0xff]
    %v2102 = vld [vmem:[#allocation7 + $0x838] sm:$0xff]
    %v2103 = vld [vmem:[#allocation7 + $0x840] sm:$0xff]
    %v2104 = vld [vmem:[#allocation7 + $0x848] sm:$0xff]
    %v2105 = vld [vmem:[#allocation7 + $0x850] sm:$0xff]
    %v2106 = vld [vmem:[#allocation7 + $0x858] sm:$0xff]
    %v2107 = vld [vmem:[#allocation7 + $0x860] sm:$0xff]
    %v2108 = vld [vmem:[#allocation7 + $0x868] sm:$0xff]
    %v2109 = vld [vmem:[#allocation7 + $0x870] sm:$0xff]
    %v2110 = vld [vmem:[#allocation7 + $0x878] sm:$0xff]
    %v2111 = vld [vmem:[#allocation7 + $0x880] sm:$0xff]
    %v2112 = vld [vmem:[#allocation7 + $0x888] sm:$0xff]
    %v2113 = vld [vmem:[#allocation7 + $0x890] sm:$0xff]
    %v2114 = vld [vmem:[#allocation7 + $0x898] sm:$0xff]
    %v2115 = vld [vmem:[#allocation7 + $0x8a0] sm:$0xff]
    %v2116 = vld [vmem:[#allocation7 + $0x8a8] sm:$0xff]
    %v2117 = vld [vmem:[#allocation7 + $0x8b0] sm:$0xff]
    %v2118 = vld [vmem:[#allocation7 + $0x8b8] sm:$0xff]
    %v2119 = vld [vmem:[#allocation7 + $0x8c0] sm:$0xff]
    %v2120 = vld [vmem:[#allocation7 + $0x8c8] sm:$0xff]
    %v2121 = vld [vmem:[#allocation7 + $0x8d0] sm:$0xff]
    %v2122 = vld [vmem:[#allocation7 + $0x8d8] sm:$0xff]
    %v2123 = vld [vmem:[#allocation7 + $0x8e0] sm:$0xff]
    %v2124 = vld [vmem:[#allocation7 + $0x8e8] sm:$0xff]
    %v2125 = vld [vmem:[#allocation7 + $0x8f0] sm:$0xff]
    %v2126 = vld [vmem:[#allocation7 + $0x8f8] sm:$0xff]
    %v2127 = vld [vmem:[#allocation7 + $0x900] sm:$0xff]
    %v2128 = vld [vmem:[#allocation7 + $0x908] sm:$0xff]
    %v2129 = vld [vmem:[#allocation7 + $0x910] sm:$0xff]
    %v2130 = vld [vmem:[#allocation7 + $0x918] sm:$0xff]
    %v2131 = vld [vmem:[#allocation7 + $0x920] sm:$0xff]
    %v2132 = vld [vmem:[#allocation7 + $0x928] sm:$0xff]
    %v2133 = vld [vmem:[#allocation7 + $0x930] sm:$0xff]
    %v2134 = vld [vmem:[#allocation7 + $0x938] sm:$0xff]
    %v2135 = vld [vmem:[#allocation7 + $0x940] sm:$0xff]
    %v2136 = vld [vmem:[#allocation7 + $0x948] sm:$0xff]
    %v2137 = vld [vmem:[#allocation7 + $0x950] sm:$0xff]
    %v2138 = vld [vmem:[#allocation7 + $0x958] sm:$0xff]
    %v2139 = vld [vmem:[#allocation7 + $0x960] sm:$0xff]
    %v2140 = vld [vmem:[#allocation7 + $0x968] sm:$0xff]
    %v2141 = vld [vmem:[#allocation7 + $0x970] sm:$0xff]
    %v2142 = vld [vmem:[#allocation7 + $0x978] sm:$0xff]
    %v2143 = vld [vmem:[#allocation7 + $0x980] sm:$0xff]
    %v2144 = vld [vmem:[#allocation7 + $0x988] sm:$0xff]
    %v2145 = vld [vmem:[#allocation7 + $0x990] sm:$0xff]
    %v2146 = vld [vmem:[#allocation7 + $0x998] sm:$0xff]
    %v2147 = vld [vmem:[#allocation7 + $0x9a0] sm:$0xff]
    %v2148 = vld [vmem:[#allocation7 + $0x9a8] sm:$0xff]
    %v2149 = vld [vmem:[#allocation7 + $0x9b0] sm:$0xff]
    %v2150 = vld [vmem:[#allocation7 + $0x9b8] sm:$0xff]
    %v2151 = vld [vmem:[#allocation7 + $0x9c0] sm:$0xff]
    %v2152 = vld [vmem:[#allocation7 + $0x9c8] sm:$0xff]
    %v2153 = vld [vmem:[#allocation7 + $0x9d0] sm:$0xff]
    %v2154 = vld [vmem:[#allocation7 + $0x9d8] sm:$0xff]
    %v2155 = vld [vmem:[#allocation7 + $0x9e0] sm:$0xff]
    %v2156 = vld [vmem:[#allocation7 + $0x9e8] sm:$0xff]
    %v2157 = vld [vmem:[#allocation7 + $0x9f0] sm:$0xff]
    %v2158 = vld [vmem:[#allocation7 + $0x9f8] sm:$0xff]
    %v2159 = vld [vmem:[#allocation7 + $0xa00] sm:$0xff]
    %v2160 = vld [vmem:[#allocation7 + $0xa08] sm:$0xff]
    %v2161 = vld [vmem:[#allocation7 + $0xa10] sm:$0xff]
    %v2162 = vld [vmem:[#allocation7 + $0xa18] sm:$0xff]
    %v2163 = vld [vmem:[#allocation7 + $0xa20] sm:$0xff]
    %v2164 = vld [vmem:[#allocation7 + $0xa28] sm:$0xff]
    %v2165 = vld [vmem:[#allocation7 + $0xa30] sm:$0xff]
    %v2166 = vld [vmem:[#allocation7 + $0xa38] sm:$0xff]
    %v2167 = vld [vmem:[#allocation7 + $0xa40] sm:$0xff]
    %v2168 = vld [vmem:[#allocation7 + $0xa48] sm:$0xff]
    %v2169 = vld [vmem:[#allocation7 + $0xa50] sm:$0xff]
    %v2170 = vld [vmem:[#allocation7 + $0xa58] sm:$0xff]
    %v2171 = vld [vmem:[#allocation7 + $0xa60] sm:$0xff]
    %v2172 = vld [vmem:[#allocation7 + $0xa68] sm:$0xff]
    %v2173 = vld [vmem:[#allocation7 + $0xa70] sm:$0xff]
    %v2174 = vld [vmem:[#allocation7 + $0xa78] sm:$0xff]
    %v2175 = vld [vmem:[#allocation7 + $0xa80] sm:$0xff]
    %v2176 = vld [vmem:[#allocation7 + $0xa88] sm:$0xff]
    %v2177 = vld [vmem:[#allocation7 + $0xa90] sm:$0xff]
    %v2178 = vld [vmem:[#allocation7 + $0xa98] sm:$0xff]
    %v2179 = vld [vmem:[#allocation7 + $0xaa0] sm:$0xff]
    %v2180 = vld [vmem:[#allocation7 + $0xaa8] sm:$0xff]
    %v2181 = vld [vmem:[#allocation7 + $0xab0] sm:$0xff]
    %v2182 = vld [vmem:[#allocation7 + $0xab8] sm:$0xff]
    %v2183 = vld [vmem:[#allocation7 + $0xac0] sm:$0xff]
    %v2184 = vld [vmem:[#allocation7 + $0xac8] sm:$0xff]
    %v2185 = vld [vmem:[#allocation7 + $0xad0] sm:$0xff]
    %v2186 = vld [vmem:[#allocation7 + $0xad8] sm:$0xff]
    %v2187 = vld [vmem:[#allocation7 + $0xae0] sm:$0xff]
    %v2188 = vld [vmem:[#allocation7 + $0xae8] sm:$0xff]
    %v2189 = vld [vmem:[#allocation7 + $0xaf0] sm:$0xff]
    %v2190 = vld [vmem:[#allocation7 + $0xaf8] sm:$0xff]
    %v2191 = vld [vmem:[#allocation7 + $0xb00] sm:$0xff]
    %v2192 = vld [vmem:[#allocation7 + $0xb08] sm:$0xff]
    %v2193 = vld [vmem:[#allocation7 + $0xb10] sm:$0xff]
    %v2194 = vld [vmem:[#allocation7 + $0xb18] sm:$0xff]
    %v2195 = vld [vmem:[#allocation7 + $0xb20] sm:$0xff]
    %v2196 = vld [vmem:[#allocation7 + $0xb28] sm:$0xff]
    %v2197 = vld [vmem:[#allocation7 + $0xb30] sm:$0xff]
    %v2198 = vld [vmem:[#allocation7 + $0xb38] sm:$0xff]
    %v2199 = vld [vmem:[#allocation7 + $0xb40] sm:$0xff]
    %v2200 = vld [vmem:[#allocation7 + $0xb48] sm:$0xff]
    %v2201 = vld [vmem:[#allocation7 + $0xb50] sm:$0xff]
    %v2202 = vld [vmem:[#allocation7 + $0xb58] sm:$0xff]
    %v2203 = vld [vmem:[#allocation7 + $0xb60] sm:$0xff]
    %v2204 = vld [vmem:[#allocation7 + $0xb68] sm:$0xff]
    %v2205 = vld [vmem:[#allocation7 + $0xb70] sm:$0xff]
    %v2206 = vld [vmem:[#allocation7 + $0xb78] sm:$0xff]
    %v2207 = vld [vmem:[#allocation7 + $0xb80] sm:$0xff]
    %v2208 = vld [vmem:[#allocation7 + $0xb88] sm:$0xff]
    %v2209 = vld [vmem:[#allocation7 + $0xb90] sm:$0xff]
    %v2210 = vld [vmem:[#allocation7 + $0xb98] sm:$0xff]
    %v2211 = vld [vmem:[#allocation7 + $0xba0] sm:$0xff]
    %v2212 = vld [vmem:[#allocation7 + $0xba8] sm:$0xff]
    %v2213 = vld [vmem:[#allocation7 + $0xbb0] sm:$0xff]
    %v2214 = vld [vmem:[#allocation7 + $0xbb8] sm:$0xff]
    %v2215 = vld [vmem:[#allocation7 + $0xbc0] sm:$0xff]
    %v2216 = vld [vmem:[#allocation7 + $0xbc8] sm:$0xff]
    %v2217 = vld [vmem:[#allocation7 + $0xbd0] sm:$0xff]
    %v2218 = vld [vmem:[#allocation7 + $0xbd8] sm:$0xff]
    %v2219 = vld [vmem:[#allocation7 + $0xbe0] sm:$0xff]
    %v2220 = vld [vmem:[#allocation7 + $0xbe8] sm:$0xff]
    %v2221 = vld [vmem:[#allocation7 + $0xbf0] sm:$0xff]
    %v2222 = vld [vmem:[#allocation7 + $0xbf8] sm:$0xff]
    %2223 = vmatprep.subr.mxu0 %v1930
    %2224 = vmatpush1.msra.mxu0 %v1929
    %2225 = vmatprep.subr.mxu0 %v1924
    %2226 = vmatpush1.msra.mxu0 %v1923
    %2227 = vmatprep.subr.mxu0 %v1918
    %2228 = vmatpush1.msra.mxu0 %v1917
    %2229 = vmatprep.subr.mxu0 %v1912
    %2230 = vmatpush1.msra.mxu0 %v1911
    %2231 = vmatprep.subr.mxu0 %v1906
    %2232 = vmatpush1.msra.mxu0 %v1905
    %2233 = vmatprep.subr.mxu0 %v1900
    %2234 = vmatpush1.msra.mxu0 %v1899
    %2235 = vmatprep.subr.mxu0 %v1894
    %2236 = vmatpush1.msra.mxu0 %v1893
    %2237 = vmatprep.subr.mxu0 %v1888
    %2238 = vmatpush1.msra.mxu0 %v1887
    %2239 = vmatprep.subr.mxu0 %v1882
    %2240 = vmatpush1.msra.mxu0 %v1881
    %2241 = vmatprep.subr.mxu0 %v1876
    %2242 = vmatpush1.msra.mxu0 %v1875
    %2243 = vmatprep.subr.mxu0 %v1870
    %2244 = vmatpush1.msra.mxu0 %v1869
    %2245 = vmatprep.subr.mxu0 %v1864
    %2246 = vmatpush1.msra.mxu0 %v1863
    %2247 = vmatprep.subr.mxu0 %v1858
    %2248 = vmatpush1.msra.mxu0 %v1857
    %2249 = vmatprep.subr.mxu0 %v1852
    %2250 = vmatpush1.msra.mxu0 %v1851
    %2251 = vmatprep.subr.mxu0 %v1846
    %2252 = vmatpush1.msra.mxu0 %v1845
    %2253 = vmatprep.subr.mxu0 %v1840
    %2254 = vmatpush1.msra.mxu0 %v1839
    %2255 = vmatprep.subr.mxu0 %v2026
    %2256 = vmatpush2.msra.mxu0 %v2025
    %2257 = vmatprep.subr.mxu0 %v2020
    %2258 = vmatpush2.msra.mxu0 %v2019
    %2259 = vmatprep.subr.mxu0 %v2014
    %2260 = vmatpush2.msra.mxu0 %v2013
    %2261 = vmatprep.subr.mxu0 %v2008
    %2262 = vmatpush2.msra.mxu0 %v2007
    %2263 = vmatprep.subr.mxu0 %v2002
    %2264 = vmatpush2.msra.mxu0 %v2001
    %2265 = vmatprep.subr.mxu0 %v1996
    %2266 = vmatpush2.msra.mxu0 %v1995
    %2267 = vmatprep.subr.mxu0 %v1990
    %2268 = vmatpush2.msra.mxu0 %v1989
    %2269 = vmatprep.subr.mxu0 %v1984
    %2270 = vmatpush2.msra.mxu0 %v1983
    %2271 = vmatprep.subr.mxu0 %v1978
    %2272 = vmatpush2.msra.mxu0 %v1977
    %2273 = vmatprep.subr.mxu0 %v1972
    %2274 = vmatpush2.msra.mxu0 %v1971
    %2275 = vmatprep.subr.mxu0 %v1966
    %2276 = vmatpush2.msra.mxu0 %v1965
    %2277 = vmatprep.subr.mxu0 %v1960
    %2278 = vmatpush2.msra.mxu0 %v1959
    %2279 = vmatprep.subr.mxu0 %v1954
    %2280 = vmatpush2.msra.mxu0 %v1953
    %2281 = vmatprep.subr.mxu0 %v1948
    %2282 = vmatpush2.msra.mxu0 %v1947
    %2283 = vmatprep.subr.mxu0 %v1942
    %2284 = vmatpush2.msra.mxu0 %v1941
    %2285 = vmatprep.subr.mxu0 %v1936
    %2286 = vmatpush2.msra.mxu0 %v1935
    %2287 = vmatprep.mubr.f32.mxu0 %v1836
    %2288 = vmatmul.mubr.f32.gmra.mxu0 %v1835
    %v2289 = vpop.f32.mrf.mxu0
    %v2290 = vadd.f32 0.0, %v2289
    %v2291 = vpop.f32.mrf.mxu0
    %v2292 = vadd.f32 0.0, %v2291
    %2293 = vdwg.mxu0
    %2294 = vmatprep.subr.mxu0 %v2122
    %2295 = vmatpush1.msra.mxu0 %v2121
    %2296 = vmatprep.subr.mxu0 %v2116
    %2297 = vmatpush1.msra.mxu0 %v2115
    %2298 = vmatprep.subr.mxu0 %v2110
    %2299 = vmatpush1.msra.mxu0 %v2109
    %2300 = vmatprep.subr.mxu0 %v2104
    %2301 = vmatpush1.msra.mxu0 %v2103
    %2302 = vmatprep.subr.mxu0 %v2098
    %2303 = vmatpush1.msra.mxu0 %v2097
    %2304 = vmatprep.subr.mxu0 %v2092
    %2305 = vmatpush1.msra.mxu0 %v2091
    %2306 = vmatprep.subr.mxu0 %v2086
    %2307 = vmatpush1.msra.mxu0 %v2085
    %2308 = vmatprep.subr.mxu0 %v2080
    %2309 = vmatpush1.msra.mxu0 %v2079
    %2310 = vmatprep.subr.mxu0 %v2074
    %2311 = vmatpush1.msra.mxu0 %v2073
    %2312 = vmatprep.subr.mxu0 %v2068
    %2313 = vmatpush1.msra.mxu0 %v2067
    %2314 = vmatprep.subr.mxu0 %v2062
    %2315 = vmatpush1.msra.mxu0 %v2061
    %2316 = vmatprep.subr.mxu0 %v2056
    %2317 = vmatpush1.msra.mxu0 %v2055
    %2318 = vmatprep.subr.mxu0 %v2050
    %2319 = vmatpush1.msra.mxu0 %v2049
    %2320 = vmatprep.subr.mxu0 %v2044
    %2321 = vmatpush1.msra.mxu0 %v2043
    %2322 = vmatprep.subr.mxu0 %v2038
    %2323 = vmatpush1.msra.mxu0 %v2037
    %2324 = vmatprep.subr.mxu0 %v2032
    %2325 = vmatpush1.msra.mxu0 %v2031
    %2326 = vmatprep.subr.mxu0 %v2218
    %2327 = vmatpush2.msra.mxu0 %v2217
    %2328 = vmatprep.subr.mxu0 %v2212
    %2329 = vmatpush2.msra.mxu0 %v2211
    %2330 = vmatprep.subr.mxu0 %v2206
    %2331 = vmatpush2.msra.mxu0 %v2205
    %2332 = vmatprep.subr.mxu0 %v2200
    %2333 = vmatpush2.msra.mxu0 %v2199
    %2334 = vmatprep.subr.mxu0 %v2194
    %2335 = vmatpush2.msra.mxu0 %v2193
    %2336 = vmatprep.subr.mxu0 %v2188
    %2337 = vmatpush2.msra.mxu0 %v2187
    %2338 = vmatprep.subr.mxu0 %v2182
    %2339 = vmatpush2.msra.mxu0 %v2181
    %2340 = vmatprep.subr.mxu0 %v2176
    %2341 = vmatpush2.msra.mxu0 %v2175
    %2342 = vmatprep.subr.mxu0 %v2170
    %2343 = vmatpush2.msra.mxu0 %v2169
    %2344 = vmatprep.subr.mxu0 %v2164
    %2345 = vmatpush2.msra.mxu0 %v2163
    %2346 = vmatprep.subr.mxu0 %v2158
    %2347 = vmatpush2.msra.mxu0 %v2157
    %2348 = vmatprep.subr.mxu0 %v2152
    %2349 = vmatpush2.msra.mxu0 %v2151
    %2350 = vmatprep.subr.mxu0 %v2146
    %2351 = vmatpush2.msra.mxu0 %v2145
    %2352 = vmatprep.subr.mxu0 %v2140
    %2353 = vmatpush2.msra.mxu0 %v2139
    %2354 = vmatprep.subr.mxu0 %v2134
    %2355 = vmatpush2.msra.mxu0 %v2133
    %2356 = vmatprep.subr.mxu0 %v2128
    %2357 = vmatpush2.msra.mxu0 %v2127
    %2358 = vmatprep.mubr.f32.mxu0 %v1838
    %2359 = vmatmul.mubr.f32.gmra.mxu0 %v1837
    %v2360 = vpop.f32.mrf.mxu0
    %v2361 = vadd.f32 %v2290, %v2360
    %v2362 = vpop.f32.mrf.mxu0
    %v2363 = vadd.f32 %v2292, %v2362
    %2364 = vdwg.mxu0
    %2365 = vmatprep.subr.mxu0 %v1932
    %2366 = vmatpush1.msra.mxu0 %v1931
    %2367 = vmatprep.subr.mxu0 %v1926
    %2368 = vmatpush1.msra.mxu0 %v1925
    %2369 = vmatprep.subr.mxu0 %v1920
    %2370 = vmatpush1.msra.mxu0 %v1919
    %2371 = vmatprep.subr.mxu0 %v1914
    %2372 = vmatpush1.msra.mxu0 %v1913
    %2373 = vmatprep.subr.mxu0 %v1908
    %2374 = vmatpush1.msra.mxu0 %v1907
    %2375 = vmatprep.subr.mxu0 %v1902
    %2376 = vmatpush1.msra.mxu0 %v1901
    %2377 = vmatprep.subr.mxu0 %v1896
    %2378 = vmatpush1.msra.mxu0 %v1895
    %2379 = vmatprep.subr.mxu0 %v1890
    %2380 = vmatpush1.msra.mxu0 %v1889
    %2381 = vmatprep.subr.mxu0 %v1884
    %2382 = vmatpush1.msra.mxu0 %v1883
    %2383 = vmatprep.subr.mxu0 %v1878
    %2384 = vmatpush1.msra.mxu0 %v1877
    %2385 = vmatprep.subr.mxu0 %v1872
    %2386 = vmatpush1.msra.mxu0 %v1871
    %2387 = vmatprep.subr.mxu0 %v1866
    %2388 = vmatpush1.msra.mxu0 %v1865
    %2389 = vmatprep.subr.mxu0 %v1860
    %2390 = vmatpush1.msra.mxu0 %v1859
    %2391 = vmatprep.subr.mxu0 %v1854
    %2392 = vmatpush1.msra.mxu0 %v1853
    %2393 = vmatprep.subr.mxu0 %v1848
    %2394 = vmatpush1.msra.mxu0 %v1847
    %2395 = vmatprep.subr.mxu0 %v1842
    %2396 = vmatpush1.msra.mxu0 %v1841
    %2397 = vmatprep.subr.mxu0 %v2028
    %2398 = vmatpush2.msra.mxu0 %v2027
    %2399 = vmatprep.subr.mxu0 %v2022
    %2400 = vmatpush2.msra.mxu0 %v2021
    %2401 = vmatprep.subr.mxu0 %v2016
    %2402 = vmatpush2.msra.mxu0 %v2015
    %2403 = vmatprep.subr.mxu0 %v2010
    %2404 = vmatpush2.msra.mxu0 %v2009
    %2405 = vmatprep.subr.mxu0 %v2004
    %2406 = vmatpush2.msra.mxu0 %v2003
    %2407 = vmatprep.subr.mxu0 %v1998
    %2408 = vmatpush2.msra.mxu0 %v1997
    %2409 = vmatprep.subr.mxu0 %v1992
    %2410 = vmatpush2.msra.mxu0 %v1991
    %2411 = vmatprep.subr.mxu0 %v1986
    %2412 = vmatpush2.msra.mxu0 %v1985
    %2413 = vmatprep.subr.mxu0 %v1980
    %2414 = vmatpush2.msra.mxu0 %v1979
    %2415 = vmatprep.subr.mxu0 %v1974
    %2416 = vmatpush2.msra.mxu0 %v1973
    %2417 = vmatprep.subr.mxu0 %v1968
    %2418 = vmatpush2.msra.mxu0 %v1967
    %2419 = vmatprep.subr.mxu0 %v1962
    %2420 = vmatpush2.msra.mxu0 %v1961
    %2421 = vmatprep.subr.mxu0 %v1956
    %2422 = vmatpush2.msra.mxu0 %v1955
    %2423 = vmatprep.subr.mxu0 %v1950
    %2424 = vmatpush2.msra.mxu0 %v1949
    %2425 = vmatprep.subr.mxu0 %v1944
    %2426 = vmatpush2.msra.mxu0 %v1943
    %2427 = vmatprep.subr.mxu0 %v1938
    %2428 = vmatpush2.msra.mxu0 %v1937
    %2429 = vmatprep.mubr.f32.mxu0 %v1836
    %2430 = vmatmul.mubr.f32.gmra.mxu0 %v1835
    %v2431 = vpop.f32.mrf.mxu0
    %v2432 = vadd.f32 0.0, %v2431
    %v2433 = vpop.f32.mrf.mxu0
    %v2434 = vadd.f32 0.0, %v2433
    %2435 = vdwg.mxu0
    %2436 = vmatprep.subr.mxu0 %v2124
    %2437 = vmatpush1.msra.mxu0 %v2123
    %2438 = vmatprep.subr.mxu0 %v2118
    %2439 = vmatpush1.msra.mxu0 %v2117
    %2440 = vmatprep.subr.mxu0 %v2112
    %2441 = vmatpush1.msra.mxu0 %v2111
    %2442 = vmatprep.subr.mxu0 %v2106
    %2443 = vmatpush1.msra.mxu0 %v2105
    %2444 = vmatprep.subr.mxu0 %v2100
    %2445 = vmatpush1.msra.mxu0 %v2099
    %2446 = vmatprep.subr.mxu0 %v2094
    %2447 = vmatpush1.msra.mxu0 %v2093
    %2448 = vmatprep.subr.mxu0 %v2088
    %2449 = vmatpush1.msra.mxu0 %v2087
    %2450 = vmatprep.subr.mxu0 %v2082
    %2451 = vmatpush1.msra.mxu0 %v2081
    %2452 = vmatprep.subr.mxu0 %v2076
    %2453 = vmatpush1.msra.mxu0 %v2075
    %2454 = vmatprep.subr.mxu0 %v2070
    %2455 = vmatpush1.msra.mxu0 %v2069
    %2456 = vmatprep.subr.mxu0 %v2064
    %2457 = vmatpush1.msra.mxu0 %v2063
    %2458 = vmatprep.subr.mxu0 %v2058
    %2459 = vmatpush1.msra.mxu0 %v2057
    %2460 = vmatprep.subr.mxu0 %v2052
    %2461 = vmatpush1.msra.mxu0 %v2051
    %2462 = vmatprep.subr.mxu0 %v2046
    %2463 = vmatpush1.msra.mxu0 %v2045
    %2464 = vmatprep.subr.mxu0 %v2040
    %2465 = vmatpush1.msra.mxu0 %v2039
    %2466 = vmatprep.subr.mxu0 %v2034
    %2467 = vmatpush1.msra.mxu0 %v2033
    %2468 = vmatprep.subr.mxu0 %v2220
    %2469 = vmatpush2.msra.mxu0 %v2219
    %2470 = vmatprep.subr.mxu0 %v2214
    %2471 = vmatpush2.msra.mxu0 %v2213
    %2472 = vmatprep.subr.mxu0 %v2208
    %2473 = vmatpush2.msra.mxu0 %v2207
    %2474 = vmatprep.subr.mxu0 %v2202
    %2475 = vmatpush2.msra.mxu0 %v2201
    %2476 = vmatprep.subr.mxu0 %v2196
    %2477 = vmatpush2.msra.mxu0 %v2195
    %2478 = vmatprep.subr.mxu0 %v2190
    %2479 = vmatpush2.msra.mxu0 %v2189
    %2480 = vmatprep.subr.mxu0 %v2184
    %2481 = vmatpush2.msra.mxu0 %v2183
    %2482 = vmatprep.subr.mxu0 %v2178
    %2483 = vmatpush2.msra.mxu0 %v2177
    %2484 = vmatprep.subr.mxu0 %v2172
    %2485 = vmatpush2.msra.mxu0 %v2171
    %2486 = vmatprep.subr.mxu0 %v2166
    %2487 = vmatpush2.msra.mxu0 %v2165
    %2488 = vmatprep.subr.mxu0 %v2160
    %2489 = vmatpush2.msra.mxu0 %v2159
    %2490 = vmatprep.subr.mxu0 %v2154
    %2491 = vmatpush2.msra.mxu0 %v2153
    %2492 = vmatprep.subr.mxu0 %v2148
    %2493 = vmatpush2.msra.mxu0 %v2147
    %2494 = vmatprep.subr.mxu0 %v2142
    %2495 = vmatpush2.msra.mxu0 %v2141
    %2496 = vmatprep.subr.mxu0 %v2136
    %2497 = vmatpush2.msra.mxu0 %v2135
    %2498 = vmatprep.subr.mxu0 %v2130
    %2499 = vmatpush2.msra.mxu0 %v2129
    %2500 = vmatprep.mubr.f32.mxu0 %v1838
    %2501 = vmatmul.mubr.f32.gmra.mxu0 %v1837
    %v2502 = vpop.f32.mrf.mxu0
    %v2503 = vadd.f32 %v2432, %v2502
    %v2504 = vpop.f32.mrf.mxu0
    %v2505 = vadd.f32 %v2434, %v2504
    %2506 = vdwg.mxu0
    %2507 = vmatprep.subr.mxu0 %v1934
    %2508 = vmatpush1.msra.mxu0 %v1933
    %2509 = vmatprep.subr.mxu0 %v1928
    %2510 = vmatpush1.msra.mxu0 %v1927
    %2511 = vmatprep.subr.mxu0 %v1922
    %2512 = vmatpush1.msra.mxu0 %v1921
    %2513 = vmatprep.subr.mxu0 %v1916
    %2514 = vmatpush1.msra.mxu0 %v1915
    %2515 = vmatprep.subr.mxu0 %v1910
    %2516 = vmatpush1.msra.mxu0 %v1909
    %2517 = vmatprep.subr.mxu0 %v1904
    %2518 = vmatpush1.msra.mxu0 %v1903
    %2519 = vmatprep.subr.mxu0 %v1898
    %2520 = vmatpush1.msra.mxu0 %v1897
    %2521 = vmatprep.subr.mxu0 %v1892
    %2522 = vmatpush1.msra.mxu0 %v1891
    %2523 = vmatprep.subr.mxu0 %v1886
    %2524 = vmatpush1.msra.mxu0 %v1885
    %2525 = vmatprep.subr.mxu0 %v1880
    %2526 = vmatpush1.msra.mxu0 %v1879
    %2527 = vmatprep.subr.mxu0 %v1874
    %2528 = vmatpush1.msra.mxu0 %v1873
    %2529 = vmatprep.subr.mxu0 %v1868
    %2530 = vmatpush1.msra.mxu0 %v1867
    %2531 = vmatprep.subr.mxu0 %v1862
    %2532 = vmatpush1.msra.mxu0 %v1861
    %2533 = vmatprep.subr.mxu0 %v1856
    %2534 = vmatpush1.msra.mxu0 %v1855
    %2535 = vmatprep.subr.mxu0 %v1850
    %2536 = vmatpush1.msra.mxu0 %v1849
    %2537 = vmatprep.subr.mxu0 %v1844
    %2538 = vmatpush1.msra.mxu0 %v1843
    %2539 = vmatprep.subr.mxu0 %v2030
    %2540 = vmatpush2.msra.mxu0 %v2029
    %2541 = vmatprep.subr.mxu0 %v2024
    %2542 = vmatpush2.msra.mxu0 %v2023
    %2543 = vmatprep.subr.mxu0 %v2018
    %2544 = vmatpush2.msra.mxu0 %v2017
    %2545 = vmatprep.subr.mxu0 %v2012
    %2546 = vmatpush2.msra.mxu0 %v2011
    %2547 = vmatprep.subr.mxu0 %v2006
    %2548 = vmatpush2.msra.mxu0 %v2005
    %2549 = vmatprep.subr.mxu0 %v2000
    %2550 = vmatpush2.msra.mxu0 %v1999
    %2551 = vmatprep.subr.mxu0 %v1994
    %2552 = vmatpush2.msra.mxu0 %v1993
    %2553 = vmatprep.subr.mxu0 %v1988
    %2554 = vmatpush2.msra.mxu0 %v1987
    %2555 = vmatprep.subr.mxu0 %v1982
    %2556 = vmatpush2.msra.mxu0 %v1981
    %2557 = vmatprep.subr.mxu0 %v1976
    %2558 = vmatpush2.msra.mxu0 %v1975
    %2559 = vmatprep.subr.mxu0 %v1970
    %2560 = vmatpush2.msra.mxu0 %v1969
    %2561 = vmatprep.subr.mxu0 %v1964
    %2562 = vmatpush2.msra.mxu0 %v1963
    %2563 = vmatprep.subr.mxu0 %v1958
    %2564 = vmatpush2.msra.mxu0 %v1957
    %2565 = vmatprep.subr.mxu0 %v1952
    %2566 = vmatpush2.msra.mxu0 %v1951
    %2567 = vmatprep.subr.mxu0 %v1946
    %2568 = vmatpush2.msra.mxu0 %v1945
    %2569 = vmatprep.subr.mxu0 %v1940
    %2570 = vmatpush2.msra.mxu0 %v1939
    %2571 = vmatprep.mubr.f32.mxu0 %v1836
    %2572 = vmatmul.mubr.f32.gmra.mxu0 %v1835
    %v2573 = vpop.f32.mrf.mxu0
    %v2574 = vadd.f32 0.0, %v2573
    %v2575 = vpop.f32.mrf.mxu0
    %v2576 = vadd.f32 0.0, %v2575
    %2577 = vdwg.mxu0
    %2578 = vmatprep.subr.mxu0 %v2126
    %2579 = vmatpush1.msra.mxu0 %v2125
    %2580 = vmatprep.subr.mxu0 %v2120
    %2581 = vmatpush1.msra.mxu0 %v2119
    %2582 = vmatprep.subr.mxu0 %v2114
    %2583 = vmatpush1.msra.mxu0 %v2113
    %2584 = vmatprep.subr.mxu0 %v2108
    %2585 = vmatpush1.msra.mxu0 %v2107
    %2586 = vmatprep.subr.mxu0 %v2102
    %2587 = vmatpush1.msra.mxu0 %v2101
    %2588 = vmatprep.subr.mxu0 %v2096
    %2589 = vmatpush1.msra.mxu0 %v2095
    %2590 = vmatprep.subr.mxu0 %v2090
    %2591 = vmatpush1.msra.mxu0 %v2089
    %2592 = vmatprep.subr.mxu0 %v2084
    %2593 = vmatpush1.msra.mxu0 %v2083
    %2594 = vmatprep.subr.mxu0 %v2078
    %2595 = vmatpush1.msra.mxu0 %v2077
    %2596 = vmatprep.subr.mxu0 %v2072
    %2597 = vmatpush1.msra.mxu0 %v2071
    %2598 = vmatprep.subr.mxu0 %v2066
    %2599 = vmatpush1.msra.mxu0 %v2065
    %2600 = vmatprep.subr.mxu0 %v2060
    %2601 = vmatpush1.msra.mxu0 %v2059
    %2602 = vmatprep.subr.mxu0 %v2054
    %2603 = vmatpush1.msra.mxu0 %v2053
    %2604 = vmatprep.subr.mxu0 %v2048
    %2605 = vmatpush1.msra.mxu0 %v2047
    %2606 = vmatprep.subr.mxu0 %v2042
    %2607 = vmatpush1.msra.mxu0 %v2041
    %2608 = vmatprep.subr.mxu0 %v2036
    %2609 = vmatpush1.msra.mxu0 %v2035
    %2610 = vmatprep.subr.mxu0 %v2222
    %2611 = vmatpush2.msra.mxu0 %v2221
    %2612 = vmatprep.subr.mxu0 %v2216
    %2613 = vmatpush2.msra.mxu0 %v2215
    %2614 = vmatprep.subr.mxu0 %v2210
    %2615 = vmatpush2.msra.mxu0 %v2209
    %2616 = vmatprep.subr.mxu0 %v2204
    %2617 = vmatpush2.msra.mxu0 %v2203
    %2618 = vmatprep.subr.mxu0 %v2198
    %2619 = vmatpush2.msra.mxu0 %v2197
    %2620 = vmatprep.subr.mxu0 %v2192
    %2621 = vmatpush2.msra.mxu0 %v2191
    %2622 = vmatprep.subr.mxu0 %v2186
    %2623 = vmatpush2.msra.mxu0 %v2185
    %2624 = vmatprep.subr.mxu0 %v2180
    %2625 = vmatpush2.msra.mxu0 %v2179
    %2626 = vmatprep.subr.mxu0 %v2174
    %2627 = vmatpush2.msra.mxu0 %v2173
    %2628 = vmatprep.subr.mxu0 %v2168
    %2629 = vmatpush2.msra.mxu0 %v2167
    %2630 = vmatprep.subr.mxu0 %v2162
    %2631 = vmatpush2.msra.mxu0 %v2161
    %2632 = vmatprep.subr.mxu0 %v2156
    %2633 = vmatpush2.msra.mxu0 %v2155
    %2634 = vmatprep.subr.mxu0 %v2150
    %2635 = vmatpush2.msra.mxu0 %v2149
    %2636 = vmatprep.subr.mxu0 %v2144
    %2637 = vmatpush2.msra.mxu0 %v2143
    %2638 = vmatprep.subr.mxu0 %v2138
    %2639 = vmatpush2.msra.mxu0 %v2137
    %2640 = vmatprep.subr.mxu0 %v2132
    %2641 = vmatpush2.msra.mxu0 %v2131
    %2642 = vmatprep.mubr.f32.mxu0 %v1838
    %2643 = vmatmul.mubr.f32.gmra.mxu0 %v1837
    %v2644 = vpop.f32.mrf.mxu0
    %v2645 = vadd.f32 %v2574, %v2644
    %v2646 = vpop.f32.mrf.mxu0
    %v2647 = vadd.f32 %v2576, %v2646
    %2648 = vdwg.mxu0
    %v2649 = vtanh.pop %v2361
    %v2650 = vtanh.pop %v2363
    %v2651 = vtanh.pop %v2503
    %v2652 = vtanh.pop %v2505
    %v2653 = vtanh.pop %v2645
    %v2654 = vtanh.pop %v2647
    %v2661 = vcombine.low %v2649, %v2650
    %v2662 = vcombine.low %v2651, %v2652
    %v2664 = vunpack.c.l.s4 1983009808
    %v2665 = vunpack.c.0.s8 %v2664
    %v2666 = vlaneseq
    %v2667 = vshrl.u32 %v2666, 7
    %v2668 = vsub.s32 %v2665, %v2667
    %v2669 = vrot.slane %v2661, %v2668
    %v2671 = vunpack.c.l.s4 1983009808
    %v2672 = vunpack.c.0.s8 %v2671
    %v2673 = vlaneseq
    %v2674 = vshrl.u32 %v2673, 7
    %v2675 = vsub.s32 %v2672, %v2674
    %v2676 = vrot.slane %v2662, %v2675
    %v2677 = vcombine.low %v2669, %v2676
    %v2678 = vcombine.low %v2653, %v2654
    %v2680 = vunpack.c.l.s4 1983009808
    %v2681 = vunpack.c.0.s8 %v2680
    %v2682 = vlaneseq
    %v2683 = vshrl.u32 %v2682, 7
    %v2684 = vsub.s32 %v2681, %v2683
    %v2685 = vrot.slane %v2678, %v2684
    %2688 = vst [vmem:[%s12] sm:$0xff] %v2677
    %2689 = vst [vmem:[%s12 + $0x8] sm:$0xf] %v2685
    // Predicated region
    $region90: #{dcgan_g_forward.1} parent=1 // pred_check
      _
    $region91: #{dcgan_g_forward.1} parent=1 // pred_check_branch
      %2691 = sbr.rel (0) target = $region93
    $region92: #{dcgan_g_forward.1} parent=1 // pred_region
      _
    $region93: #{dcgan_g_forward.1} parent=1 // pred_fallthru
      _
    // Predicated region
    $region94: #{dcgan_g_forward.1} parent=1 // pred_check
      _
    $region95: #{dcgan_g_forward.1} parent=1 // pred_check_branch
      %2693 = sbr.rel (0) target = $region97
    $region96: #{dcgan_g_forward.1} parent=1 // pred_region
      _
    $region97: #{dcgan_g_forward.1} parent=1 // pred_fallthru
      _
    %2694 = vsyncpa [#allocation3], 1
    %2695 = vsyncpa [#allocation5], 1
    %2696 = vsyncpa [#allocation8], 1
    %2697 = vsyncpa [#allocation11], 1
    %2698 = vsyncpa [#allocation14], 1
    %2699 = vsyncpa [#allocation17], 1

</llo_original>
